<compile_context>
chip_gen: v5e
topology: v5e:2x2
jax: 0.10.0
libtpu: 0.0.40
codegen_flags: <defaults>
</compile_context>

<pallas_src>
import functools

import jax
import jax.numpy as jnp
from jax import lax
from jax.experimental import pallas as pl
from jax.experimental.pallas import tpu as pltpu

H = W = 16  # spatial size used by the example


# ---------------------------------------------------------------------------
# In-kernel helpers (operate on flat (C, h*row_stride) activations; row y
# occupies lanes [y*row_stride, y*row_stride + valid_w) -- the rest is garbage)
# ---------------------------------------------------------------------------
def _conv_layer_flat(flat, valid_w, row_stride, wmat, ksize, alpha=None):
    """Conv2d(reflect pad, stride 1, no bias) as ONE lane-dense matmul.

    flat : (Cin, h*row_stride) float32
    wmat : (Cout, ksize*ksize*Cin), tap order (kh, kw, ci)
    Returns (out_flat, new_row_stride) with out_flat (Cout, h*new_row_stride);
    applies PReLU with scalar `alpha` if given.
    """
    cin = flat.shape[0]
    h = flat.shape[1] // row_stride
    p = ksize // 2
    wq = valid_w + 2 * p  # padded row width for this layer

    # Valid rows of the input image.
    rows = [flat[:, y * row_stride: y * row_stride + valid_w] for y in range(h)]

    def pad_row(r):  # reflect-pad one row in W: (Cin, valid_w) -> (Cin, wq)
        left = [r[:, p - j: p - j + 1] for j in range(p)]
        right = [r[:, valid_w - 2 - j: valid_w - 1 - j] for j in range(p)]
        return jnp.concatenate(left + [r] + right, axis=1)

    prows = [pad_row(r) for r in rows]
    order = ([p - j for j in range(p)] + list(range(h))
             + [h - 2 - j for j in range(p)])          # reflect-pad in H
    f = jnp.concatenate([prows[y] for y in order], axis=1)   # (Cin, (h+2p)*wq)
    # Tail padding so the largest tap offset stays in range (feeds only the
    # garbage columns that are dropped later).
    f = jnp.concatenate([f, f[:, : 2 * p]], axis=1)

    # im2col: each tap is a contiguous lane slice of the flattened padded image.
    n = h * wq
    taps = [f[:, kh * wq + kw: kh * wq + kw + n]
            for kh in range(ksize) for kw in range(ksize)]
    patches = jnp.concatenate(taps, axis=0)            # (ksize*ksize*Cin, n)

    out = jnp.dot(wmat, patches, preferred_element_type=jnp.float32)  # (Cout, n)
    if alpha is not None:
        out = jnp.where(out >= 0.0, out, alpha * out)  # PReLU
    return out, wq


def _extract_valid(flat, valid_w, row_stride):
    """Drop the garbage columns: (C, h*row_stride) -> (C, h*valid_w)."""
    h = flat.shape[1] // row_stride
    return jnp.concatenate(
        [flat[:, y * row_stride: y * row_stride + valid_w] for y in range(h)],
        axis=1)


def _fused_net_kernel(x_ref, p_ref, q_ref, w0_ref, w1_ref, w2_ref, w3_ref,
                      alpha_ref, o_ref, *, valid_w):
    # x_ref/p_ref/q_ref/o_ref blocks: (1, 1, H*W); weights pre-flattened 2D.
    a0 = jnp.concatenate([x_ref[0], p_ref[0]], axis=0)           # cat -> (2, H*W)

    h1, s1 = _conv_layer_flat(a0, valid_w, valid_w, w0_ref[...], 7, alpha_ref[0])
    h2, s2 = _conv_layer_flat(h1, valid_w, s1, w1_ref[...], 3, alpha_ref[1])
    h3, s3 = _conv_layer_flat(h2, valid_w, s2, w2_ref[...], 3, alpha_ref[2])
    y4, s4 = _conv_layer_flat(h3, valid_w, s3, w3_ref[...], 3, None)  # (1, 16*18)

    y = _extract_valid(y4, valid_w, s4)                          # (1, H*W)
    o_ref[0] = (q_ref[0] + y).astype(o_ref.dtype)                # residual add


# ---------------------------------------------------------------------------
# Wrapper: single fused pallas_call, grid over batch ("parallel")
# ---------------------------------------------------------------------------
def network_forward(weights_oihw, alphas, x, p, q):
    """weights_oihw: OIHW conv weights; alphas: (3,) PReLU slopes.
    x, p, q: (B, 1, H, W) float32 NCHW.  Returns (B, 1, H, W) float32."""
    B, _, hh, ww = x.shape

    # (Cout, Cin, KH, KW) -> (Cout, KH*KW*Cin), tap order (kh, kw, ci).
    wmats = [jnp.transpose(wt, (0, 2, 3, 1)).reshape(wt.shape[0], -1)
             .astype(jnp.float32) for wt in weights_oihw]

    hw = hh * ww
    xf = x.reshape(B, 1, hw).astype(jnp.float32)
    pf = p.reshape(B, 1, hw).astype(jnp.float32)
    qf = q.reshape(B, 1, hw).astype(jnp.float32)

    def img_spec():
        return pl.BlockSpec((1, 1, hw), lambda b: (b, 0, 0))

    n7, n3 = hh * (ww + 6), hh * (ww + 2)
    flops = 2 * B * (16 * 98 * n7 + 2 * 16 * 144 * n3 + 1 * 144 * n3)
    bytes_accessed = 4 * (4 * B * hw + 16 * 98 + 2 * 16 * 144 + 144 + 3)

    kernel = functools.partial(_fused_net_kernel, valid_w=ww)
    yf = pl.pallas_call(
        kernel,
        out_shape=jax.ShapeDtypeStruct((B, 1, hw), jnp.float32),
        grid=(B,),
        in_specs=[img_spec(), img_spec(), img_spec()]
        + [pl.BlockSpec(wm.shape, lambda b: (0, 0)) for wm in wmats]
        + [pl.BlockSpec(memory_space=pltpu.SMEM)],
        out_specs=pl.BlockSpec((1, 1, hw), lambda b: (b, 0, 0)),
        compiler_params=pltpu.CompilerParams(
            dimension_semantics=("parallel",)),
        cost_estimate=pl.CostEstimate(flops=flops, transcendentals=0,
                                      bytes_accessed=bytes_accessed),
    )(xf, pf, qf, *wmats, alphas)
    return yf.reshape(B, 1, hh, ww)


# ---------------------------------------------------------------------------
# Parameters (deterministic synthetic init; PyTorch OIHW shapes, bias-free)
# ---------------------------------------------------------------------------
def init_params(key, std=0.05):
    shapes = [(16, 2, 7, 7), (16, 16, 3, 3), (16, 16, 3, 3), (1, 16, 3, 3)]
    keys = jax.random.split(key, len(shapes))
    weights = [(std * jax.random.normal(k, s)).astype(jnp.float32)
               for k, s in zip(keys, shapes)]
    alphas = jnp.full((3,), 0.25, jnp.float32)  # PReLU(num_parameters=1, 0.25) x3
    return weights, alphas


# ---------------------------------------------------------------------------
# Pure-JAX reference (for correctness check)
# ---------------------------------------------------------------------------
def ref_forward(weights_oihw, alphas, x, p, q):
    h = jnp.concatenate([x, p], axis=1).astype(jnp.float32)
    for i, wt in enumerate(weights_oihw):
        pad = wt.shape[2] // 2
        hp = jnp.pad(h, ((0, 0), (0, 0), (pad, pad), (pad, pad)), mode="reflect")
        dn = lax.conv_dimension_numbers(hp.shape, wt.shape,
                                        ("NCHW", "OIHW", "NCHW"))
        h = lax.conv_general_dilated(hp, wt, (1, 1), "VALID",
                                     dimension_numbers=dn)
        if i < 3:
            h = jnp.where(h >= 0.0, h, alphas[i] * h)
    return q + h


# ---------------------------------------------------------------------------
if __name__ == "__main__":
    key = jax.random.PRNGKey(0)
    k_params, kx, kp, kq = jax.random.split(key, 4)

    B = 2
    x = jax.random.normal(kx, (B, 1, H, W), jnp.float32)
    p = jax.random.normal(kp, (B, 1, H, W), jnp.float32)
    q = jax.random.normal(kq, (B, 1, H, W), jnp.float32)

    weights, alphas = init_params(k_params)

    y = jax.block_until_ready(network_forward(weights, alphas, x, p, q))
    y_ref = jax.block_until_ready(ref_forward(weights, alphas, x, p, q))

    assert y.shape == (B, 1, H, W), y.shape
    assert jnp.allclose(y, y_ref, atol=1e-3, rtol=1e-3), (
        float(jnp.max(jnp.abs(y - y_ref)))
    )

    print("KERNEL_OK")
</pallas_src>

<mosaic_0001>
module attributes {stable_mosaic.version = 11 : i64} {
  func.func @_fused_net_kernel(%arg0: i32, %arg1: memref<1x1x256xf32, #tpu.memory_space<vmem>>, %arg2: memref<1x1x256xf32, #tpu.memory_space<vmem>>, %arg3: memref<1x1x256xf32, #tpu.memory_space<vmem>>, %arg4: memref<16x98xf32, #tpu.memory_space<vmem>>, %arg5: memref<16x144xf32, #tpu.memory_space<vmem>>, %arg6: memref<16x144xf32, #tpu.memory_space<vmem>>, %arg7: memref<1x144xf32, #tpu.memory_space<vmem>>, %arg8: memref<3xf32, #tpu.memory_space<smem>>, %arg9: memref<1x1x256xf32, #tpu.memory_space<vmem>>) attributes {dimension_semantics = [#tpu.dimension_semantics<parallel>], iteration_bounds = array<i64: 2>, scalar_prefetch = 0 : i64, scratch_operands = 0 : i64, tpu.core_type = #tpu.core_type<tc>, window_params = [{transform_indices = @transform_0, window_bounds = array<i64: 1, 1, 256>}, {transform_indices = @transform_1, window_bounds = array<i64: 1, 1, 256>}, {transform_indices = @transform_2, window_bounds = array<i64: 1, 1, 256>}, {pipeline_mode = #tpu.pipeline_mode<synchronous>, transform_indices = @transform_3, window_bounds = array<i64: 16, 98>}, {pipeline_mode = #tpu.pipeline_mode<synchronous>, transform_indices = @transform_4, window_bounds = array<i64: 16, 144>}, {pipeline_mode = #tpu.pipeline_mode<synchronous>, transform_indices = @transform_5, window_bounds = array<i64: 16, 144>}, {pipeline_mode = #tpu.pipeline_mode<synchronous>, transform_indices = @transform_6, window_bounds = array<i64: 1, 144>}, {transform_indices = @transform_7, window_bounds = array<i64: 3>}, {transform_indices = @transform_8, window_bounds = array<i64: 1, 1, 256>}]} {
    %c0 = arith.constant 0 : index
    %c0_0 = arith.constant 0 : index
    %c0_1 = arith.constant 0 : index
    %0 = vector.load %arg1[%c0, %c0_0, %c0_1] : memref<1x1x256xf32, #tpu.memory_space<vmem>>, vector<1x1x256xf32>
    %1 = vector.shape_cast %0 : vector<1x1x256xf32> to vector<1x256xf32>
    %c0_2 = arith.constant 0 : index
    %c0_3 = arith.constant 0 : index
    %c0_4 = arith.constant 0 : index
    %2 = vector.load %arg2[%c0_2, %c0_3, %c0_4] : memref<1x1x256xf32, #tpu.memory_space<vmem>>, vector<1x1x256xf32>
    %3 = vector.shape_cast %2 : vector<1x1x256xf32> to vector<1x256xf32>
    %4 = tpu.concatenate %1, %3 in 0 : vector<1x256xf32>, vector<1x256xf32> -> vector<2x256xf32>
    %c0_5 = arith.constant 0 : index
    %c0_6 = arith.constant 0 : index
    %5 = vector.load %arg4[%c0_5, %c0_6] : memref<16x98xf32, #tpu.memory_space<vmem>>, vector<16x98xf32>
    %c0_7 = arith.constant 0 : index
    %6 = memref.load %arg8[%c0_7] : memref<3xf32, #tpu.memory_space<smem>>
    %7 = vector.extract_strided_slice %4 {offsets = [0, 0], sizes = [2, 16], strides = [1, 1]} : vector<2x256xf32> to vector<2x16xf32>
    %8 = vector.extract_strided_slice %4 {offsets = [0, 16], sizes = [2, 16], strides = [1, 1]} : vector<2x256xf32> to vector<2x16xf32>
    %9 = vector.extract_strided_slice %4 {offsets = [0, 32], sizes = [2, 16], strides = [1, 1]} : vector<2x256xf32> to vector<2x16xf32>
    %10 = vector.extract_strided_slice %4 {offsets = [0, 48], sizes = [2, 16], strides = [1, 1]} : vector<2x256xf32> to vector<2x16xf32>
    %11 = vector.extract_strided_slice %4 {offsets = [0, 64], sizes = [2, 16], strides = [1, 1]} : vector<2x256xf32> to vector<2x16xf32>
    %12 = vector.extract_strided_slice %4 {offsets = [0, 80], sizes = [2, 16], strides = [1, 1]} : vector<2x256xf32> to vector<2x16xf32>
    %13 = vector.extract_strided_slice %4 {offsets = [0, 96], sizes = [2, 16], strides = [1, 1]} : vector<2x256xf32> to vector<2x16xf32>
    %14 = vector.extract_strided_slice %4 {offsets = [0, 112], sizes = [2, 16], strides = [1, 1]} : vector<2x256xf32> to vector<2x16xf32>
    %15 = vector.extract_strided_slice %4 {offsets = [0, 128], sizes = [2, 16], strides = [1, 1]} : vector<2x256xf32> to vector<2x16xf32>
    %16 = vector.extract_strided_slice %4 {offsets = [0, 144], sizes = [2, 16], strides = [1, 1]} : vector<2x256xf32> to vector<2x16xf32>
    %17 = vector.extract_strided_slice %4 {offsets = [0, 160], sizes = [2, 16], strides = [1, 1]} : vector<2x256xf32> to vector<2x16xf32>
    %18 = vector.extract_strided_slice %4 {offsets = [0, 176], sizes = [2, 16], strides = [1, 1]} : vector<2x256xf32> to vector<2x16xf32>
    %19 = vector.extract_strided_slice %4 {offsets = [0, 192], sizes = [2, 16], strides = [1, 1]} : vector<2x256xf32> to vector<2x16xf32>
    %20 = vector.extract_strided_slice %4 {offsets = [0, 208], sizes = [2, 16], strides = [1, 1]} : vector<2x256xf32> to vector<2x16xf32>
    %21 = vector.extract_strided_slice %4 {offsets = [0, 224], sizes = [2, 16], strides = [1, 1]} : vector<2x256xf32> to vector<2x16xf32>
    %22 = vector.extract_strided_slice %4 {offsets = [0, 240], sizes = [2, 16], strides = [1, 1]} : vector<2x256xf32> to vector<2x16xf32>
    %23 = vector.extract_strided_slice %7 {offsets = [0, 3], sizes = [2, 1], strides = [1, 1]} : vector<2x16xf32> to vector<2x1xf32>
    %24 = vector.extract_strided_slice %7 {offsets = [0, 2], sizes = [2, 1], strides = [1, 1]} : vector<2x16xf32> to vector<2x1xf32>
    %25 = vector.extract_strided_slice %7 {offsets = [0, 1], sizes = [2, 1], strides = [1, 1]} : vector<2x16xf32> to vector<2x1xf32>
    %26 = vector.extract_strided_slice %7 {offsets = [0, 14], sizes = [2, 1], strides = [1, 1]} : vector<2x16xf32> to vector<2x1xf32>
    %27 = vector.extract_strided_slice %7 {offsets = [0, 13], sizes = [2, 1], strides = [1, 1]} : vector<2x16xf32> to vector<2x1xf32>
    %28 = vector.extract_strided_slice %7 {offsets = [0, 12], sizes = [2, 1], strides = [1, 1]} : vector<2x16xf32> to vector<2x1xf32>
    %29 = tpu.concatenate %23, %24, %25, %7, %26, %27, %28 in 1 : vector<2x1xf32>, vector<2x1xf32>, vector<2x1xf32>, vector<2x16xf32>, vector<2x1xf32>, vector<2x1xf32>, vector<2x1xf32> -> vector<2x22xf32>
    %30 = vector.extract_strided_slice %8 {offsets = [0, 3], sizes = [2, 1], strides = [1, 1]} : vector<2x16xf32> to vector<2x1xf32>
    %31 = vector.extract_strided_slice %8 {offsets = [0, 2], sizes = [2, 1], strides = [1, 1]} : vector<2x16xf32> to vector<2x1xf32>
    %32 = vector.extract_strided_slice %8 {offsets = [0, 1], sizes = [2, 1], strides = [1, 1]} : vector<2x16xf32> to vector<2x1xf32>
    %33 = vector.extract_strided_slice %8 {offsets = [0, 14], sizes = [2, 1], strides = [1, 1]} : vector<2x16xf32> to vector<2x1xf32>
    %34 = vector.extract_strided_slice %8 {offsets = [0, 13], sizes = [2, 1], strides = [1, 1]} : vector<2x16xf32> to vector<2x1xf32>
    %35 = vector.extract_strided_slice %8 {offsets = [0, 12], sizes = [2, 1], strides = [1, 1]} : vector<2x16xf32> to vector<2x1xf32>
    %36 = tpu.concatenate %30, %31, %32, %8, %33, %34, %35 in 1 : vector<2x1xf32>, vector<2x1xf32>, vector<2x1xf32>, vector<2x16xf32>, vector<2x1xf32>, vector<2x1xf32>, vector<2x1xf32> -> vector<2x22xf32>
    %37 = vector.extract_strided_slice %9 {offsets = [0, 3], sizes = [2, 1], strides = [1, 1]} : vector<2x16xf32> to vector<2x1xf32>
    %38 = vector.extract_strided_slice %9 {offsets = [0, 2], sizes = [2, 1], strides = [1, 1]} : vector<2x16xf32> to vector<2x1xf32>
    %39 = vector.extract_strided_slice %9 {offsets = [0, 1], sizes = [2, 1], strides = [1, 1]} : vector<2x16xf32> to vector<2x1xf32>
    %40 = vector.extract_strided_slice %9 {offsets = [0, 14], sizes = [2, 1], strides = [1, 1]} : vector<2x16xf32> to vector<2x1xf32>
    %41 = vector.extract_strided_slice %9 {offsets = [0, 13], sizes = [2, 1], strides = [1, 1]} : vector<2x16xf32> to vector<2x1xf32>
    %42 = vector.extract_strided_slice %9 {offsets = [0, 12], sizes = [2, 1], strides = [1, 1]} : vector<2x16xf32> to vector<2x1xf32>
    %43 = tpu.concatenate %37, %38, %39, %9, %40, %41, %42 in 1 : vector<2x1xf32>, vector<2x1xf32>, vector<2x1xf32>, vector<2x16xf32>, vector<2x1xf32>, vector<2x1xf32>, vector<2x1xf32> -> vector<2x22xf32>
    %44 = vector.extract_strided_slice %10 {offsets = [0, 3], sizes = [2, 1], strides = [1, 1]} : vector<2x16xf32> to vector<2x1xf32>
    %45 = vector.extract_strided_slice %10 {offsets = [0, 2], sizes = [2, 1], strides = [1, 1]} : vector<2x16xf32> to vector<2x1xf32>
    %46 = vector.extract_strided_slice %10 {offsets = [0, 1], sizes = [2, 1], strides = [1, 1]} : vector<2x16xf32> to vector<2x1xf32>
    %47 = vector.extract_strided_slice %10 {offsets = [0, 14], sizes = [2, 1], strides = [1, 1]} : vector<2x16xf32> to vector<2x1xf32>
    %48 = vector.extract_strided_slice %10 {offsets = [0, 13], sizes = [2, 1], strides = [1, 1]} : vector<2x16xf32> to vector<2x1xf32>
    %49 = vector.extract_strided_slice %10 {offsets = [0, 12], sizes = [2, 1], strides = [1, 1]} : vector<2x16xf32> to vector<2x1xf32>
    %50 = tpu.concatenate %44, %45, %46, %10, %47, %48, %49 in 1 : vector<2x1xf32>, vector<2x1xf32>, vector<2x1xf32>, vector<2x16xf32>, vector<2x1xf32>, vector<2x1xf32>, vector<2x1xf32> -> vector<2x22xf32>
    %51 = vector.extract_strided_slice %11 {offsets = [0, 3], sizes = [2, 1], strides = [1, 1]} : vector<2x16xf32> to vector<2x1xf32>
    %52 = vector.extract_strided_slice %11 {offsets = [0, 2], sizes = [2, 1], strides = [1, 1]} : vector<2x16xf32> to vector<2x1xf32>
    %53 = vector.extract_strided_slice %11 {offsets = [0, 1], sizes = [2, 1], strides = [1, 1]} : vector<2x16xf32> to vector<2x1xf32>
    %54 = vector.extract_strided_slice %11 {offsets = [0, 14], sizes = [2, 1], strides = [1, 1]} : vector<2x16xf32> to vector<2x1xf32>
    %55 = vector.extract_strided_slice %11 {offsets = [0, 13], sizes = [2, 1], strides = [1, 1]} : vector<2x16xf32> to vector<2x1xf32>
    %56 = vector.extract_strided_slice %11 {offsets = [0, 12], sizes = [2, 1], strides = [1, 1]} : vector<2x16xf32> to vector<2x1xf32>
    %57 = tpu.concatenate %51, %52, %53, %11, %54, %55, %56 in 1 : vector<2x1xf32>, vector<2x1xf32>, vector<2x1xf32>, vector<2x16xf32>, vector<2x1xf32>, vector<2x1xf32>, vector<2x1xf32> -> vector<2x22xf32>
    %58 = vector.extract_strided_slice %12 {offsets = [0, 3], sizes = [2, 1], strides = [1, 1]} : vector<2x16xf32> to vector<2x1xf32>
    %59 = vector.extract_strided_slice %12 {offsets = [0, 2], sizes = [2, 1], strides = [1, 1]} : vector<2x16xf32> to vector<2x1xf32>
    %60 = vector.extract_strided_slice %12 {offsets = [0, 1], sizes = [2, 1], strides = [1, 1]} : vector<2x16xf32> to vector<2x1xf32>
    %61 = vector.extract_strided_slice %12 {offsets = [0, 14], sizes = [2, 1], strides = [1, 1]} : vector<2x16xf32> to vector<2x1xf32>
    %62 = vector.extract_strided_slice %12 {offsets = [0, 13], sizes = [2, 1], strides = [1, 1]} : vector<2x16xf32> to vector<2x1xf32>
    %63 = vector.extract_strided_slice %12 {offsets = [0, 12], sizes = [2, 1], strides = [1, 1]} : vector<2x16xf32> to vector<2x1xf32>
    %64 = tpu.concatenate %58, %59, %60, %12, %61, %62, %63 in 1 : vector<2x1xf32>, vector<2x1xf32>, vector<2x1xf32>, vector<2x16xf32>, vector<2x1xf32>, vector<2x1xf32>, vector<2x1xf32> -> vector<2x22xf32>
    %65 = vector.extract_strided_slice %13 {offsets = [0, 3], sizes = [2, 1], strides = [1, 1]} : vector<2x16xf32> to vector<2x1xf32>
    %66 = vector.extract_strided_slice %13 {offsets = [0, 2], sizes = [2, 1], strides = [1, 1]} : vector<2x16xf32> to vector<2x1xf32>
    %67 = vector.extract_strided_slice %13 {offsets = [0, 1], sizes = [2, 1], strides = [1, 1]} : vector<2x16xf32> to vector<2x1xf32>
    %68 = vector.extract_strided_slice %13 {offsets = [0, 14], sizes = [2, 1], strides = [1, 1]} : vector<2x16xf32> to vector<2x1xf32>
    %69 = vector.extract_strided_slice %13 {offsets = [0, 13], sizes = [2, 1], strides = [1, 1]} : vector<2x16xf32> to vector<2x1xf32>
    %70 = vector.extract_strided_slice %13 {offsets = [0, 12], sizes = [2, 1], strides = [1, 1]} : vector<2x16xf32> to vector<2x1xf32>
    %71 = tpu.concatenate %65, %66, %67, %13, %68, %69, %70 in 1 : vector<2x1xf32>, vector<2x1xf32>, vector<2x1xf32>, vector<2x16xf32>, vector<2x1xf32>, vector<2x1xf32>, vector<2x1xf32> -> vector<2x22xf32>
    %72 = vector.extract_strided_slice %14 {offsets = [0, 3], sizes = [2, 1], strides = [1, 1]} : vector<2x16xf32> to vector<2x1xf32>
    %73 = vector.extract_strided_slice %14 {offsets = [0, 2], sizes = [2, 1], strides = [1, 1]} : vector<2x16xf32> to vector<2x1xf32>
    %74 = vector.extract_strided_slice %14 {offsets = [0, 1], sizes = [2, 1], strides = [1, 1]} : vector<2x16xf32> to vector<2x1xf32>
    %75 = vector.extract_strided_slice %14 {offsets = [0, 14], sizes = [2, 1], strides = [1, 1]} : vector<2x16xf32> to vector<2x1xf32>
    %76 = vector.extract_strided_slice %14 {offsets = [0, 13], sizes = [2, 1], strides = [1, 1]} : vector<2x16xf32> to vector<2x1xf32>
    %77 = vector.extract_strided_slice %14 {offsets = [0, 12], sizes = [2, 1], strides = [1, 1]} : vector<2x16xf32> to vector<2x1xf32>
    %78 = tpu.concatenate %72, %73, %74, %14, %75, %76, %77 in 1 : vector<2x1xf32>, vector<2x1xf32>, vector<2x1xf32>, vector<2x16xf32>, vector<2x1xf32>, vector<2x1xf32>, vector<2x1xf32> -> vector<2x22xf32>
    %79 = vector.extract_strided_slice %15 {offsets = [0, 3], sizes = [2, 1], strides = [1, 1]} : vector<2x16xf32> to vector<2x1xf32>
    %80 = vector.extract_strided_slice %15 {offsets = [0, 2], sizes = [2, 1], strides = [1, 1]} : vector<2x16xf32> to vector<2x1xf32>
    %81 = vector.extract_strided_slice %15 {offsets = [0, 1], sizes = [2, 1], strides = [1, 1]} : vector<2x16xf32> to vector<2x1xf32>
    %82 = vector.extract_strided_slice %15 {offsets = [0, 14], sizes = [2, 1], strides = [1, 1]} : vector<2x16xf32> to vector<2x1xf32>
    %83 = vector.extract_strided_slice %15 {offsets = [0, 13], sizes = [2, 1], strides = [1, 1]} : vector<2x16xf32> to vector<2x1xf32>
    %84 = vector.extract_strided_slice %15 {offsets = [0, 12], sizes = [2, 1], strides = [1, 1]} : vector<2x16xf32> to vector<2x1xf32>
    %85 = tpu.concatenate %79, %80, %81, %15, %82, %83, %84 in 1 : vector<2x1xf32>, vector<2x1xf32>, vector<2x1xf32>, vector<2x16xf32>, vector<2x1xf32>, vector<2x1xf32>, vector<2x1xf32> -> vector<2x22xf32>
    %86 = vector.extract_strided_slice %16 {offsets = [0, 3], sizes = [2, 1], strides = [1, 1]} : vector<2x16xf32> to vector<2x1xf32>
    %87 = vector.extract_strided_slice %16 {offsets = [0, 2], sizes = [2, 1], strides = [1, 1]} : vector<2x16xf32> to vector<2x1xf32>
    %88 = vector.extract_strided_slice %16 {offsets = [0, 1], sizes = [2, 1], strides = [1, 1]} : vector<2x16xf32> to vector<2x1xf32>
    %89 = vector.extract_strided_slice %16 {offsets = [0, 14], sizes = [2, 1], strides = [1, 1]} : vector<2x16xf32> to vector<2x1xf32>
    %90 = vector.extract_strided_slice %16 {offsets = [0, 13], sizes = [2, 1], strides = [1, 1]} : vector<2x16xf32> to vector<2x1xf32>
    %91 = vector.extract_strided_slice %16 {offsets = [0, 12], sizes = [2, 1], strides = [1, 1]} : vector<2x16xf32> to vector<2x1xf32>
    %92 = tpu.concatenate %86, %87, %88, %16, %89, %90, %91 in 1 : vector<2x1xf32>, vector<2x1xf32>, vector<2x1xf32>, vector<2x16xf32>, vector<2x1xf32>, vector<2x1xf32>, vector<2x1xf32> -> vector<2x22xf32>
    %93 = vector.extract_strided_slice %17 {offsets = [0, 3], sizes = [2, 1], strides = [1, 1]} : vector<2x16xf32> to vector<2x1xf32>
    %94 = vector.extract_strided_slice %17 {offsets = [0, 2], sizes = [2, 1], strides = [1, 1]} : vector<2x16xf32> to vector<2x1xf32>
    %95 = vector.extract_strided_slice %17 {offsets = [0, 1], sizes = [2, 1], strides = [1, 1]} : vector<2x16xf32> to vector<2x1xf32>
    %96 = vector.extract_strided_slice %17 {offsets = [0, 14], sizes = [2, 1], strides = [1, 1]} : vector<2x16xf32> to vector<2x1xf32>
    %97 = vector.extract_strided_slice %17 {offsets = [0, 13], sizes = [2, 1], strides = [1, 1]} : vector<2x16xf32> to vector<2x1xf32>
    %98 = vector.extract_strided_slice %17 {offsets = [0, 12], sizes = [2, 1], strides = [1, 1]} : vector<2x16xf32> to vector<2x1xf32>
    %99 = tpu.concatenate %93, %94, %95, %17, %96, %97, %98 in 1 : vector<2x1xf32>, vector<2x1xf32>, vector<2x1xf32>, vector<2x16xf32>, vector<2x1xf32>, vector<2x1xf32>, vector<2x1xf32> -> vector<2x22xf32>
    %100 = vector.extract_strided_slice %18 {offsets = [0, 3], sizes = [2, 1], strides = [1, 1]} : vector<2x16xf32> to vector<2x1xf32>
    %101 = vector.extract_strided_slice %18 {offsets = [0, 2], sizes = [2, 1], strides = [1, 1]} : vector<2x16xf32> to vector<2x1xf32>
    %102 = vector.extract_strided_slice %18 {offsets = [0, 1], sizes = [2, 1], strides = [1, 1]} : vector<2x16xf32> to vector<2x1xf32>
    %103 = vector.extract_strided_slice %18 {offsets = [0, 14], sizes = [2, 1], strides = [1, 1]} : vector<2x16xf32> to vector<2x1xf32>
    %104 = vector.extract_strided_slice %18 {offsets = [0, 13], sizes = [2, 1], strides = [1, 1]} : vector<2x16xf32> to vector<2x1xf32>
    %105 = vector.extract_strided_slice %18 {offsets = [0, 12], sizes = [2, 1], strides = [1, 1]} : vector<2x16xf32> to vector<2x1xf32>
    %106 = tpu.concatenate %100, %101, %102, %18, %103, %104, %105 in 1 : vector<2x1xf32>, vector<2x1xf32>, vector<2x1xf32>, vector<2x16xf32>, vector<2x1xf32>, vector<2x1xf32>, vector<2x1xf32> -> vector<2x22xf32>
    %107 = vector.extract_strided_slice %19 {offsets = [0, 3], sizes = [2, 1], strides = [1, 1]} : vector<2x16xf32> to vector<2x1xf32>
    %108 = vector.extract_strided_slice %19 {offsets = [0, 2], sizes = [2, 1], strides = [1, 1]} : vector<2x16xf32> to vector<2x1xf32>
    %109 = vector.extract_strided_slice %19 {offsets = [0, 1], sizes = [2, 1], strides = [1, 1]} : vector<2x16xf32> to vector<2x1xf32>
    %110 = vector.extract_strided_slice %19 {offsets = [0, 14], sizes = [2, 1], strides = [1, 1]} : vector<2x16xf32> to vector<2x1xf32>
    %111 = vector.extract_strided_slice %19 {offsets = [0, 13], sizes = [2, 1], strides = [1, 1]} : vector<2x16xf32> to vector<2x1xf32>
    %112 = vector.extract_strided_slice %19 {offsets = [0, 12], sizes = [2, 1], strides = [1, 1]} : vector<2x16xf32> to vector<2x1xf32>
    %113 = tpu.concatenate %107, %108, %109, %19, %110, %111, %112 in 1 : vector<2x1xf32>, vector<2x1xf32>, vector<2x1xf32>, vector<2x16xf32>, vector<2x1xf32>, vector<2x1xf32>, vector<2x1xf32> -> vector<2x22xf32>
    %114 = vector.extract_strided_slice %20 {offsets = [0, 3], sizes = [2, 1], strides = [1, 1]} : vector<2x16xf32> to vector<2x1xf32>
    %115 = vector.extract_strided_slice %20 {offsets = [0, 2], sizes = [2, 1], strides = [1, 1]} : vector<2x16xf32> to vector<2x1xf32>
    %116 = vector.extract_strided_slice %20 {offsets = [0, 1], sizes = [2, 1], strides = [1, 1]} : vector<2x16xf32> to vector<2x1xf32>
    %117 = vector.extract_strided_slice %20 {offsets = [0, 14], sizes = [2, 1], strides = [1, 1]} : vector<2x16xf32> to vector<2x1xf32>
    %118 = vector.extract_strided_slice %20 {offsets = [0, 13], sizes = [2, 1], strides = [1, 1]} : vector<2x16xf32> to vector<2x1xf32>
    %119 = vector.extract_strided_slice %20 {offsets = [0, 12], sizes = [2, 1], strides = [1, 1]} : vector<2x16xf32> to vector<2x1xf32>
    %120 = tpu.concatenate %114, %115, %116, %20, %117, %118, %119 in 1 : vector<2x1xf32>, vector<2x1xf32>, vector<2x1xf32>, vector<2x16xf32>, vector<2x1xf32>, vector<2x1xf32>, vector<2x1xf32> -> vector<2x22xf32>
    %121 = vector.extract_strided_slice %21 {offsets = [0, 3], sizes = [2, 1], strides = [1, 1]} : vector<2x16xf32> to vector<2x1xf32>
    %122 = vector.extract_strided_slice %21 {offsets = [0, 2], sizes = [2, 1], strides = [1, 1]} : vector<2x16xf32> to vector<2x1xf32>
    %123 = vector.extract_strided_slice %21 {offsets = [0, 1], sizes = [2, 1], strides = [1, 1]} : vector<2x16xf32> to vector<2x1xf32>
    %124 = vector.extract_strided_slice %21 {offsets = [0, 14], sizes = [2, 1], strides = [1, 1]} : vector<2x16xf32> to vector<2x1xf32>
    %125 = vector.extract_strided_slice %21 {offsets = [0, 13], sizes = [2, 1], strides = [1, 1]} : vector<2x16xf32> to vector<2x1xf32>
    %126 = vector.extract_strided_slice %21 {offsets = [0, 12], sizes = [2, 1], strides = [1, 1]} : vector<2x16xf32> to vector<2x1xf32>
    %127 = tpu.concatenate %121, %122, %123, %21, %124, %125, %126 in 1 : vector<2x1xf32>, vector<2x1xf32>, vector<2x1xf32>, vector<2x16xf32>, vector<2x1xf32>, vector<2x1xf32>, vector<2x1xf32> -> vector<2x22xf32>
    %128 = vector.extract_strided_slice %22 {offsets = [0, 3], sizes = [2, 1], strides = [1, 1]} : vector<2x16xf32> to vector<2x1xf32>
    %129 = vector.extract_strided_slice %22 {offsets = [0, 2], sizes = [2, 1], strides = [1, 1]} : vector<2x16xf32> to vector<2x1xf32>
    %130 = vector.extract_strided_slice %22 {offsets = [0, 1], sizes = [2, 1], strides = [1, 1]} : vector<2x16xf32> to vector<2x1xf32>
    %131 = vector.extract_strided_slice %22 {offsets = [0, 14], sizes = [2, 1], strides = [1, 1]} : vector<2x16xf32> to vector<2x1xf32>
    %132 = vector.extract_strided_slice %22 {offsets = [0, 13], sizes = [2, 1], strides = [1, 1]} : vector<2x16xf32> to vector<2x1xf32>
    %133 = vector.extract_strided_slice %22 {offsets = [0, 12], sizes = [2, 1], strides = [1, 1]} : vector<2x16xf32> to vector<2x1xf32>
    %134 = tpu.concatenate %128, %129, %130, %22, %131, %132, %133 in 1 : vector<2x1xf32>, vector<2x1xf32>, vector<2x1xf32>, vector<2x16xf32>, vector<2x1xf32>, vector<2x1xf32>, vector<2x1xf32> -> vector<2x22xf32>
    %135 = tpu.concatenate %50, %43, %36, %29, %36, %43, %50, %57, %64, %71, %78, %85, %92, %99, %106, %113 in 1 : vector<2x22xf32>, vector<2x22xf32>, vector<2x22xf32>, vector<2x22xf32>, vector<2x22xf32>, vector<2x22xf32>, vector<2x22xf32>, vector<2x22xf32>, vector<2x22xf32>, vector<2x22xf32>, vector<2x22xf32>, vector<2x22xf32>, vector<2x22xf32>, vector<2x22xf32>, vector<2x22xf32>, vector<2x22xf32> -> vector<2x352xf32>
    %136 = tpu.concatenate %120, %127, %134, %127, %120, %113 in 1 : vector<2x22xf32>, vector<2x22xf32>, vector<2x22xf32>, vector<2x22xf32>, vector<2x22xf32>, vector<2x22xf32> -> vector<2x132xf32>
    %137 = tpu.concatenate %135, %136 in 1 : vector<2x352xf32>, vector<2x132xf32> -> vector<2x484xf32>
    %138 = vector.extract_strided_slice %137 {offsets = [0, 0], sizes = [2, 6], strides = [1, 1]} : vector<2x484xf32> to vector<2x6xf32>
    %139 = tpu.concatenate %137, %138 in 1 : vector<2x484xf32>, vector<2x6xf32> -> vector<2x490xf32>
    %140 = vector.extract_strided_slice %139 {offsets = [0, 0], sizes = [2, 352], strides = [1, 1]} : vector<2x490xf32> to vector<2x352xf32>
    %141 = vector.extract_strided_slice %139 {offsets = [0, 1], sizes = [2, 352], strides = [1, 1]} : vector<2x490xf32> to vector<2x352xf32>
    %142 = vector.extract_strided_slice %139 {offsets = [0, 2], sizes = [2, 352], strides = [1, 1]} : vector<2x490xf32> to vector<2x352xf32>
    %143 = vector.extract_strided_slice %139 {offsets = [0, 3], sizes = [2, 352], strides = [1, 1]} : vector<2x490xf32> to vector<2x352xf32>
    %144 = vector.extract_strided_slice %139 {offsets = [0, 4], sizes = [2, 352], strides = [1, 1]} : vector<2x490xf32> to vector<2x352xf32>
    %145 = vector.extract_strided_slice %139 {offsets = [0, 5], sizes = [2, 352], strides = [1, 1]} : vector<2x490xf32> to vector<2x352xf32>
    %146 = vector.extract_strided_slice %139 {offsets = [0, 6], sizes = [2, 352], strides = [1, 1]} : vector<2x490xf32> to vector<2x352xf32>
    %147 = vector.extract_strided_slice %139 {offsets = [0, 22], sizes = [2, 352], strides = [1, 1]} : vector<2x490xf32> to vector<2x352xf32>
    %148 = vector.extract_strided_slice %139 {offsets = [0, 23], sizes = [2, 352], strides = [1, 1]} : vector<2x490xf32> to vector<2x352xf32>
    %149 = vector.extract_strided_slice %139 {offsets = [0, 24], sizes = [2, 352], strides = [1, 1]} : vector<2x490xf32> to vector<2x352xf32>
    %150 = vector.extract_strided_slice %139 {offsets = [0, 25], sizes = [2, 352], strides = [1, 1]} : vector<2x490xf32> to vector<2x352xf32>
    %151 = vector.extract_strided_slice %139 {offsets = [0, 26], sizes = [2, 352], strides = [1, 1]} : vector<2x490xf32> to vector<2x352xf32>
    %152 = vector.extract_strided_slice %139 {offsets = [0, 27], sizes = [2, 352], strides = [1, 1]} : vector<2x490xf32> to vector<2x352xf32>
    %153 = vector.extract_strided_slice %139 {offsets = [0, 28], sizes = [2, 352], strides = [1, 1]} : vector<2x490xf32> to vector<2x352xf32>
    %154 = vector.extract_strided_slice %139 {offsets = [0, 44], sizes = [2, 352], strides = [1, 1]} : vector<2x490xf32> to vector<2x352xf32>
    %155 = vector.extract_strided_slice %139 {offsets = [0, 45], sizes = [2, 352], strides = [1, 1]} : vector<2x490xf32> to vector<2x352xf32>
    %156 = vector.extract_strided_slice %139 {offsets = [0, 46], sizes = [2, 352], strides = [1, 1]} : vector<2x490xf32> to vector<2x352xf32>
    %157 = vector.extract_strided_slice %139 {offsets = [0, 47], sizes = [2, 352], strides = [1, 1]} : vector<2x490xf32> to vector<2x352xf32>
    %158 = vector.extract_strided_slice %139 {offsets = [0, 48], sizes = [2, 352], strides = [1, 1]} : vector<2x490xf32> to vector<2x352xf32>
    %159 = vector.extract_strided_slice %139 {offsets = [0, 49], sizes = [2, 352], strides = [1, 1]} : vector<2x490xf32> to vector<2x352xf32>
    %160 = vector.extract_strided_slice %139 {offsets = [0, 50], sizes = [2, 352], strides = [1, 1]} : vector<2x490xf32> to vector<2x352xf32>
    %161 = vector.extract_strided_slice %139 {offsets = [0, 66], sizes = [2, 352], strides = [1, 1]} : vector<2x490xf32> to vector<2x352xf32>
    %162 = vector.extract_strided_slice %139 {offsets = [0, 67], sizes = [2, 352], strides = [1, 1]} : vector<2x490xf32> to vector<2x352xf32>
    %163 = vector.extract_strided_slice %139 {offsets = [0, 68], sizes = [2, 352], strides = [1, 1]} : vector<2x490xf32> to vector<2x352xf32>
    %164 = vector.extract_strided_slice %139 {offsets = [0, 69], sizes = [2, 352], strides = [1, 1]} : vector<2x490xf32> to vector<2x352xf32>
    %165 = vector.extract_strided_slice %139 {offsets = [0, 70], sizes = [2, 352], strides = [1, 1]} : vector<2x490xf32> to vector<2x352xf32>
    %166 = vector.extract_strided_slice %139 {offsets = [0, 71], sizes = [2, 352], strides = [1, 1]} : vector<2x490xf32> to vector<2x352xf32>
    %167 = vector.extract_strided_slice %139 {offsets = [0, 72], sizes = [2, 352], strides = [1, 1]} : vector<2x490xf32> to vector<2x352xf32>
    %168 = vector.extract_strided_slice %139 {offsets = [0, 88], sizes = [2, 352], strides = [1, 1]} : vector<2x490xf32> to vector<2x352xf32>
    %169 = vector.extract_strided_slice %139 {offsets = [0, 89], sizes = [2, 352], strides = [1, 1]} : vector<2x490xf32> to vector<2x352xf32>
    %170 = vector.extract_strided_slice %139 {offsets = [0, 90], sizes = [2, 352], strides = [1, 1]} : vector<2x490xf32> to vector<2x352xf32>
    %171 = vector.extract_strided_slice %139 {offsets = [0, 91], sizes = [2, 352], strides = [1, 1]} : vector<2x490xf32> to vector<2x352xf32>
    %172 = vector.extract_strided_slice %139 {offsets = [0, 92], sizes = [2, 352], strides = [1, 1]} : vector<2x490xf32> to vector<2x352xf32>
    %173 = vector.extract_strided_slice %139 {offsets = [0, 93], sizes = [2, 352], strides = [1, 1]} : vector<2x490xf32> to vector<2x352xf32>
    %174 = vector.extract_strided_slice %139 {offsets = [0, 94], sizes = [2, 352], strides = [1, 1]} : vector<2x490xf32> to vector<2x352xf32>
    %175 = vector.extract_strided_slice %139 {offsets = [0, 110], sizes = [2, 352], strides = [1, 1]} : vector<2x490xf32> to vector<2x352xf32>
    %176 = vector.extract_strided_slice %139 {offsets = [0, 111], sizes = [2, 352], strides = [1, 1]} : vector<2x490xf32> to vector<2x352xf32>
    %177 = vector.extract_strided_slice %139 {offsets = [0, 112], sizes = [2, 352], strides = [1, 1]} : vector<2x490xf32> to vector<2x352xf32>
    %178 = vector.extract_strided_slice %139 {offsets = [0, 113], sizes = [2, 352], strides = [1, 1]} : vector<2x490xf32> to vector<2x352xf32>
    %179 = vector.extract_strided_slice %139 {offsets = [0, 114], sizes = [2, 352], strides = [1, 1]} : vector<2x490xf32> to vector<2x352xf32>
    %180 = vector.extract_strided_slice %139 {offsets = [0, 115], sizes = [2, 352], strides = [1, 1]} : vector<2x490xf32> to vector<2x352xf32>
    %181 = vector.extract_strided_slice %139 {offsets = [0, 116], sizes = [2, 352], strides = [1, 1]} : vector<2x490xf32> to vector<2x352xf32>
    %182 = vector.extract_strided_slice %139 {offsets = [0, 132], sizes = [2, 352], strides = [1, 1]} : vector<2x490xf32> to vector<2x352xf32>
    %183 = vector.extract_strided_slice %139 {offsets = [0, 133], sizes = [2, 352], strides = [1, 1]} : vector<2x490xf32> to vector<2x352xf32>
    %184 = vector.extract_strided_slice %139 {offsets = [0, 134], sizes = [2, 352], strides = [1, 1]} : vector<2x490xf32> to vector<2x352xf32>
    %185 = vector.extract_strided_slice %139 {offsets = [0, 135], sizes = [2, 352], strides = [1, 1]} : vector<2x490xf32> to vector<2x352xf32>
    %186 = vector.extract_strided_slice %139 {offsets = [0, 136], sizes = [2, 352], strides = [1, 1]} : vector<2x490xf32> to vector<2x352xf32>
    %187 = vector.extract_strided_slice %139 {offsets = [0, 137], sizes = [2, 352], strides = [1, 1]} : vector<2x490xf32> to vector<2x352xf32>
    %188 = vector.extract_strided_slice %139 {offsets = [0, 138], sizes = [2, 352], strides = [1, 1]} : vector<2x490xf32> to vector<2x352xf32>
    %189 = tpu.concatenate %140, %141, %142, %143, %144, %145, %146, %147, %148, %149, %150, %151, %152, %153, %154, %155 in 0 : vector<2x352xf32>, vector<2x352xf32>, vector<2x352xf32>, vector<2x352xf32>, vector<2x352xf32>, vector<2x352xf32>, vector<2x352xf32>, vector<2x352xf32>, vector<2x352xf32>, vector<2x352xf32>, vector<2x352xf32>, vector<2x352xf32>, vector<2x352xf32>, vector<2x352xf32>, vector<2x352xf32>, vector<2x352xf32> -> vector<32x352xf32>
    %190 = tpu.concatenate %156, %157, %158, %159, %160, %161, %162, %163, %164, %165, %166, %167, %168, %169, %170, %171 in 0 : vector<2x352xf32>, vector<2x352xf32>, vector<2x352xf32>, vector<2x352xf32>, vector<2x352xf32>, vector<2x352xf32>, vector<2x352xf32>, vector<2x352xf32>, vector<2x352xf32>, vector<2x352xf32>, vector<2x352xf32>, vector<2x352xf32>, vector<2x352xf32>, vector<2x352xf32>, vector<2x352xf32>, vector<2x352xf32> -> vector<32x352xf32>
    %191 = tpu.concatenate %172, %173, %174, %175, %176, %177, %178, %179, %180, %181, %182, %183, %184, %185, %186, %187 in 0 : vector<2x352xf32>, vector<2x352xf32>, vector<2x352xf32>, vector<2x352xf32>, vector<2x352xf32>, vector<2x352xf32>, vector<2x352xf32>, vector<2x352xf32>, vector<2x352xf32>, vector<2x352xf32>, vector<2x352xf32>, vector<2x352xf32>, vector<2x352xf32>, vector<2x352xf32>, vector<2x352xf32>, vector<2x352xf32> -> vector<32x352xf32>
    %192 = tpu.concatenate %189, %190, %191, %188 in 0 : vector<32x352xf32>, vector<32x352xf32>, vector<32x352xf32>, vector<2x352xf32> -> vector<98x352xf32>
    %cst = arith.constant dense<0.000000e+00> : vector<16x352xf32>
    %193 = tpu.matmul %5, %192, %cst {dimension_numbers = #tpu.dot_dimension_numbers<[1], [0], [0], [1], [0, 0, 1, 1], [], []>} : vector<16x98xf32>, vector<98x352xf32>, vector<16x352xf32> -> vector<16x352xf32>
    %cst_8 = arith.constant 0.000000e+00 : f32
    %194 = vector.broadcast %cst_8 : f32 to vector<16x352xf32>
    %195 = arith.cmpf oge, %193, %194 : vector<16x352xf32>
    %196 = vector.broadcast %6 : f32 to vector<16x352xf32>
    %197 = arith.mulf %196, %193 : vector<16x352xf32>
    %198 = arith.select %195, %193, %197 : vector<16x352xi1>, vector<16x352xf32>
    %c0_9 = arith.constant 0 : index
    %c0_10 = arith.constant 0 : index
    %199 = vector.load %arg5[%c0_9, %c0_10] : memref<16x144xf32, #tpu.memory_space<vmem>>, vector<16x144xf32>
    %c1 = arith.constant 1 : index
    %200 = memref.load %arg8[%c1] : memref<3xf32, #tpu.memory_space<smem>>
    %201 = vector.extract_strided_slice %198 {offsets = [0, 0], sizes = [16, 16], strides = [1, 1]} : vector<16x352xf32> to vector<16x16xf32>
    %202 = vector.extract_strided_slice %198 {offsets = [0, 22], sizes = [16, 16], strides = [1, 1]} : vector<16x352xf32> to vector<16x16xf32>
    %203 = vector.extract_strided_slice %198 {offsets = [0, 44], sizes = [16, 16], strides = [1, 1]} : vector<16x352xf32> to vector<16x16xf32>
    %204 = vector.extract_strided_slice %198 {offsets = [0, 66], sizes = [16, 16], strides = [1, 1]} : vector<16x352xf32> to vector<16x16xf32>
    %205 = vector.extract_strided_slice %198 {offsets = [0, 88], sizes = [16, 16], strides = [1, 1]} : vector<16x352xf32> to vector<16x16xf32>
    %206 = vector.extract_strided_slice %198 {offsets = [0, 110], sizes = [16, 16], strides = [1, 1]} : vector<16x352xf32> to vector<16x16xf32>
    %207 = vector.extract_strided_slice %198 {offsets = [0, 132], sizes = [16, 16], strides = [1, 1]} : vector<16x352xf32> to vector<16x16xf32>
    %208 = vector.extract_strided_slice %198 {offsets = [0, 154], sizes = [16, 16], strides = [1, 1]} : vector<16x352xf32> to vector<16x16xf32>
    %209 = vector.extract_strided_slice %198 {offsets = [0, 176], sizes = [16, 16], strides = [1, 1]} : vector<16x352xf32> to vector<16x16xf32>
    %210 = vector.extract_strided_slice %198 {offsets = [0, 198], sizes = [16, 16], strides = [1, 1]} : vector<16x352xf32> to vector<16x16xf32>
    %211 = vector.extract_strided_slice %198 {offsets = [0, 220], sizes = [16, 16], strides = [1, 1]} : vector<16x352xf32> to vector<16x16xf32>
    %212 = vector.extract_strided_slice %198 {offsets = [0, 242], sizes = [16, 16], strides = [1, 1]} : vector<16x352xf32> to vector<16x16xf32>
    %213 = vector.extract_strided_slice %198 {offsets = [0, 264], sizes = [16, 16], strides = [1, 1]} : vector<16x352xf32> to vector<16x16xf32>
    %214 = vector.extract_strided_slice %198 {offsets = [0, 286], sizes = [16, 16], strides = [1, 1]} : vector<16x352xf32> to vector<16x16xf32>
    %215 = vector.extract_strided_slice %198 {offsets = [0, 308], sizes = [16, 16], strides = [1, 1]} : vector<16x352xf32> to vector<16x16xf32>
    %216 = vector.extract_strided_slice %198 {offsets = [0, 330], sizes = [16, 16], strides = [1, 1]} : vector<16x352xf32> to vector<16x16xf32>
    %217 = vector.extract_strided_slice %201 {offsets = [0, 1], sizes = [16, 1], strides = [1, 1]} : vector<16x16xf32> to vector<16x1xf32>
    %218 = vector.extract_strided_slice %201 {offsets = [0, 14], sizes = [16, 1], strides = [1, 1]} : vector<16x16xf32> to vector<16x1xf32>
    %219 = tpu.concatenate %217, %201, %218 in 1 : vector<16x1xf32>, vector<16x16xf32>, vector<16x1xf32> -> vector<16x18xf32>
    %220 = vector.extract_strided_slice %202 {offsets = [0, 1], sizes = [16, 1], strides = [1, 1]} : vector<16x16xf32> to vector<16x1xf32>
    %221 = vector.extract_strided_slice %202 {offsets = [0, 14], sizes = [16, 1], strides = [1, 1]} : vector<16x16xf32> to vector<16x1xf32>
    %222 = tpu.concatenate %220, %202, %221 in 1 : vector<16x1xf32>, vector<16x16xf32>, vector<16x1xf32> -> vector<16x18xf32>
    %223 = vector.extract_strided_slice %203 {offsets = [0, 1], sizes = [16, 1], strides = [1, 1]} : vector<16x16xf32> to vector<16x1xf32>
    %224 = vector.extract_strided_slice %203 {offsets = [0, 14], sizes = [16, 1], strides = [1, 1]} : vector<16x16xf32> to vector<16x1xf32>
    %225 = tpu.concatenate %223, %203, %224 in 1 : vector<16x1xf32>, vector<16x16xf32>, vector<16x1xf32> -> vector<16x18xf32>
    %226 = vector.extract_strided_slice %204 {offsets = [0, 1], sizes = [16, 1], strides = [1, 1]} : vector<16x16xf32> to vector<16x1xf32>
    %227 = vector.extract_strided_slice %204 {offsets = [0, 14], sizes = [16, 1], strides = [1, 1]} : vector<16x16xf32> to vector<16x1xf32>
    %228 = tpu.concatenate %226, %204, %227 in 1 : vector<16x1xf32>, vector<16x16xf32>, vector<16x1xf32> -> vector<16x18xf32>
    %229 = vector.extract_strided_slice %205 {offsets = [0, 1], sizes = [16, 1], strides = [1, 1]} : vector<16x16xf32> to vector<16x1xf32>
    %230 = vector.extract_strided_slice %205 {offsets = [0, 14], sizes = [16, 1], strides = [1, 1]} : vector<16x16xf32> to vector<16x1xf32>
    %231 = tpu.concatenate %229, %205, %230 in 1 : vector<16x1xf32>, vector<16x16xf32>, vector<16x1xf32> -> vector<16x18xf32>
    %232 = vector.extract_strided_slice %206 {offsets = [0, 1], sizes = [16, 1], strides = [1, 1]} : vector<16x16xf32> to vector<16x1xf32>
    %233 = vector.extract_strided_slice %206 {offsets = [0, 14], sizes = [16, 1], strides = [1, 1]} : vector<16x16xf32> to vector<16x1xf32>
    %234 = tpu.concatenate %232, %206, %233 in 1 : vector<16x1xf32>, vector<16x16xf32>, vector<16x1xf32> -> vector<16x18xf32>
    %235 = vector.extract_strided_slice %207 {offsets = [0, 1], sizes = [16, 1], strides = [1, 1]} : vector<16x16xf32> to vector<16x1xf32>
    %236 = vector.extract_strided_slice %207 {offsets = [0, 14], sizes = [16, 1], strides = [1, 1]} : vector<16x16xf32> to vector<16x1xf32>
    %237 = tpu.concatenate %235, %207, %236 in 1 : vector<16x1xf32>, vector<16x16xf32>, vector<16x1xf32> -> vector<16x18xf32>
    %238 = vector.extract_strided_slice %208 {offsets = [0, 1], sizes = [16, 1], strides = [1, 1]} : vector<16x16xf32> to vector<16x1xf32>
    %239 = vector.extract_strided_slice %208 {offsets = [0, 14], sizes = [16, 1], strides = [1, 1]} : vector<16x16xf32> to vector<16x1xf32>
    %240 = tpu.concatenate %238, %208, %239 in 1 : vector<16x1xf32>, vector<16x16xf32>, vector<16x1xf32> -> vector<16x18xf32>
    %241 = vector.extract_strided_slice %209 {offsets = [0, 1], sizes = [16, 1], strides = [1, 1]} : vector<16x16xf32> to vector<16x1xf32>
    %242 = vector.extract_strided_slice %209 {offsets = [0, 14], sizes = [16, 1], strides = [1, 1]} : vector<16x16xf32> to vector<16x1xf32>
    %243 = tpu.concatenate %241, %209, %242 in 1 : vector<16x1xf32>, vector<16x16xf32>, vector<16x1xf32> -> vector<16x18xf32>
    %244 = vector.extract_strided_slice %210 {offsets = [0, 1], sizes = [16, 1], strides = [1, 1]} : vector<16x16xf32> to vector<16x1xf32>
    %245 = vector.extract_strided_slice %210 {offsets = [0, 14], sizes = [16, 1], strides = [1, 1]} : vector<16x16xf32> to vector<16x1xf32>
    %246 = tpu.concatenate %244, %210, %245 in 1 : vector<16x1xf32>, vector<16x16xf32>, vector<16x1xf32> -> vector<16x18xf32>
    %247 = vector.extract_strided_slice %211 {offsets = [0, 1], sizes = [16, 1], strides = [1, 1]} : vector<16x16xf32> to vector<16x1xf32>
    %248 = vector.extract_strided_slice %211 {offsets = [0, 14], sizes = [16, 1], strides = [1, 1]} : vector<16x16xf32> to vector<16x1xf32>
    %249 = tpu.concatenate %247, %211, %248 in 1 : vector<16x1xf32>, vector<16x16xf32>, vector<16x1xf32> -> vector<16x18xf32>
    %250 = vector.extract_strided_slice %212 {offsets = [0, 1], sizes = [16, 1], strides = [1, 1]} : vector<16x16xf32> to vector<16x1xf32>
    %251 = vector.extract_strided_slice %212 {offsets = [0, 14], sizes = [16, 1], strides = [1, 1]} : vector<16x16xf32> to vector<16x1xf32>
    %252 = tpu.concatenate %250, %212, %251 in 1 : vector<16x1xf32>, vector<16x16xf32>, vector<16x1xf32> -> vector<16x18xf32>
    %253 = vector.extract_strided_slice %213 {offsets = [0, 1], sizes = [16, 1], strides = [1, 1]} : vector<16x16xf32> to vector<16x1xf32>
    %254 = vector.extract_strided_slice %213 {offsets = [0, 14], sizes = [16, 1], strides = [1, 1]} : vector<16x16xf32> to vector<16x1xf32>
    %255 = tpu.concatenate %253, %213, %254 in 1 : vector<16x1xf32>, vector<16x16xf32>, vector<16x1xf32> -> vector<16x18xf32>
    %256 = vector.extract_strided_slice %214 {offsets = [0, 1], sizes = [16, 1], strides = [1, 1]} : vector<16x16xf32> to vector<16x1xf32>
    %257 = vector.extract_strided_slice %214 {offsets = [0, 14], sizes = [16, 1], strides = [1, 1]} : vector<16x16xf32> to vector<16x1xf32>
    %258 = tpu.concatenate %256, %214, %257 in 1 : vector<16x1xf32>, vector<16x16xf32>, vector<16x1xf32> -> vector<16x18xf32>
    %259 = vector.extract_strided_slice %215 {offsets = [0, 1], sizes = [16, 1], strides = [1, 1]} : vector<16x16xf32> to vector<16x1xf32>
    %260 = vector.extract_strided_slice %215 {offsets = [0, 14], sizes = [16, 1], strides = [1, 1]} : vector<16x16xf32> to vector<16x1xf32>
    %261 = tpu.concatenate %259, %215, %260 in 1 : vector<16x1xf32>, vector<16x16xf32>, vector<16x1xf32> -> vector<16x18xf32>
    %262 = vector.extract_strided_slice %216 {offsets = [0, 1], sizes = [16, 1], strides = [1, 1]} : vector<16x16xf32> to vector<16x1xf32>
    %263 = vector.extract_strided_slice %216 {offsets = [0, 14], sizes = [16, 1], strides = [1, 1]} : vector<16x16xf32> to vector<16x1xf32>
    %264 = tpu.concatenate %262, %216, %263 in 1 : vector<16x1xf32>, vector<16x16xf32>, vector<16x1xf32> -> vector<16x18xf32>
    %265 = tpu.concatenate %222, %219, %222, %225, %228, %231, %234, %237, %240, %243, %246, %249, %252, %255, %258, %261 in 1 : vector<16x18xf32>, vector<16x18xf32>, vector<16x18xf32>, vector<16x18xf32>, vector<16x18xf32>, vector<16x18xf32>, vector<16x18xf32>, vector<16x18xf32>, vector<16x18xf32>, vector<16x18xf32>, vector<16x18xf32>, vector<16x18xf32>, vector<16x18xf32>, vector<16x18xf32>, vector<16x18xf32>, vector<16x18xf32> -> vector<16x288xf32>
    %266 = tpu.concatenate %264, %261 in 1 : vector<16x18xf32>, vector<16x18xf32> -> vector<16x36xf32>
    %267 = tpu.concatenate %265, %266 in 1 : vector<16x288xf32>, vector<16x36xf32> -> vector<16x324xf32>
    %268 = vector.extract_strided_slice %267 {offsets = [0, 0], sizes = [16, 2], strides = [1, 1]} : vector<16x324xf32> to vector<16x2xf32>
    %269 = tpu.concatenate %267, %268 in 1 : vector<16x324xf32>, vector<16x2xf32> -> vector<16x326xf32>
    %270 = vector.extract_strided_slice %269 {offsets = [0, 0], sizes = [16, 288], strides = [1, 1]} : vector<16x326xf32> to vector<16x288xf32>
    %271 = vector.extract_strided_slice %269 {offsets = [0, 1], sizes = [16, 288], strides = [1, 1]} : vector<16x326xf32> to vector<16x288xf32>
    %272 = vector.extract_strided_slice %269 {offsets = [0, 2], sizes = [16, 288], strides = [1, 1]} : vector<16x326xf32> to vector<16x288xf32>
    %273 = vector.extract_strided_slice %269 {offsets = [0, 18], sizes = [16, 288], strides = [1, 1]} : vector<16x326xf32> to vector<16x288xf32>
    %274 = vector.extract_strided_slice %269 {offsets = [0, 19], sizes = [16, 288], strides = [1, 1]} : vector<16x326xf32> to vector<16x288xf32>
    %275 = vector.extract_strided_slice %269 {offsets = [0, 20], sizes = [16, 288], strides = [1, 1]} : vector<16x326xf32> to vector<16x288xf32>
    %276 = vector.extract_strided_slice %269 {offsets = [0, 36], sizes = [16, 288], strides = [1, 1]} : vector<16x326xf32> to vector<16x288xf32>
    %277 = vector.extract_strided_slice %269 {offsets = [0, 37], sizes = [16, 288], strides = [1, 1]} : vector<16x326xf32> to vector<16x288xf32>
    %278 = vector.extract_strided_slice %269 {offsets = [0, 38], sizes = [16, 288], strides = [1, 1]} : vector<16x326xf32> to vector<16x288xf32>
    %279 = tpu.concatenate %270, %271, %272, %273, %274, %275, %276, %277, %278 in 0 : vector<16x288xf32>, vector<16x288xf32>, vector<16x288xf32>, vector<16x288xf32>, vector<16x288xf32>, vector<16x288xf32>, vector<16x288xf32>, vector<16x288xf32>, vector<16x288xf32> -> vector<144x288xf32>
    %cst_11 = arith.constant dense<0.000000e+00> : vector<16x288xf32>
    %280 = tpu.matmul %199, %279, %cst_11 {dimension_numbers = #tpu.dot_dimension_numbers<[1], [0], [0], [1], [0, 0, 1, 1], [], []>} : vector<16x144xf32>, vector<144x288xf32>, vector<16x288xf32> -> vector<16x288xf32>
    %cst_12 = arith.constant 0.000000e+00 : f32
    %281 = vector.broadcast %cst_12 : f32 to vector<16x288xf32>
    %282 = arith.cmpf oge, %280, %281 : vector<16x288xf32>
    %283 = vector.broadcast %200 : f32 to vector<16x288xf32>
    %284 = arith.mulf %283, %280 : vector<16x288xf32>
    %285 = arith.select %282, %280, %284 : vector<16x288xi1>, vector<16x288xf32>
    %c0_13 = arith.constant 0 : index
    %c0_14 = arith.constant 0 : index
    %286 = vector.load %arg6[%c0_13, %c0_14] : memref<16x144xf32, #tpu.memory_space<vmem>>, vector<16x144xf32>
    %c2 = arith.constant 2 : index
    %287 = memref.load %arg8[%c2] : memref<3xf32, #tpu.memory_space<smem>>
    %288 = vector.extract_strided_slice %285 {offsets = [0, 0], sizes = [16, 16], strides = [1, 1]} : vector<16x288xf32> to vector<16x16xf32>
    %289 = vector.extract_strided_slice %285 {offsets = [0, 18], sizes = [16, 16], strides = [1, 1]} : vector<16x288xf32> to vector<16x16xf32>
    %290 = vector.extract_strided_slice %285 {offsets = [0, 36], sizes = [16, 16], strides = [1, 1]} : vector<16x288xf32> to vector<16x16xf32>
    %291 = vector.extract_strided_slice %285 {offsets = [0, 54], sizes = [16, 16], strides = [1, 1]} : vector<16x288xf32> to vector<16x16xf32>
    %292 = vector.extract_strided_slice %285 {offsets = [0, 72], sizes = [16, 16], strides = [1, 1]} : vector<16x288xf32> to vector<16x16xf32>
    %293 = vector.extract_strided_slice %285 {offsets = [0, 90], sizes = [16, 16], strides = [1, 1]} : vector<16x288xf32> to vector<16x16xf32>
    %294 = vector.extract_strided_slice %285 {offsets = [0, 108], sizes = [16, 16], strides = [1, 1]} : vector<16x288xf32> to vector<16x16xf32>
    %295 = vector.extract_strided_slice %285 {offsets = [0, 126], sizes = [16, 16], strides = [1, 1]} : vector<16x288xf32> to vector<16x16xf32>
    %296 = vector.extract_strided_slice %285 {offsets = [0, 144], sizes = [16, 16], strides = [1, 1]} : vector<16x288xf32> to vector<16x16xf32>
    %297 = vector.extract_strided_slice %285 {offsets = [0, 162], sizes = [16, 16], strides = [1, 1]} : vector<16x288xf32> to vector<16x16xf32>
    %298 = vector.extract_strided_slice %285 {offsets = [0, 180], sizes = [16, 16], strides = [1, 1]} : vector<16x288xf32> to vector<16x16xf32>
    %299 = vector.extract_strided_slice %285 {offsets = [0, 198], sizes = [16, 16], strides = [1, 1]} : vector<16x288xf32> to vector<16x16xf32>
    %300 = vector.extract_strided_slice %285 {offsets = [0, 216], sizes = [16, 16], strides = [1, 1]} : vector<16x288xf32> to vector<16x16xf32>
    %301 = vector.extract_strided_slice %285 {offsets = [0, 234], sizes = [16, 16], strides = [1, 1]} : vector<16x288xf32> to vector<16x16xf32>
    %302 = vector.extract_strided_slice %285 {offsets = [0, 252], sizes = [16, 16], strides = [1, 1]} : vector<16x288xf32> to vector<16x16xf32>
    %303 = vector.extract_strided_slice %285 {offsets = [0, 270], sizes = [16, 16], strides = [1, 1]} : vector<16x288xf32> to vector<16x16xf32>
    %304 = vector.extract_strided_slice %288 {offsets = [0, 1], sizes = [16, 1], strides = [1, 1]} : vector<16x16xf32> to vector<16x1xf32>
    %305 = vector.extract_strided_slice %288 {offsets = [0, 14], sizes = [16, 1], strides = [1, 1]} : vector<16x16xf32> to vector<16x1xf32>
    %306 = tpu.concatenate %304, %288, %305 in 1 : vector<16x1xf32>, vector<16x16xf32>, vector<16x1xf32> -> vector<16x18xf32>
    %307 = vector.extract_strided_slice %289 {offsets = [0, 1], sizes = [16, 1], strides = [1, 1]} : vector<16x16xf32> to vector<16x1xf32>
    %308 = vector.extract_strided_slice %289 {offsets = [0, 14], sizes = [16, 1], strides = [1, 1]} : vector<16x16xf32> to vector<16x1xf32>
    %309 = tpu.concatenate %307, %289, %308 in 1 : vector<16x1xf32>, vector<16x16xf32>, vector<16x1xf32> -> vector<16x18xf32>
    %310 = vector.extract_strided_slice %290 {offsets = [0, 1], sizes = [16, 1], strides = [1, 1]} : vector<16x16xf32> to vector<16x1xf32>
    %311 = vector.extract_strided_slice %290 {offsets = [0, 14], sizes = [16, 1], strides = [1, 1]} : vector<16x16xf32> to vector<16x1xf32>
    %312 = tpu.concatenate %310, %290, %311 in 1 : vector<16x1xf32>, vector<16x16xf32>, vector<16x1xf32> -> vector<16x18xf32>
    %313 = vector.extract_strided_slice %291 {offsets = [0, 1], sizes = [16, 1], strides = [1, 1]} : vector<16x16xf32> to vector<16x1xf32>
    %314 = vector.extract_strided_slice %291 {offsets = [0, 14], sizes = [16, 1], strides = [1, 1]} : vector<16x16xf32> to vector<16x1xf32>
    %315 = tpu.concatenate %313, %291, %314 in 1 : vector<16x1xf32>, vector<16x16xf32>, vector<16x1xf32> -> vector<16x18xf32>
    %316 = vector.extract_strided_slice %292 {offsets = [0, 1], sizes = [16, 1], strides = [1, 1]} : vector<16x16xf32> to vector<16x1xf32>
    %317 = vector.extract_strided_slice %292 {offsets = [0, 14], sizes = [16, 1], strides = [1, 1]} : vector<16x16xf32> to vector<16x1xf32>
    %318 = tpu.concatenate %316, %292, %317 in 1 : vector<16x1xf32>, vector<16x16xf32>, vector<16x1xf32> -> vector<16x18xf32>
    %319 = vector.extract_strided_slice %293 {offsets = [0, 1], sizes = [16, 1], strides = [1, 1]} : vector<16x16xf32> to vector<16x1xf32>
    %320 = vector.extract_strided_slice %293 {offsets = [0, 14], sizes = [16, 1], strides = [1, 1]} : vector<16x16xf32> to vector<16x1xf32>
    %321 = tpu.concatenate %319, %293, %320 in 1 : vector<16x1xf32>, vector<16x16xf32>, vector<16x1xf32> -> vector<16x18xf32>
    %322 = vector.extract_strided_slice %294 {offsets = [0, 1], sizes = [16, 1], strides = [1, 1]} : vector<16x16xf32> to vector<16x1xf32>
    %323 = vector.extract_strided_slice %294 {offsets = [0, 14], sizes = [16, 1], strides = [1, 1]} : vector<16x16xf32> to vector<16x1xf32>
    %324 = tpu.concatenate %322, %294, %323 in 1 : vector<16x1xf32>, vector<16x16xf32>, vector<16x1xf32> -> vector<16x18xf32>
    %325 = vector.extract_strided_slice %295 {offsets = [0, 1], sizes = [16, 1], strides = [1, 1]} : vector<16x16xf32> to vector<16x1xf32>
    %326 = vector.extract_strided_slice %295 {offsets = [0, 14], sizes = [16, 1], strides = [1, 1]} : vector<16x16xf32> to vector<16x1xf32>
    %327 = tpu.concatenate %325, %295, %326 in 1 : vector<16x1xf32>, vector<16x16xf32>, vector<16x1xf32> -> vector<16x18xf32>
    %328 = vector.extract_strided_slice %296 {offsets = [0, 1], sizes = [16, 1], strides = [1, 1]} : vector<16x16xf32> to vector<16x1xf32>
    %329 = vector.extract_strided_slice %296 {offsets = [0, 14], sizes = [16, 1], strides = [1, 1]} : vector<16x16xf32> to vector<16x1xf32>
    %330 = tpu.concatenate %328, %296, %329 in 1 : vector<16x1xf32>, vector<16x16xf32>, vector<16x1xf32> -> vector<16x18xf32>
    %331 = vector.extract_strided_slice %297 {offsets = [0, 1], sizes = [16, 1], strides = [1, 1]} : vector<16x16xf32> to vector<16x1xf32>
    %332 = vector.extract_strided_slice %297 {offsets = [0, 14], sizes = [16, 1], strides = [1, 1]} : vector<16x16xf32> to vector<16x1xf32>
    %333 = tpu.concatenate %331, %297, %332 in 1 : vector<16x1xf32>, vector<16x16xf32>, vector<16x1xf32> -> vector<16x18xf32>
    %334 = vector.extract_strided_slice %298 {offsets = [0, 1], sizes = [16, 1], strides = [1, 1]} : vector<16x16xf32> to vector<16x1xf32>
    %335 = vector.extract_strided_slice %298 {offsets = [0, 14], sizes = [16, 1], strides = [1, 1]} : vector<16x16xf32> to vector<16x1xf32>
    %336 = tpu.concatenate %334, %298, %335 in 1 : vector<16x1xf32>, vector<16x16xf32>, vector<16x1xf32> -> vector<16x18xf32>
    %337 = vector.extract_strided_slice %299 {offsets = [0, 1], sizes = [16, 1], strides = [1, 1]} : vector<16x16xf32> to vector<16x1xf32>
    %338 = vector.extract_strided_slice %299 {offsets = [0, 14], sizes = [16, 1], strides = [1, 1]} : vector<16x16xf32> to vector<16x1xf32>
    %339 = tpu.concatenate %337, %299, %338 in 1 : vector<16x1xf32>, vector<16x16xf32>, vector<16x1xf32> -> vector<16x18xf32>
    %340 = vector.extract_strided_slice %300 {offsets = [0, 1], sizes = [16, 1], strides = [1, 1]} : vector<16x16xf32> to vector<16x1xf32>
    %341 = vector.extract_strided_slice %300 {offsets = [0, 14], sizes = [16, 1], strides = [1, 1]} : vector<16x16xf32> to vector<16x1xf32>
    %342 = tpu.concatenate %340, %300, %341 in 1 : vector<16x1xf32>, vector<16x16xf32>, vector<16x1xf32> -> vector<16x18xf32>
    %343 = vector.extract_strided_slice %301 {offsets = [0, 1], sizes = [16, 1], strides = [1, 1]} : vector<16x16xf32> to vector<16x1xf32>
    %344 = vector.extract_strided_slice %301 {offsets = [0, 14], sizes = [16, 1], strides = [1, 1]} : vector<16x16xf32> to vector<16x1xf32>
    %345 = tpu.concatenate %343, %301, %344 in 1 : vector<16x1xf32>, vector<16x16xf32>, vector<16x1xf32> -> vector<16x18xf32>
    %346 = vector.extract_strided_slice %302 {offsets = [0, 1], sizes = [16, 1], strides = [1, 1]} : vector<16x16xf32> to vector<16x1xf32>
    %347 = vector.extract_strided_slice %302 {offsets = [0, 14], sizes = [16, 1], strides = [1, 1]} : vector<16x16xf32> to vector<16x1xf32>
    %348 = tpu.concatenate %346, %302, %347 in 1 : vector<16x1xf32>, vector<16x16xf32>, vector<16x1xf32> -> vector<16x18xf32>
    %349 = vector.extract_strided_slice %303 {offsets = [0, 1], sizes = [16, 1], strides = [1, 1]} : vector<16x16xf32> to vector<16x1xf32>
    %350 = vector.extract_strided_slice %303 {offsets = [0, 14], sizes = [16, 1], strides = [1, 1]} : vector<16x16xf32> to vector<16x1xf32>
    %351 = tpu.concatenate %349, %303, %350 in 1 : vector<16x1xf32>, vector<16x16xf32>, vector<16x1xf32> -> vector<16x18xf32>
    %352 = tpu.concatenate %309, %306, %309, %312, %315, %318, %321, %324, %327, %330, %333, %336, %339, %342, %345, %348 in 1 : vector<16x18xf32>, vector<16x18xf32>, vector<16x18xf32>, vector<16x18xf32>, vector<16x18xf32>, vector<16x18xf32>, vector<16x18xf32>, vector<16x18xf32>, vector<16x18xf32>, vector<16x18xf32>, vector<16x18xf32>, vector<16x18xf32>, vector<16x18xf32>, vector<16x18xf32>, vector<16x18xf32>, vector<16x18xf32> -> vector<16x288xf32>
    %353 = tpu.concatenate %351, %348 in 1 : vector<16x18xf32>, vector<16x18xf32> -> vector<16x36xf32>
    %354 = tpu.concatenate %352, %353 in 1 : vector<16x288xf32>, vector<16x36xf32> -> vector<16x324xf32>
    %355 = vector.extract_strided_slice %354 {offsets = [0, 0], sizes = [16, 2], strides = [1, 1]} : vector<16x324xf32> to vector<16x2xf32>
    %356 = tpu.concatenate %354, %355 in 1 : vector<16x324xf32>, vector<16x2xf32> -> vector<16x326xf32>
    %357 = vector.extract_strided_slice %356 {offsets = [0, 0], sizes = [16, 288], strides = [1, 1]} : vector<16x326xf32> to vector<16x288xf32>
    %358 = vector.extract_strided_slice %356 {offsets = [0, 1], sizes = [16, 288], strides = [1, 1]} : vector<16x326xf32> to vector<16x288xf32>
    %359 = vector.extract_strided_slice %356 {offsets = [0, 2], sizes = [16, 288], strides = [1, 1]} : vector<16x326xf32> to vector<16x288xf32>
    %360 = vector.extract_strided_slice %356 {offsets = [0, 18], sizes = [16, 288], strides = [1, 1]} : vector<16x326xf32> to vector<16x288xf32>
    %361 = vector.extract_strided_slice %356 {offsets = [0, 19], sizes = [16, 288], strides = [1, 1]} : vector<16x326xf32> to vector<16x288xf32>
    %362 = vector.extract_strided_slice %356 {offsets = [0, 20], sizes = [16, 288], strides = [1, 1]} : vector<16x326xf32> to vector<16x288xf32>
    %363 = vector.extract_strided_slice %356 {offsets = [0, 36], sizes = [16, 288], strides = [1, 1]} : vector<16x326xf32> to vector<16x288xf32>
    %364 = vector.extract_strided_slice %356 {offsets = [0, 37], sizes = [16, 288], strides = [1, 1]} : vector<16x326xf32> to vector<16x288xf32>
    %365 = vector.extract_strided_slice %356 {offsets = [0, 38], sizes = [16, 288], strides = [1, 1]} : vector<16x326xf32> to vector<16x288xf32>
    %366 = tpu.concatenate %357, %358, %359, %360, %361, %362, %363, %364, %365 in 0 : vector<16x288xf32>, vector<16x288xf32>, vector<16x288xf32>, vector<16x288xf32>, vector<16x288xf32>, vector<16x288xf32>, vector<16x288xf32>, vector<16x288xf32>, vector<16x288xf32> -> vector<144x288xf32>
    %cst_15 = arith.constant dense<0.000000e+00> : vector<16x288xf32>
    %367 = tpu.matmul %286, %366, %cst_15 {dimension_numbers = #tpu.dot_dimension_numbers<[1], [0], [0], [1], [0, 0, 1, 1], [], []>} : vector<16x144xf32>, vector<144x288xf32>, vector<16x288xf32> -> vector<16x288xf32>
    %cst_16 = arith.constant 0.000000e+00 : f32
    %368 = vector.broadcast %cst_16 : f32 to vector<16x288xf32>
    %369 = arith.cmpf oge, %367, %368 : vector<16x288xf32>
    %370 = vector.broadcast %287 : f32 to vector<16x288xf32>
    %371 = arith.mulf %370, %367 : vector<16x288xf32>
    %372 = arith.select %369, %367, %371 : vector<16x288xi1>, vector<16x288xf32>
    %c0_17 = arith.constant 0 : index
    %c0_18 = arith.constant 0 : index
    %373 = vector.load %arg7[%c0_17, %c0_18] : memref<1x144xf32, #tpu.memory_space<vmem>>, vector<1x144xf32>
    %374 = vector.extract_strided_slice %372 {offsets = [0, 0], sizes = [16, 16], strides = [1, 1]} : vector<16x288xf32> to vector<16x16xf32>
    %375 = vector.extract_strided_slice %372 {offsets = [0, 18], sizes = [16, 16], strides = [1, 1]} : vector<16x288xf32> to vector<16x16xf32>
    %376 = vector.extract_strided_slice %372 {offsets = [0, 36], sizes = [16, 16], strides = [1, 1]} : vector<16x288xf32> to vector<16x16xf32>
    %377 = vector.extract_strided_slice %372 {offsets = [0, 54], sizes = [16, 16], strides = [1, 1]} : vector<16x288xf32> to vector<16x16xf32>
    %378 = vector.extract_strided_slice %372 {offsets = [0, 72], sizes = [16, 16], strides = [1, 1]} : vector<16x288xf32> to vector<16x16xf32>
    %379 = vector.extract_strided_slice %372 {offsets = [0, 90], sizes = [16, 16], strides = [1, 1]} : vector<16x288xf32> to vector<16x16xf32>
    %380 = vector.extract_strided_slice %372 {offsets = [0, 108], sizes = [16, 16], strides = [1, 1]} : vector<16x288xf32> to vector<16x16xf32>
    %381 = vector.extract_strided_slice %372 {offsets = [0, 126], sizes = [16, 16], strides = [1, 1]} : vector<16x288xf32> to vector<16x16xf32>
    %382 = vector.extract_strided_slice %372 {offsets = [0, 144], sizes = [16, 16], strides = [1, 1]} : vector<16x288xf32> to vector<16x16xf32>
    %383 = vector.extract_strided_slice %372 {offsets = [0, 162], sizes = [16, 16], strides = [1, 1]} : vector<16x288xf32> to vector<16x16xf32>
    %384 = vector.extract_strided_slice %372 {offsets = [0, 180], sizes = [16, 16], strides = [1, 1]} : vector<16x288xf32> to vector<16x16xf32>
    %385 = vector.extract_strided_slice %372 {offsets = [0, 198], sizes = [16, 16], strides = [1, 1]} : vector<16x288xf32> to vector<16x16xf32>
    %386 = vector.extract_strided_slice %372 {offsets = [0, 216], sizes = [16, 16], strides = [1, 1]} : vector<16x288xf32> to vector<16x16xf32>
    %387 = vector.extract_strided_slice %372 {offsets = [0, 234], sizes = [16, 16], strides = [1, 1]} : vector<16x288xf32> to vector<16x16xf32>
    %388 = vector.extract_strided_slice %372 {offsets = [0, 252], sizes = [16, 16], strides = [1, 1]} : vector<16x288xf32> to vector<16x16xf32>
    %389 = vector.extract_strided_slice %372 {offsets = [0, 270], sizes = [16, 16], strides = [1, 1]} : vector<16x288xf32> to vector<16x16xf32>
    %390 = vector.extract_strided_slice %374 {offsets = [0, 1], sizes = [16, 1], strides = [1, 1]} : vector<16x16xf32> to vector<16x1xf32>
    %391 = vector.extract_strided_slice %374 {offsets = [0, 14], sizes = [16, 1], strides = [1, 1]} : vector<16x16xf32> to vector<16x1xf32>
    %392 = tpu.concatenate %390, %374, %391 in 1 : vector<16x1xf32>, vector<16x16xf32>, vector<16x1xf32> -> vector<16x18xf32>
    %393 = vector.extract_strided_slice %375 {offsets = [0, 1], sizes = [16, 1], strides = [1, 1]} : vector<16x16xf32> to vector<16x1xf32>
    %394 = vector.extract_strided_slice %375 {offsets = [0, 14], sizes = [16, 1], strides = [1, 1]} : vector<16x16xf32> to vector<16x1xf32>
    %395 = tpu.concatenate %393, %375, %394 in 1 : vector<16x1xf32>, vector<16x16xf32>, vector<16x1xf32> -> vector<16x18xf32>
    %396 = vector.extract_strided_slice %376 {offsets = [0, 1], sizes = [16, 1], strides = [1, 1]} : vector<16x16xf32> to vector<16x1xf32>
    %397 = vector.extract_strided_slice %376 {offsets = [0, 14], sizes = [16, 1], strides = [1, 1]} : vector<16x16xf32> to vector<16x1xf32>
    %398 = tpu.concatenate %396, %376, %397 in 1 : vector<16x1xf32>, vector<16x16xf32>, vector<16x1xf32> -> vector<16x18xf32>
    %399 = vector.extract_strided_slice %377 {offsets = [0, 1], sizes = [16, 1], strides = [1, 1]} : vector<16x16xf32> to vector<16x1xf32>
    %400 = vector.extract_strided_slice %377 {offsets = [0, 14], sizes = [16, 1], strides = [1, 1]} : vector<16x16xf32> to vector<16x1xf32>
    %401 = tpu.concatenate %399, %377, %400 in 1 : vector<16x1xf32>, vector<16x16xf32>, vector<16x1xf32> -> vector<16x18xf32>
    %402 = vector.extract_strided_slice %378 {offsets = [0, 1], sizes = [16, 1], strides = [1, 1]} : vector<16x16xf32> to vector<16x1xf32>
    %403 = vector.extract_strided_slice %378 {offsets = [0, 14], sizes = [16, 1], strides = [1, 1]} : vector<16x16xf32> to vector<16x1xf32>
    %404 = tpu.concatenate %402, %378, %403 in 1 : vector<16x1xf32>, vector<16x16xf32>, vector<16x1xf32> -> vector<16x18xf32>
    %405 = vector.extract_strided_slice %379 {offsets = [0, 1], sizes = [16, 1], strides = [1, 1]} : vector<16x16xf32> to vector<16x1xf32>
    %406 = vector.extract_strided_slice %379 {offsets = [0, 14], sizes = [16, 1], strides = [1, 1]} : vector<16x16xf32> to vector<16x1xf32>
    %407 = tpu.concatenate %405, %379, %406 in 1 : vector<16x1xf32>, vector<16x16xf32>, vector<16x1xf32> -> vector<16x18xf32>
    %408 = vector.extract_strided_slice %380 {offsets = [0, 1], sizes = [16, 1], strides = [1, 1]} : vector<16x16xf32> to vector<16x1xf32>
    %409 = vector.extract_strided_slice %380 {offsets = [0, 14], sizes = [16, 1], strides = [1, 1]} : vector<16x16xf32> to vector<16x1xf32>
    %410 = tpu.concatenate %408, %380, %409 in 1 : vector<16x1xf32>, vector<16x16xf32>, vector<16x1xf32> -> vector<16x18xf32>
    %411 = vector.extract_strided_slice %381 {offsets = [0, 1], sizes = [16, 1], strides = [1, 1]} : vector<16x16xf32> to vector<16x1xf32>
    %412 = vector.extract_strided_slice %381 {offsets = [0, 14], sizes = [16, 1], strides = [1, 1]} : vector<16x16xf32> to vector<16x1xf32>
    %413 = tpu.concatenate %411, %381, %412 in 1 : vector<16x1xf32>, vector<16x16xf32>, vector<16x1xf32> -> vector<16x18xf32>
    %414 = vector.extract_strided_slice %382 {offsets = [0, 1], sizes = [16, 1], strides = [1, 1]} : vector<16x16xf32> to vector<16x1xf32>
    %415 = vector.extract_strided_slice %382 {offsets = [0, 14], sizes = [16, 1], strides = [1, 1]} : vector<16x16xf32> to vector<16x1xf32>
    %416 = tpu.concatenate %414, %382, %415 in 1 : vector<16x1xf32>, vector<16x16xf32>, vector<16x1xf32> -> vector<16x18xf32>
    %417 = vector.extract_strided_slice %383 {offsets = [0, 1], sizes = [16, 1], strides = [1, 1]} : vector<16x16xf32> to vector<16x1xf32>
    %418 = vector.extract_strided_slice %383 {offsets = [0, 14], sizes = [16, 1], strides = [1, 1]} : vector<16x16xf32> to vector<16x1xf32>
    %419 = tpu.concatenate %417, %383, %418 in 1 : vector<16x1xf32>, vector<16x16xf32>, vector<16x1xf32> -> vector<16x18xf32>
    %420 = vector.extract_strided_slice %384 {offsets = [0, 1], sizes = [16, 1], strides = [1, 1]} : vector<16x16xf32> to vector<16x1xf32>
    %421 = vector.extract_strided_slice %384 {offsets = [0, 14], sizes = [16, 1], strides = [1, 1]} : vector<16x16xf32> to vector<16x1xf32>
    %422 = tpu.concatenate %420, %384, %421 in 1 : vector<16x1xf32>, vector<16x16xf32>, vector<16x1xf32> -> vector<16x18xf32>
    %423 = vector.extract_strided_slice %385 {offsets = [0, 1], sizes = [16, 1], strides = [1, 1]} : vector<16x16xf32> to vector<16x1xf32>
    %424 = vector.extract_strided_slice %385 {offsets = [0, 14], sizes = [16, 1], strides = [1, 1]} : vector<16x16xf32> to vector<16x1xf32>
    %425 = tpu.concatenate %423, %385, %424 in 1 : vector<16x1xf32>, vector<16x16xf32>, vector<16x1xf32> -> vector<16x18xf32>
    %426 = vector.extract_strided_slice %386 {offsets = [0, 1], sizes = [16, 1], strides = [1, 1]} : vector<16x16xf32> to vector<16x1xf32>
    %427 = vector.extract_strided_slice %386 {offsets = [0, 14], sizes = [16, 1], strides = [1, 1]} : vector<16x16xf32> to vector<16x1xf32>
    %428 = tpu.concatenate %426, %386, %427 in 1 : vector<16x1xf32>, vector<16x16xf32>, vector<16x1xf32> -> vector<16x18xf32>
    %429 = vector.extract_strided_slice %387 {offsets = [0, 1], sizes = [16, 1], strides = [1, 1]} : vector<16x16xf32> to vector<16x1xf32>
    %430 = vector.extract_strided_slice %387 {offsets = [0, 14], sizes = [16, 1], strides = [1, 1]} : vector<16x16xf32> to vector<16x1xf32>
    %431 = tpu.concatenate %429, %387, %430 in 1 : vector<16x1xf32>, vector<16x16xf32>, vector<16x1xf32> -> vector<16x18xf32>
    %432 = vector.extract_strided_slice %388 {offsets = [0, 1], sizes = [16, 1], strides = [1, 1]} : vector<16x16xf32> to vector<16x1xf32>
    %433 = vector.extract_strided_slice %388 {offsets = [0, 14], sizes = [16, 1], strides = [1, 1]} : vector<16x16xf32> to vector<16x1xf32>
    %434 = tpu.concatenate %432, %388, %433 in 1 : vector<16x1xf32>, vector<16x16xf32>, vector<16x1xf32> -> vector<16x18xf32>
    %435 = vector.extract_strided_slice %389 {offsets = [0, 1], sizes = [16, 1], strides = [1, 1]} : vector<16x16xf32> to vector<16x1xf32>
    %436 = vector.extract_strided_slice %389 {offsets = [0, 14], sizes = [16, 1], strides = [1, 1]} : vector<16x16xf32> to vector<16x1xf32>
    %437 = tpu.concatenate %435, %389, %436 in 1 : vector<16x1xf32>, vector<16x16xf32>, vector<16x1xf32> -> vector<16x18xf32>
    %438 = tpu.concatenate %395, %392, %395, %398, %401, %404, %407, %410, %413, %416, %419, %422, %425, %428, %431, %434 in 1 : vector<16x18xf32>, vector<16x18xf32>, vector<16x18xf32>, vector<16x18xf32>, vector<16x18xf32>, vector<16x18xf32>, vector<16x18xf32>, vector<16x18xf32>, vector<16x18xf32>, vector<16x18xf32>, vector<16x18xf32>, vector<16x18xf32>, vector<16x18xf32>, vector<16x18xf32>, vector<16x18xf32>, vector<16x18xf32> -> vector<16x288xf32>
    %439 = tpu.concatenate %437, %434 in 1 : vector<16x18xf32>, vector<16x18xf32> -> vector<16x36xf32>
    %440 = tpu.concatenate %438, %439 in 1 : vector<16x288xf32>, vector<16x36xf32> -> vector<16x324xf32>
    %441 = vector.extract_strided_slice %440 {offsets = [0, 0], sizes = [16, 2], strides = [1, 1]} : vector<16x324xf32> to vector<16x2xf32>
    %442 = tpu.concatenate %440, %441 in 1 : vector<16x324xf32>, vector<16x2xf32> -> vector<16x326xf32>
    %443 = vector.extract_strided_slice %442 {offsets = [0, 0], sizes = [16, 288], strides = [1, 1]} : vector<16x326xf32> to vector<16x288xf32>
    %444 = vector.extract_strided_slice %442 {offsets = [0, 1], sizes = [16, 288], strides = [1, 1]} : vector<16x326xf32> to vector<16x288xf32>
    %445 = vector.extract_strided_slice %442 {offsets = [0, 2], sizes = [16, 288], strides = [1, 1]} : vector<16x326xf32> to vector<16x288xf32>
    %446 = vector.extract_strided_slice %442 {offsets = [0, 18], sizes = [16, 288], strides = [1, 1]} : vector<16x326xf32> to vector<16x288xf32>
    %447 = vector.extract_strided_slice %442 {offsets = [0, 19], sizes = [16, 288], strides = [1, 1]} : vector<16x326xf32> to vector<16x288xf32>
    %448 = vector.extract_strided_slice %442 {offsets = [0, 20], sizes = [16, 288], strides = [1, 1]} : vector<16x326xf32> to vector<16x288xf32>
    %449 = vector.extract_strided_slice %442 {offsets = [0, 36], sizes = [16, 288], strides = [1, 1]} : vector<16x326xf32> to vector<16x288xf32>
    %450 = vector.extract_strided_slice %442 {offsets = [0, 37], sizes = [16, 288], strides = [1, 1]} : vector<16x326xf32> to vector<16x288xf32>
    %451 = vector.extract_strided_slice %442 {offsets = [0, 38], sizes = [16, 288], strides = [1, 1]} : vector<16x326xf32> to vector<16x288xf32>
    %452 = tpu.concatenate %443, %444, %445, %446, %447, %448, %449, %450, %451 in 0 : vector<16x288xf32>, vector<16x288xf32>, vector<16x288xf32>, vector<16x288xf32>, vector<16x288xf32>, vector<16x288xf32>, vector<16x288xf32>, vector<16x288xf32>, vector<16x288xf32> -> vector<144x288xf32>
    %cst_19 = arith.constant dense<0.000000e+00> : vector<1x288xf32>
    %453 = tpu.matmul %373, %452, %cst_19 {dimension_numbers = #tpu.dot_dimension_numbers<[1], [0], [0], [1], [0, 0, 1, 1], [], []>} : vector<1x144xf32>, vector<144x288xf32>, vector<1x288xf32> -> vector<1x288xf32>
    %454 = vector.extract_strided_slice %453 {offsets = [0, 0], sizes = [1, 16], strides = [1, 1]} : vector<1x288xf32> to vector<1x16xf32>
    %455 = vector.extract_strided_slice %453 {offsets = [0, 18], sizes = [1, 16], strides = [1, 1]} : vector<1x288xf32> to vector<1x16xf32>
    %456 = vector.extract_strided_slice %453 {offsets = [0, 36], sizes = [1, 16], strides = [1, 1]} : vector<1x288xf32> to vector<1x16xf32>
    %457 = vector.extract_strided_slice %453 {offsets = [0, 54], sizes = [1, 16], strides = [1, 1]} : vector<1x288xf32> to vector<1x16xf32>
    %458 = vector.extract_strided_slice %453 {offsets = [0, 72], sizes = [1, 16], strides = [1, 1]} : vector<1x288xf32> to vector<1x16xf32>
    %459 = vector.extract_strided_slice %453 {offsets = [0, 90], sizes = [1, 16], strides = [1, 1]} : vector<1x288xf32> to vector<1x16xf32>
    %460 = vector.extract_strided_slice %453 {offsets = [0, 108], sizes = [1, 16], strides = [1, 1]} : vector<1x288xf32> to vector<1x16xf32>
    %461 = vector.extract_strided_slice %453 {offsets = [0, 126], sizes = [1, 16], strides = [1, 1]} : vector<1x288xf32> to vector<1x16xf32>
    %462 = vector.extract_strided_slice %453 {offsets = [0, 144], sizes = [1, 16], strides = [1, 1]} : vector<1x288xf32> to vector<1x16xf32>
    %463 = vector.extract_strided_slice %453 {offsets = [0, 162], sizes = [1, 16], strides = [1, 1]} : vector<1x288xf32> to vector<1x16xf32>
    %464 = vector.extract_strided_slice %453 {offsets = [0, 180], sizes = [1, 16], strides = [1, 1]} : vector<1x288xf32> to vector<1x16xf32>
    %465 = vector.extract_strided_slice %453 {offsets = [0, 198], sizes = [1, 16], strides = [1, 1]} : vector<1x288xf32> to vector<1x16xf32>
    %466 = vector.extract_strided_slice %453 {offsets = [0, 216], sizes = [1, 16], strides = [1, 1]} : vector<1x288xf32> to vector<1x16xf32>
    %467 = vector.extract_strided_slice %453 {offsets = [0, 234], sizes = [1, 16], strides = [1, 1]} : vector<1x288xf32> to vector<1x16xf32>
    %468 = vector.extract_strided_slice %453 {offsets = [0, 252], sizes = [1, 16], strides = [1, 1]} : vector<1x288xf32> to vector<1x16xf32>
    %469 = vector.extract_strided_slice %453 {offsets = [0, 270], sizes = [1, 16], strides = [1, 1]} : vector<1x288xf32> to vector<1x16xf32>
    %470 = tpu.concatenate %454, %455, %456, %457, %458, %459, %460, %461, %462, %463, %464, %465, %466, %467, %468, %469 in 1 : vector<1x16xf32>, vector<1x16xf32>, vector<1x16xf32>, vector<1x16xf32>, vector<1x16xf32>, vector<1x16xf32>, vector<1x16xf32>, vector<1x16xf32>, vector<1x16xf32>, vector<1x16xf32>, vector<1x16xf32>, vector<1x16xf32>, vector<1x16xf32>, vector<1x16xf32>, vector<1x16xf32>, vector<1x16xf32> -> vector<1x256xf32>
    %c0_20 = arith.constant 0 : index
    %c0_21 = arith.constant 0 : index
    %c0_22 = arith.constant 0 : index
    %471 = vector.load %arg3[%c0_20, %c0_21, %c0_22] : memref<1x1x256xf32, #tpu.memory_space<vmem>>, vector<1x1x256xf32>
    %472 = vector.shape_cast %471 : vector<1x1x256xf32> to vector<1x256xf32>
    %473 = arith.addf %472, %470 : vector<1x256xf32>
    %c0_23 = arith.constant 0 : index
    %c0_24 = arith.constant 0 : index
    %c0_25 = arith.constant 0 : index
    %474 = vector.load %arg9[%c0_23, %c0_24, %c0_25] : memref<1x1x256xf32, #tpu.memory_space<vmem>>, vector<1x1x256xf32>
    %475 = vector.shape_cast %474 : vector<1x1x256xf32> to vector<1x256xf32>
    %476 = vector.shape_cast %473 : vector<1x256xf32> to vector<1x1x256xf32>
    tpu.vector_store %arg9[%c0_23, %c0_24, %c0_25], %476 {strides = array<i32>} : memref<1x1x256xf32, #tpu.memory_space<vmem>>, vector<1x1x256xf32>,
    return
  }
  func.func @transform_0(%arg0: i32) -> (i32, i32, i32) {
    %c0_i32 = arith.constant 0 : i32
    %c0_i32_0 = arith.constant 0 : i32
    %c0_i32_1 = arith.constant 0 : i32
    return %arg0, %c0_i32, %c0_i32_0 : i32, i32, i32
  }
  func.func @transform_1(%arg0: i32) -> (i32, i32, i32) {
    %c0_i32 = arith.constant 0 : i32
    %c0_i32_0 = arith.constant 0 : i32
    %c0_i32_1 = arith.constant 0 : i32
    return %arg0, %c0_i32, %c0_i32_0 : i32, i32, i32
  }
  func.func @transform_2(%arg0: i32) -> (i32, i32, i32) {
    %c0_i32 = arith.constant 0 : i32
    %c0_i32_0 = arith.constant 0 : i32
    %c0_i32_1 = arith.constant 0 : i32
    return %arg0, %c0_i32, %c0_i32_0 : i32, i32, i32
  }
  func.func @transform_3(%arg0: i32) -> (i32, i32) {
    %c0_i32 = arith.constant 0 : i32
    %c0_i32_0 = arith.constant 0 : i32
    %c0_i32_1 = arith.constant 0 : i32
    return %c0_i32, %c0_i32_0 : i32, i32
  }
  func.func @transform_4(%arg0: i32) -> (i32, i32) {
    %c0_i32 = arith.constant 0 : i32
    %c0_i32_0 = arith.constant 0 : i32
    %c0_i32_1 = arith.constant 0 : i32
    return %c0_i32, %c0_i32_0 : i32, i32
  }
  func.func @transform_5(%arg0: i32) -> (i32, i32) {
    %c0_i32 = arith.constant 0 : i32
    %c0_i32_0 = arith.constant 0 : i32
    %c0_i32_1 = arith.constant 0 : i32
    return %c0_i32, %c0_i32_0 : i32, i32
  }
  func.func @transform_6(%arg0: i32) -> (i32, i32) {
    %c0_i32 = arith.constant 0 : i32
    %c0_i32_0 = arith.constant 0 : i32
    %c0_i32_1 = arith.constant 0 : i32
    return %c0_i32, %c0_i32_0 : i32, i32
  }
  func.func @transform_7(%arg0: i32) -> i32 {
    %c0_i32 = arith.constant 0 : i32
    %c0_i32_0 = arith.constant 0 : i32
    return %c0_i32 : i32
  }
  func.func @transform_8(%arg0: i32) -> (i32, i32, i32) {
    %c0_i32 = arith.constant 0 : i32
    %c0_i32_0 = arith.constant 0 : i32
    %c0_i32_1 = arith.constant 0 : i32
    return %arg0, %c0_i32, %c0_i32_0 : i32, i32, i32
  }
}

</mosaic_0001>

<llo_original>
// kernel: tpu_custom_call.1
$region0: #{tpu_custom_call.1}
  #allocation0 [shape = 'u32[]', space=smem, size = 0x4, offset = 0x4, fixed_abs, tag = 'smem constant byte address 0x4 - core index']
  #allocation1 [shape = 'u32[72,128]{1,0:T(1,128)}', space=vmem, size = 0x9000, scoped, tag = 'internal scratch']
  %s0 = inlined_call_operand.hbm [shape: f32[2,1,256], index: 0, kind: input, shape index: {}]
  %s1 = inlined_call_operand.hbm [shape: f32[2,1,256], index: 1, kind: input, shape index: {}]
  %s2 = inlined_call_operand.hbm [shape: f32[2,1,256], index: 2, kind: input, shape index: {}]
  %s3 = inlined_call_operand.hbm [shape: f32[16,98], index: 3, kind: input, shape index: {}]
  %s4 = inlined_call_operand.hbm [shape: f32[16,144], index: 4, kind: input, shape index: {}]
  %s5 = inlined_call_operand.hbm [shape: f32[16,144], index: 5, kind: input, shape index: {}]
  %s6 = inlined_call_operand.vmem [shape: f32[1,144], index: 6, kind: input, shape index: {}]
  %s7 = inlined_call_operand.vmem [shape: f32[3], index: 7, kind: input, shape index: {}]
  %s8 = inlined_call_operand.hbm [shape: f32[2,1,256], index: 8, kind: output, shape index: {}]
  %s9 = sld [smem:[#allocation0]]
  $region93: #{tpu_custom_call.1} parent=0
    _
  %s11 = ssub.s32 1, %s9
  %s12 = scalar_select 0, %s11, %s9
  $region1: #{tpu_custom_call.1} parent=0
    #allocation2 [shape = 'u8[2048]{0}', space=vmem, size = 0x800, scoped, tag = 'input window, operand 0']
    #allocation3 [shape = 's32[2]{0}', space=sflag, size = 0x8, scoped, tag = 'scoped memory for tpu_custom_call.1']
    #allocation4 [shape = 's32[2]{0}', space=sflag, size = 0x8, scoped, tag = 'scoped memory for tpu_custom_call.1']
    #allocation5 [shape = 's32[2]{0}', space=sflag, size = 0x8, scoped, tag = 'scoped memory for tpu_custom_call.1']
    #allocation6 [shape = 'u8[2048]{0}', space=vmem, size = 0x800, scoped, tag = 'input window, operand 1']
    #allocation7 [shape = 's32[2]{0}', space=sflag, size = 0x8, scoped, tag = 'scoped memory for tpu_custom_call.1']
    #allocation8 [shape = 'u8[2048]{0}', space=vmem, size = 0x800, scoped, tag = 'input window, operand 2']
    #allocation9 [shape = 'u8[8192]{0}', space=vmem, size = 0x2000, scoped, tag = 'input window, operand 3, single buffered']
    #allocation10 [shape = 's32[1]{0}', space=sflag, size = 0x4, scoped, tag = 'scoped memory for tpu_custom_call.1']
    #allocation11 [shape = 'u8[16384]{0}', space=vmem, size = 0x4000, scoped, tag = 'input window, operand 4, single buffered']
    #allocation12 [shape = 'u8[16384]{0}', space=vmem, size = 0x4000, scoped, tag = 'input window, operand 5, single buffered']
    #allocation13 [shape = 's32[1]{0}', space=sflag, size = 0x4, scoped, tag = 'scoped memory for tpu_custom_call.1']
    #allocation14 [shape = 'u8[512]{0}', space=smem, size = 0x200, scoped, tag = 'input window, operand 7, single buffered']
    #allocation15 [shape = 'u8[2048]{0}', space=vmem, size = 0x800, scoped, tag = 'output window, operand 0']
    %13 = vsyncpa [#allocation3], 0
    %s14 = scalar_lea.sflag [#allocation3], 1
    %15 = vsyncpa %s14, 0
    %16 = vsyncpa [#allocation7], 0
    %s17 = scalar_lea.sflag [#allocation7], 1
    %18 = vsyncpa %s17, 0
    %19 = vsyncpa [#allocation10], 0
    %20 = vsyncpa [#allocation13], 0
    %21 = vsyncpa [#allocation5], 0
    %22 = vsyncpa [#allocation4], 0
    %s23 = scalar_lea.sflag [#allocation4], 1
    %24 = vsyncpa %s23, 0
    loop: start=0, step=1, limit=4
    $region2: #{tpu_custom_call.1} parent=1 // loop_pre_header
      _
    $region3: #{tpu_custom_call.1} parent=1 // loop_header
      %s26 = sphi 0, %s30
      %p27 = scmp.ge.s32.totalorder %s26, 4
      %s36 = sphi 0, %s38
      %s39 = sphi 0, %s36
      %s40 = sphi 0, %s39
      %s56 = sphi 0, %s40
      %s62 = sphi 0, %s64
      %s65 = sphi 0, %s62
      %s66 = sphi 0, %s65
      %s82 = sphi 0, %s66
      %s88 = sphi 0, %s90
      %s91 = sphi 0, %s88
      %s92 = sphi 0, %s91
      %s108 = sphi 0, %s92
      %s112 = sphi 0, %s112
      %s114 = sphi 0, %s112
      %s115 = sphi 0, %s114
      %s129 = sphi 0, %s115
      %s133 = sphi 0, %s133
      %s135 = sphi 0, %s133
      %s136 = sphi 0, %s135
      %s150 = sphi 0, %s136
      %s154 = sphi 0, %s154
      %s156 = sphi 0, %s154
      %s157 = sphi 0, %s156
      %s171 = sphi 0, %s157
      %s175 = sphi 0, %s175
      %s177 = sphi 0, %s175
      %s178 = sphi 0, %s177
      %s192 = sphi 0, %s178
      %s196 = sphi 0, %s196
      %s198 = sphi 0, %s196
      %s199 = sphi 0, %s198
      %s213 = sphi 0, %s199
      %s219 = sphi 0, %s221
      %s222 = sphi 0, %s219
      %s223 = sphi 0, %s222
      %s239 = sphi 0, %s223
    $region4: #{tpu_custom_call.1} parent=1 // loop_header_branch
      %29 = sbr.rel (%p27) target = $region8
    $region5: #{tpu_custom_call.1} parent=1 // loop_body
      %s31 = ssub.s32 %s26, 1
      %s32 = ssub.s32 %s26, 2
      %s33 = sadd.s32 %s26, 1
      %s34 = ssub.s32 %s26, %s33
      %p35 = scmp.eq.s32.totalorder %s34, 0
      %s37 = sadd.s32 %s36, 1
      %s38 = scalar_select %p35, %s36, %s37
      %p41 = pneg %p35
      %p42 = scmp.eq.s32.totalorder %s26, 1
      %p43 = por %p41, %p42
      %p44 = scmp.ne.s32.totalorder %s36, %s39
      %p45 = scmp.eq.s32.totalorder %s26, 0
      %p46 = por %p44, %p45
      %p47 = scmp.ne.s32.totalorder %s36, %s39
      %p48 = scmp.eq.s32.totalorder %s31, 1
      %p49 = por %p47, %p48
      %p50 = scmp.ne.s32.totalorder %s39, %s40
      %p51 = scmp.eq.s32.totalorder %s31, 0
      %p52 = por %p50, %p51
      %p53 = scmp.ne.s32.totalorder %s39, %s40
      %p54 = scmp.eq.s32.totalorder %s32, 1
      %p55 = por %p53, %p54
      %p57 = scmp.ne.s32.totalorder %s40, %s56
      %p58 = scmp.eq.s32.totalorder %s32, 0
      %p59 = por %p57, %p58
      %s60 = ssub.s32 %s26, %s33
      %p61 = scmp.eq.s32.totalorder %s60, 0
      %s63 = sadd.s32 %s62, 1
      %s64 = scalar_select %p61, %s62, %s63
      %p67 = pneg %p61
      %p68 = scmp.eq.s32.totalorder %s26, 1
      %p69 = por %p67, %p68
      %p70 = scmp.ne.s32.totalorder %s62, %s65
      %p71 = scmp.eq.s32.totalorder %s26, 0
      %p72 = por %p70, %p71
      %p73 = scmp.ne.s32.totalorder %s62, %s65
      %p74 = scmp.eq.s32.totalorder %s31, 1
      %p75 = por %p73, %p74
      %p76 = scmp.ne.s32.totalorder %s65, %s66
      %p77 = scmp.eq.s32.totalorder %s31, 0
      %p78 = por %p76, %p77
      %p79 = scmp.ne.s32.totalorder %s65, %s66
      %p80 = scmp.eq.s32.totalorder %s32, 1
      %p81 = por %p79, %p80
      %p83 = scmp.ne.s32.totalorder %s66, %s82
      %p84 = scmp.eq.s32.totalorder %s32, 0
      %p85 = por %p83, %p84
      %s86 = ssub.s32 %s26, %s33
      %p87 = scmp.eq.s32.totalorder %s86, 0
      %s89 = sadd.s32 %s88, 1
      %s90 = scalar_select %p87, %s88, %s89
      %p93 = pneg %p87
      %p94 = scmp.eq.s32.totalorder %s26, 1
      %p95 = por %p93, %p94
      %p96 = scmp.ne.s32.totalorder %s88, %s91
      %p97 = scmp.eq.s32.totalorder %s26, 0
      %p98 = por %p96, %p97
      %p99 = scmp.ne.s32.totalorder %s88, %s91
      %p100 = scmp.eq.s32.totalorder %s31, 1
      %p101 = por %p99, %p100
      %p102 = scmp.ne.s32.totalorder %s91, %s92
      %p103 = scmp.eq.s32.totalorder %s31, 0
      %p104 = por %p102, %p103
      %p105 = scmp.ne.s32.totalorder %s91, %s92
      %p106 = scmp.eq.s32.totalorder %s32, 1
      %p107 = por %p105, %p106
      %p109 = scmp.ne.s32.totalorder %s92, %s108
      %p110 = scmp.eq.s32.totalorder %s32, 0
      %p111 = por %p109, %p110
      %s113 = sadd.s32 %s112, 1
      %p116 = scmp.eq.s32.totalorder %s26, 1
      %p117 = scmp.ne.s32.totalorder %s112, %s114
      %p118 = scmp.eq.s32.totalorder %s26, 0
      %p119 = por %p117, %p118
      %p120 = scmp.ne.s32.totalorder %s112, %s114
      %p121 = scmp.eq.s32.totalorder %s31, 1
      %p122 = por %p120, %p121
      %p123 = scmp.ne.s32.totalorder %s114, %s115
      %p124 = scmp.eq.s32.totalorder %s31, 0
      %p125 = por %p123, %p124
      %p126 = scmp.ne.s32.totalorder %s114, %s115
      %p127 = scmp.eq.s32.totalorder %s32, 1
      %p128 = por %p126, %p127
      %p130 = scmp.ne.s32.totalorder %s115, %s129
      %p131 = scmp.eq.s32.totalorder %s32, 0
      %p132 = por %p130, %p131
      %s134 = sadd.s32 %s133, 1
      %p137 = scmp.eq.s32.totalorder %s26, 1
      %p138 = scmp.ne.s32.totalorder %s133, %s135
      %p139 = scmp.eq.s32.totalorder %s26, 0
      %p140 = por %p138, %p139
      %p141 = scmp.ne.s32.totalorder %s133, %s135
      %p142 = scmp.eq.s32.totalorder %s31, 1
      %p143 = por %p141, %p142
      %p144 = scmp.ne.s32.totalorder %s135, %s136
      %p145 = scmp.eq.s32.totalorder %s31, 0
      %p146 = por %p144, %p145
      %p147 = scmp.ne.s32.totalorder %s135, %s136
      %p148 = scmp.eq.s32.totalorder %s32, 1
      %p149 = por %p147, %p148
      %p151 = scmp.ne.s32.totalorder %s136, %s150
      %p152 = scmp.eq.s32.totalorder %s32, 0
      %p153 = por %p151, %p152
      %s155 = sadd.s32 %s154, 1
      %p158 = scmp.eq.s32.totalorder %s26, 1
      %p159 = scmp.ne.s32.totalorder %s154, %s156
      %p160 = scmp.eq.s32.totalorder %s26, 0
      %p161 = por %p159, %p160
      %p162 = scmp.ne.s32.totalorder %s154, %s156
      %p163 = scmp.eq.s32.totalorder %s31, 1
      %p164 = por %p162, %p163
      %p165 = scmp.ne.s32.totalorder %s156, %s157
      %p166 = scmp.eq.s32.totalorder %s31, 0
      %p167 = por %p165, %p166
      %p168 = scmp.ne.s32.totalorder %s156, %s157
      %p169 = scmp.eq.s32.totalorder %s32, 1
      %p170 = por %p168, %p169
      %p172 = scmp.ne.s32.totalorder %s157, %s171
      %p173 = scmp.eq.s32.totalorder %s32, 0
      %p174 = por %p172, %p173
      %s176 = sadd.s32 %s175, 1
      %p179 = scmp.eq.s32.totalorder %s26, 1
      %p180 = scmp.ne.s32.totalorder %s175, %s177
      %p181 = scmp.eq.s32.totalorder %s26, 0
      %p182 = por %p180, %p181
      %p183 = scmp.ne.s32.totalorder %s175, %s177
      %p184 = scmp.eq.s32.totalorder %s31, 1
      %p185 = por %p183, %p184
      %p186 = scmp.ne.s32.totalorder %s177, %s178
      %p187 = scmp.eq.s32.totalorder %s31, 0
      %p188 = por %p186, %p187
      %p189 = scmp.ne.s32.totalorder %s177, %s178
      %p190 = scmp.eq.s32.totalorder %s32, 1
      %p191 = por %p189, %p190
      %p193 = scmp.ne.s32.totalorder %s178, %s192
      %p194 = scmp.eq.s32.totalorder %s32, 0
      %p195 = por %p193, %p194
      %s197 = sadd.s32 %s196, 1
      %p200 = scmp.eq.s32.totalorder %s26, 1
      %p201 = scmp.ne.s32.totalorder %s196, %s198
      %p202 = scmp.eq.s32.totalorder %s26, 0
      %p203 = por %p201, %p202
      %p204 = scmp.ne.s32.totalorder %s196, %s198
      %p205 = scmp.eq.s32.totalorder %s31, 1
      %p206 = por %p204, %p205
      %p207 = scmp.ne.s32.totalorder %s198, %s199
      %p208 = scmp.eq.s32.totalorder %s31, 0
      %p209 = por %p207, %p208
      %p210 = scmp.ne.s32.totalorder %s198, %s199
      %p211 = scmp.eq.s32.totalorder %s32, 1
      %p212 = por %p210, %p211
      %p214 = scmp.ne.s32.totalorder %s199, %s213
      %p215 = scmp.eq.s32.totalorder %s32, 0
      %p216 = por %p214, %p215
      %s217 = ssub.s32 %s26, %s33
      %p218 = scmp.eq.s32.totalorder %s217, 0
      %s220 = sadd.s32 %s219, 1
      %s221 = scalar_select %p218, %s219, %s220
      %p224 = pneg %p218
      %p225 = scmp.eq.s32.totalorder %s26, 1
      %p226 = por %p224, %p225
      %p227 = scmp.ne.s32.totalorder %s219, %s222
      %p228 = scmp.eq.s32.totalorder %s26, 0
      %p229 = por %p227, %p228
      %p230 = scmp.ne.s32.totalorder %s219, %s222
      %p231 = scmp.eq.s32.totalorder %s31, 1
      %p232 = por %p230, %p231
      %p233 = scmp.ne.s32.totalorder %s222, %s223
      %p234 = scmp.eq.s32.totalorder %s31, 0
      %p235 = por %p233, %p234
      %p236 = scmp.ne.s32.totalorder %s222, %s223
      %p237 = scmp.eq.s32.totalorder %s32, 1
      %p238 = por %p236, %p237
      %p240 = scmp.ne.s32.totalorder %s223, %s239
      %p241 = scmp.eq.s32.totalorder %s32, 0
      %p242 = por %p240, %p241
      %p243 = scmp.le.s32.totalorder 1, %s26
      %p244 = scmp.lt.s32.totalorder %s26, 3
      %p245 = pnand %p243, %p244
      %p246 = pneg %p245
      // Predicated region
      $region9: #{tpu_custom_call.1} parent=5 // pred_check
        _
      $region10: #{tpu_custom_call.1} parent=5 // pred_check_branch
        %248 = sbr.rel (%p245) target = $region12
      $region11: #{tpu_custom_call.1} parent=5 // pred_region
        %s249 = ssub.s32 %s26, 1
        // Predicated region
        $region13: #{tpu_custom_call.1} parent=11 // pred_check
          %p250 = pneg %p125
        $region14: #{tpu_custom_call.1} parent=11 // pred_check_branch
          %252 = sbr.rel (%p250) target = $region16
        $region15: #{tpu_custom_call.1} parent=11 // pred_region
          %254 = vsyncadd [#allocation10], 0
          %s255 = sshll.u32 %s3, 4
          %s256 = int_to_ptr.hbm [resolvable:$true] %s255
          %s257 = sshll.u32 [#allocation9], 4
          %s258 = int_to_ptr.vmem [resolvable:$true] %s257
          %263 = dma.hbm_to_vmem [thread:$0]  %s256, 256, %s258, [#allocation10], 128, 128, 8
        $region16: #{tpu_custom_call.1} parent=11 // pred_fallthru
          _
        // Predicated region
        $region17: #{tpu_custom_call.1} parent=11 // pred_check
          %p264 = pneg %p146
        $region18: #{tpu_custom_call.1} parent=11 // pred_check_branch
          %266 = sbr.rel (%p264) target = $region20
        $region19: #{tpu_custom_call.1} parent=11 // pred_region
          %268 = vsyncadd [#allocation10], 0
          %s269 = sshll.u32 %s4, 4
          %s270 = int_to_ptr.hbm [resolvable:$true] %s269
          %s271 = sshll.u32 [#allocation11], 4
          %s272 = int_to_ptr.vmem [resolvable:$true] %s271
          %277 = dma.hbm_to_vmem [thread:$0]  %s270, 512, %s272, [#allocation10], 256, 256, 16
        $region20: #{tpu_custom_call.1} parent=11 // pred_fallthru
          _
        // Predicated region
        $region21: #{tpu_custom_call.1} parent=11 // pred_check
          %p278 = pneg %p167
        $region22: #{tpu_custom_call.1} parent=11 // pred_check_branch
          %280 = sbr.rel (%p278) target = $region24
        $region23: #{tpu_custom_call.1} parent=11 // pred_region
          %282 = vsyncadd [#allocation13], 0
          %s283 = sshll.u32 %s5, 4
          %s284 = int_to_ptr.hbm [resolvable:$true] %s283
          %s285 = sshll.u32 [#allocation12], 4
          %s286 = int_to_ptr.vmem [resolvable:$true] %s285
          %291 = dma.hbm_to_vmem [thread:$0]  %s284, 512, %s286, [#allocation13], 256, 256, 16
        $region24: #{tpu_custom_call.1} parent=11 // pred_fallthru
          _
        // Predicated region
        $region25: #{tpu_custom_call.1} parent=11 // pred_check
          %p292 = pneg %p188
        $region26: #{tpu_custom_call.1} parent=11 // pred_check_branch
          %294 = sbr.rel (%p292) target = $region28
        $region27: #{tpu_custom_call.1} parent=11 // pred_region
          _
        $region28: #{tpu_custom_call.1} parent=11 // pred_fallthru
          _
        // Predicated region
        $region29: #{tpu_custom_call.1} parent=11 // pred_check
          %p295 = pneg %p209
        $region30: #{tpu_custom_call.1} parent=11 // pred_check_branch
          %297 = sbr.rel (%p295) target = $region32
        $region31: #{tpu_custom_call.1} parent=11 // pred_region
          %299 = vsyncadd [#allocation5], 0
          %s301 = sshll.u32 %s7, 4
          %s302 = int_to_ptr.vmem [resolvable:$true] %s301
          %304 = dma.vmem_to_smem %s302, 16, [#allocation14], [#allocation5]
        $region32: #{tpu_custom_call.1} parent=11 // pred_fallthru
          _
      $region12: #{tpu_custom_call.1} parent=5 // pred_fallthru
        _
      %p305 = scmp.lt.s32.totalorder %s26, 2
      // Predicated region
      $region33: #{tpu_custom_call.1} parent=5 // pred_check
        %p306 = pneg %p305
      $region34: #{tpu_custom_call.1} parent=5 // pred_check_branch
        %308 = sbr.rel (%p306) target = $region36
      $region35: #{tpu_custom_call.1} parent=5 // pred_region
        // Predicated region
        $region37: #{tpu_custom_call.1} parent=35 // pred_check
          %p309 = pneg %p46
        $region38: #{tpu_custom_call.1} parent=35 // pred_check_branch
          %311 = sbr.rel (%p309) target = $region40
        $region39: #{tpu_custom_call.1} parent=35 // pred_region
          %s312 = sand.u32 %s36, 1
          %s313 = scalar_lea.sflag [#allocation3], %s312
          %s314 = sand.u32 %s36, 1
          %s315 = smul.addr %s314, 2
          %s316 = scalar_lea.vmem [#allocation2], %s315
          %318 = vsyncadd %s313, 0
          %s319 = smul.addr %s26, 2
          %s320 = scalar_lea.hbm %s0, %s319
          %s322 = sshll.u32 %s320, 4
          %s323 = int_to_ptr.hbm [resolvable:$true] %s322
          %s324 = sshll.u32 %s316, 4
          %s325 = int_to_ptr.vmem [resolvable:$true] %s324
          %327 = dma.hbm_to_vmem [thread:$0]  %s323, 32, %s325, %s313
        $region40: #{tpu_custom_call.1} parent=35 // pred_fallthru
          _
        // Predicated region
        $region41: #{tpu_custom_call.1} parent=35 // pred_check
          %p328 = pneg %p72
        $region42: #{tpu_custom_call.1} parent=35 // pred_check_branch
          %330 = sbr.rel (%p328) target = $region44
        $region43: #{tpu_custom_call.1} parent=35 // pred_region
          %s331 = sand.u32 %s26, 1
          %s332 = scalar_lea.sflag [#allocation7], %s331
          %s333 = sand.u32 %s62, 1
          %s334 = smul.addr %s333, 2
          %s335 = scalar_lea.vmem [#allocation6], %s334
          %337 = vsyncadd %s332, 0
          %s338 = smul.addr %s26, 2
          %s339 = scalar_lea.hbm %s1, %s338
          %s341 = sshll.u32 %s339, 4
          %s342 = int_to_ptr.hbm [resolvable:$true] %s341
          %s343 = sshll.u32 %s335, 4
          %s344 = int_to_ptr.vmem [resolvable:$true] %s343
          %346 = dma.hbm_to_vmem [thread:$0]  %s342, 32, %s344, %s332
        $region44: #{tpu_custom_call.1} parent=35 // pred_fallthru
          _
        // Predicated region
        $region45: #{tpu_custom_call.1} parent=35 // pred_check
          %p347 = pneg %p98
        $region46: #{tpu_custom_call.1} parent=35 // pred_check_branch
          %349 = sbr.rel (%p347) target = $region48
        $region47: #{tpu_custom_call.1} parent=35 // pred_region
          %s350 = sand.u32 %s26, 1
          %s351 = scalar_lea.sflag [#allocation7], %s350
          %s352 = sand.u32 %s88, 1
          %s353 = smul.addr %s352, 2
          %s354 = scalar_lea.vmem [#allocation8], %s353
          %356 = vsyncadd %s351, 0
          %s357 = smul.addr %s26, 2
          %s358 = scalar_lea.hbm %s2, %s357
          %s360 = sshll.u32 %s358, 4
          %s361 = int_to_ptr.hbm [resolvable:$true] %s360
          %s362 = sshll.u32 %s354, 4
          %s363 = int_to_ptr.vmem [resolvable:$true] %s362
          %365 = dma.hbm_to_vmem [thread:$0]  %s361, 32, %s363, %s351
        $region48: #{tpu_custom_call.1} parent=35 // pred_fallthru
          _
      $region36: #{tpu_custom_call.1} parent=5 // pred_fallthru
        _
      %p366 = scmp.le.s32.totalorder 1, %s26
      %p367 = scmp.lt.s32.totalorder %s26, 3
      %p368 = pnand %p366, %p367
      %p369 = pneg %p368
      // Predicated region
      $region49: #{tpu_custom_call.1} parent=5 // pred_check
        _
      $region50: #{tpu_custom_call.1} parent=5 // pred_check_branch
        %371 = sbr.rel (%p368) target = $region52
      $region51: #{tpu_custom_call.1} parent=5 // pred_region
        %s372 = ssub.s32 %s26, 1
        %s373 = sand.u32 %s39, 1
        %s374 = scalar_lea.sflag [#allocation3], %s373
        %s375 = sand.u32 %s39, 1
        %s376 = smul.addr %s375, 2
        %s377 = scalar_lea.vmem [#allocation2], %s376
        // Predicated region
        $region53: #{tpu_custom_call.1} parent=51 // pred_check
          %p378 = pneg %p52
        $region54: #{tpu_custom_call.1} parent=51 // pred_check_branch
          %380 = sbr.rel (%p378) target = $region56
        $region55: #{tpu_custom_call.1} parent=51 // pred_region
          %382 = dma.done %s374, 32
        $region56: #{tpu_custom_call.1} parent=51 // pred_fallthru
          _
        %s383 = sand.u32 %s31, 1
        %s384 = scalar_lea.sflag [#allocation7], %s383
        %s385 = sand.u32 %s65, 1
        %s386 = smul.addr %s385, 2
        %s387 = scalar_lea.vmem [#allocation6], %s386
        // Predicated region
        $region57: #{tpu_custom_call.1} parent=51 // pred_check
          %p388 = pneg %p78
        $region58: #{tpu_custom_call.1} parent=51 // pred_check_branch
          %390 = sbr.rel (%p388) target = $region60
        $region59: #{tpu_custom_call.1} parent=51 // pred_region
          %392 = dma.done %s384, 32
        $region60: #{tpu_custom_call.1} parent=51 // pred_fallthru
          _
        %s393 = sand.u32 %s31, 1
        %s394 = scalar_lea.sflag [#allocation7], %s393
        %s395 = sand.u32 %s91, 1
        %s396 = smul.addr %s395, 2
        %s397 = scalar_lea.vmem [#allocation8], %s396
        // Predicated region
        $region61: #{tpu_custom_call.1} parent=51 // pred_check
          %p398 = pneg %p104
        $region62: #{tpu_custom_call.1} parent=51 // pred_check_branch
          %400 = sbr.rel (%p398) target = $region64
        $region63: #{tpu_custom_call.1} parent=51 // pred_region
          %402 = dma.done %s394, 32
        $region64: #{tpu_custom_call.1} parent=51 // pred_fallthru
          _
        // Predicated region
        $region65: #{tpu_custom_call.1} parent=51 // pred_check
          %p403 = pneg %p125
        $region66: #{tpu_custom_call.1} parent=51 // pred_check_branch
          %405 = sbr.rel (%p403) target = $region68
        $region67: #{tpu_custom_call.1} parent=51 // pred_region
          %407 = dma.done [#allocation10], 256
        $region68: #{tpu_custom_call.1} parent=51 // pred_fallthru
          _
        // Predicated region
        $region69: #{tpu_custom_call.1} parent=51 // pred_check
          %p408 = pneg %p146
        $region70: #{tpu_custom_call.1} parent=51 // pred_check_branch
          %410 = sbr.rel (%p408) target = $region72
        $region71: #{tpu_custom_call.1} parent=51 // pred_region
          %412 = dma.done [#allocation10], 512
        $region72: #{tpu_custom_call.1} parent=51 // pred_fallthru
          _
        // Predicated region
        $region73: #{tpu_custom_call.1} parent=51 // pred_check
          %p413 = pneg %p167
        $region74: #{tpu_custom_call.1} parent=51 // pred_check_branch
          %415 = sbr.rel (%p413) target = $region76
        $region75: #{tpu_custom_call.1} parent=51 // pred_region
          %417 = dma.done [#allocation13], 512
        $region76: #{tpu_custom_call.1} parent=51 // pred_fallthru
          _
        // Predicated region
        $region77: #{tpu_custom_call.1} parent=51 // pred_check
          %p418 = pneg %p209
        $region78: #{tpu_custom_call.1} parent=51 // pred_check_branch
          %420 = sbr.rel (%p418) target = $region80
        $region79: #{tpu_custom_call.1} parent=51 // pred_region
          %422 = dma.done [#allocation5], 16
        $region80: #{tpu_custom_call.1} parent=51 // pred_fallthru
          _
        %423 = sfence
        %s424 = sand.u32 %s39, 1
        %s425 = scalar_lea.sflag [#allocation3], %s424
        %s426 = sand.u32 %s39, 1
        %s427 = smul.addr %s426, 2
        %s428 = scalar_lea.vmem [#allocation2], %s427
        %p429 = pneg %p52
        %p430 = pneg %p49
        %s431 = sand.u32 %s31, 1
        %s432 = scalar_lea.sflag [#allocation7], %s431
        %s433 = sand.u32 %s65, 1
        %s434 = smul.addr %s433, 2
        %s435 = scalar_lea.vmem [#allocation6], %s434
        %p436 = pneg %p78
        %p437 = pneg %p75
        %s438 = sand.u32 %s31, 1
        %s439 = scalar_lea.sflag [#allocation7], %s438
        %s440 = sand.u32 %s91, 1
        %s441 = smul.addr %s440, 2
        %s442 = scalar_lea.vmem [#allocation8], %s441
        %p443 = pneg %p104
        %p444 = pneg %p101
        %p445 = pneg %p125
        %p446 = pneg %p122
        %p447 = pneg %p146
        %p448 = pneg %p143
        %p449 = pneg %p167
        %p450 = pneg %p164
        %p451 = pneg %p188
        %p452 = pneg %p185
        %p453 = pneg %p209
        %p454 = pneg %p206
        %p455 = pneg %p235
        %p456 = pneg %p232
        %s457 = sand.u32 %s222, 1
        %s458 = scalar_lea.sflag [#allocation4], %s457
        %s459 = sand.u32 %s222, 1
        %s460 = smul.addr %s459, 2
        %s461 = scalar_lea.vmem [#allocation15], %s460
        %v462 = vld [vmem:[%s377] sm:$0x3]
        %v463 = vld [vmem:[%s387] sm:$0x3]
        %v465 = vperm.slane %v462, 0
        %v466 = vperm.slane %v462, 1
        %v470 = vperm.slane %v463, 0
        %v471 = vperm.slane %v463, 1
        %vm474 = vcmask 1040384
        %v475 = vsel %vm474, %v465, %v470
        %v476 = vsel %vm474, %v466, %v471
        %v477 = vld [vmem:[#allocation9] sm:$0xff]
        %v478 = vld [vmem:[#allocation9 + $0x8] sm:$0xff]
        %s479 = sld [smem:[#allocation14]]
        %481 = vrot.lane.b32.xlu0 %v475, 125
        %v482 = vpop.permute.xlu0 %481
        %484 = vrot.lane.b32.xlu0 %v475, 127
        %v485 = vpop.permute.xlu0 %484
        %487 = vrot.lane.b32.xlu0 %v475, 1
        %v488 = vpop.permute.xlu0 %487
        %490 = vrot.lane.b32.xlu0 %v475, 3
        %v491 = vpop.permute.xlu0 %490
        %493 = vrot.lane.b32.xlu0 %v475, 5
        %v494 = vpop.permute.xlu0 %493
        %496 = vrot.lane.b32.xlu0 %v475, 7
        %v497 = vpop.permute.xlu0 %496
        %499 = vrot.lane.b32.xlu0 %v475, 9
        %v500 = vpop.permute.xlu0 %499
        %vm502 = vcmask 7168
        %v503 = vsel %vm502, %v482, %v485
        %vm504 = vcmask 15360
        %v505 = vsel %vm504, %v503, %v488
        %vm506 = vcmask 23552
        %v507 = vsel %vm506, %v505, %v491
        %vm508 = vcmask 154624
        %v509 = vsel %vm508, %v507, %v494
        %vm510 = vcmask 162816
        %v511 = vsel %vm510, %v509, %v497
        %vm512 = vcmask 171008
        %v513 = vsel %vm512, %v511, %v500
        %514 = vrot.lane.b32.xlu0 %v475, 109
        %v515 = vpop.permute.xlu0 %514
        %517 = vrot.lane.b32.xlu0 %v475, 111
        %v518 = vpop.permute.xlu0 %517
        %520 = vrot.lane.b32.xlu0 %v475, 113
        %v521 = vpop.permute.xlu0 %520
        %523 = vrot.lane.b32.xlu0 %v475, 115
        %v524 = vpop.permute.xlu0 %523
        %526 = vrot.lane.b32.xlu0 %v475, 117
        %v527 = vpop.permute.xlu0 %526
        %529 = vrot.lane.b32.xlu0 %v475, 119
        %v530 = vpop.permute.xlu0 %529
        %532 = vrot.lane.b32.xlu0 %v475, 121
        %v533 = vpop.permute.xlu0 %532
        %v535 = vsel %vm502, %v515, %v518
        %v536 = vsel %vm504, %v535, %v521
        %v537 = vsel %vm506, %v536, %v524
        %v538 = vsel %vm508, %v537, %v527
        %v539 = vsel %vm510, %v538, %v530
        %v540 = vsel %vm512, %v539, %v533
        %541 = vrot.lane.b32.xlu0 %v475, 93
        %v542 = vpop.permute.xlu0 %541
        %544 = vrot.lane.b32.xlu0 %v475, 95
        %v545 = vpop.permute.xlu0 %544
        %547 = vrot.lane.b32.xlu0 %v475, 97
        %v548 = vpop.permute.xlu0 %547
        %550 = vrot.lane.b32.xlu0 %v475, 99
        %v551 = vpop.permute.xlu0 %550
        %553 = vrot.lane.b32.xlu0 %v475, 101
        %v554 = vpop.permute.xlu0 %553
        %556 = vrot.lane.b32.xlu0 %v475, 103
        %v557 = vpop.permute.xlu0 %556
        %559 = vrot.lane.b32.xlu0 %v475, 105
        %v560 = vpop.permute.xlu0 %559
        %v562 = vsel %vm502, %v542, %v545
        %v563 = vsel %vm504, %v562, %v548
        %v564 = vsel %vm506, %v563, %v551
        %v565 = vsel %vm508, %v564, %v554
        %v566 = vsel %vm510, %v565, %v557
        %v567 = vsel %vm512, %v566, %v560
        %568 = vrot.lane.b32.xlu0 %v475, 77
        %v569 = vpop.permute.xlu0 %568
        %571 = vrot.lane.b32.xlu0 %v475, 79
        %v572 = vpop.permute.xlu0 %571
        %574 = vrot.lane.b32.xlu0 %v475, 81
        %v575 = vpop.permute.xlu0 %574
        %577 = vrot.lane.b32.xlu0 %v475, 83
        %v578 = vpop.permute.xlu0 %577
        %580 = vrot.lane.b32.xlu0 %v475, 85
        %v581 = vpop.permute.xlu0 %580
        %583 = vrot.lane.b32.xlu0 %v475, 87
        %v584 = vpop.permute.xlu0 %583
        %586 = vrot.lane.b32.xlu0 %v475, 89
        %v587 = vpop.permute.xlu0 %586
        %v589 = vsel %vm502, %v569, %v572
        %v590 = vsel %vm504, %v589, %v575
        %v591 = vsel %vm506, %v590, %v578
        %v592 = vsel %vm508, %v591, %v581
        %v593 = vsel %vm510, %v592, %v584
        %v594 = vsel %vm512, %v593, %v587
        %595 = vrot.lane.b32.xlu0 %v475, 61
        %v596 = vpop.permute.xlu0 %595
        %598 = vrot.lane.b32.xlu0 %v475, 63
        %v599 = vpop.permute.xlu0 %598
        %601 = vrot.lane.b32.xlu0 %v475, 65
        %v602 = vpop.permute.xlu0 %601
        %604 = vrot.lane.b32.xlu0 %v475, 67
        %v605 = vpop.permute.xlu0 %604
        %607 = vrot.lane.b32.xlu0 %v475, 69
        %v608 = vpop.permute.xlu0 %607
        %610 = vrot.lane.b32.xlu0 %v475, 71
        %v611 = vpop.permute.xlu0 %610
        %613 = vrot.lane.b32.xlu0 %v475, 73
        %v614 = vpop.permute.xlu0 %613
        %v616 = vsel %vm502, %v596, %v599
        %v617 = vsel %vm504, %v616, %v602
        %v618 = vsel %vm506, %v617, %v605
        %v619 = vsel %vm508, %v618, %v608
        %v620 = vsel %vm510, %v619, %v611
        %v621 = vsel %vm512, %v620, %v614
        %622 = vrot.lane.b32.xlu0 %v475, 45
        %v623 = vpop.permute.xlu0 %622
        %625 = vrot.lane.b32.xlu0 %v475, 47
        %v626 = vpop.permute.xlu0 %625
        %628 = vrot.lane.b32.xlu0 %v475, 49
        %v629 = vpop.permute.xlu0 %628
        %631 = vrot.lane.b32.xlu0 %v475, 51
        %v632 = vpop.permute.xlu0 %631
        %634 = vrot.lane.b32.xlu0 %v475, 53
        %v635 = vpop.permute.xlu0 %634
        %637 = vrot.lane.b32.xlu0 %v475, 55
        %v638 = vpop.permute.xlu0 %637
        %640 = vrot.lane.b32.xlu0 %v475, 57
        %v641 = vpop.permute.xlu0 %640
        %v643 = vsel %vm502, %v623, %v626
        %v644 = vsel %vm504, %v643, %v629
        %v645 = vsel %vm506, %v644, %v632
        %v646 = vsel %vm508, %v645, %v635
        %v647 = vsel %vm510, %v646, %v638
        %v648 = vsel %vm512, %v647, %v641
        %649 = vrot.lane.b32.xlu0 %v475, 29
        %v650 = vpop.permute.xlu0 %649
        %652 = vrot.lane.b32.xlu0 %v475, 31
        %v653 = vpop.permute.xlu0 %652
        %655 = vrot.lane.b32.xlu0 %v475, 33
        %v656 = vpop.permute.xlu0 %655
        %658 = vrot.lane.b32.xlu0 %v475, 35
        %v659 = vpop.permute.xlu0 %658
        %661 = vrot.lane.b32.xlu0 %v475, 37
        %v662 = vpop.permute.xlu0 %661
        %664 = vrot.lane.b32.xlu0 %v475, 39
        %v665 = vpop.permute.xlu0 %664
        %667 = vrot.lane.b32.xlu0 %v475, 41
        %v668 = vpop.permute.xlu0 %667
        %v670 = vsel %vm502, %v650, %v653
        %v671 = vsel %vm504, %v670, %v656
        %v672 = vsel %vm506, %v671, %v659
        %v673 = vsel %vm508, %v672, %v662
        %v674 = vsel %vm510, %v673, %v665
        %v675 = vsel %vm512, %v674, %v668
        %676 = vrot.lane.b32.xlu0 %v475, 13
        %v677 = vpop.permute.xlu0 %676
        %679 = vrot.lane.b32.xlu0 %v475, 15
        %v680 = vpop.permute.xlu0 %679
        %682 = vrot.lane.b32.xlu0 %v475, 17
        %v683 = vpop.permute.xlu0 %682
        %685 = vrot.lane.b32.xlu0 %v475, 19
        %v686 = vpop.permute.xlu0 %685
        %688 = vrot.lane.b32.xlu0 %v475, 21
        %v689 = vpop.permute.xlu0 %688
        %691 = vrot.lane.b32.xlu0 %v475, 23
        %v692 = vpop.permute.xlu0 %691
        %694 = vrot.lane.b32.xlu0 %v475, 25
        %v695 = vpop.permute.xlu0 %694
        %v697 = vsel %vm502, %v677, %v680
        %v698 = vsel %vm504, %v697, %v683
        %v699 = vsel %vm506, %v698, %v686
        %v700 = vsel %vm508, %v699, %v689
        %v701 = vsel %vm510, %v700, %v692
        %v702 = vsel %vm512, %v701, %v695
        %704 = vrot.lane.b32.xlu0 %v476, 125
        %v705 = vpop.permute.xlu0 %704
        %707 = vrot.lane.b32.xlu0 %v476, 127
        %v708 = vpop.permute.xlu0 %707
        %710 = vrot.lane.b32.xlu0 %v476, 1
        %v711 = vpop.permute.xlu0 %710
        %713 = vrot.lane.b32.xlu0 %v476, 3
        %v714 = vpop.permute.xlu0 %713
        %716 = vrot.lane.b32.xlu0 %v476, 5
        %v717 = vpop.permute.xlu0 %716
        %719 = vrot.lane.b32.xlu0 %v476, 7
        %v720 = vpop.permute.xlu0 %719
        %722 = vrot.lane.b32.xlu0 %v476, 9
        %v723 = vpop.permute.xlu0 %722
        %v725 = vsel %vm502, %v705, %v708
        %v726 = vsel %vm504, %v725, %v711
        %v727 = vsel %vm506, %v726, %v714
        %v728 = vsel %vm508, %v727, %v717
        %v729 = vsel %vm510, %v728, %v720
        %v730 = vsel %vm512, %v729, %v723
        %731 = vrot.lane.b32.xlu0 %v476, 109
        %v732 = vpop.permute.xlu0 %731
        %734 = vrot.lane.b32.xlu0 %v476, 111
        %v735 = vpop.permute.xlu0 %734
        %737 = vrot.lane.b32.xlu0 %v476, 113
        %v738 = vpop.permute.xlu0 %737
        %740 = vrot.lane.b32.xlu0 %v476, 115
        %v741 = vpop.permute.xlu0 %740
        %743 = vrot.lane.b32.xlu0 %v476, 117
        %v744 = vpop.permute.xlu0 %743
        %746 = vrot.lane.b32.xlu0 %v476, 119
        %v747 = vpop.permute.xlu0 %746
        %749 = vrot.lane.b32.xlu0 %v476, 121
        %v750 = vpop.permute.xlu0 %749
        %v752 = vsel %vm502, %v732, %v735
        %v753 = vsel %vm504, %v752, %v738
        %v754 = vsel %vm506, %v753, %v741
        %v755 = vsel %vm508, %v754, %v744
        %v756 = vsel %vm510, %v755, %v747
        %v757 = vsel %vm512, %v756, %v750
        %758 = vrot.lane.b32.xlu0 %v476, 93
        %v759 = vpop.permute.xlu0 %758
        %761 = vrot.lane.b32.xlu0 %v476, 95
        %v762 = vpop.permute.xlu0 %761
        %764 = vrot.lane.b32.xlu0 %v476, 97
        %v765 = vpop.permute.xlu0 %764
        %767 = vrot.lane.b32.xlu0 %v476, 99
        %v768 = vpop.permute.xlu0 %767
        %770 = vrot.lane.b32.xlu0 %v476, 101
        %v771 = vpop.permute.xlu0 %770
        %773 = vrot.lane.b32.xlu0 %v476, 103
        %v774 = vpop.permute.xlu0 %773
        %776 = vrot.lane.b32.xlu0 %v476, 105
        %v777 = vpop.permute.xlu0 %776
        %v779 = vsel %vm502, %v759, %v762
        %v780 = vsel %vm504, %v779, %v765
        %v781 = vsel %vm506, %v780, %v768
        %v782 = vsel %vm508, %v781, %v771
        %v783 = vsel %vm510, %v782, %v774
        %v784 = vsel %vm512, %v783, %v777
        %785 = vrot.lane.b32.xlu0 %v476, 77
        %v786 = vpop.permute.xlu0 %785
        %788 = vrot.lane.b32.xlu0 %v476, 79
        %v789 = vpop.permute.xlu0 %788
        %791 = vrot.lane.b32.xlu0 %v476, 81
        %v792 = vpop.permute.xlu0 %791
        %794 = vrot.lane.b32.xlu0 %v476, 83
        %v795 = vpop.permute.xlu0 %794
        %797 = vrot.lane.b32.xlu0 %v476, 85
        %v798 = vpop.permute.xlu0 %797
        %800 = vrot.lane.b32.xlu0 %v476, 87
        %v801 = vpop.permute.xlu0 %800
        %803 = vrot.lane.b32.xlu0 %v476, 89
        %v804 = vpop.permute.xlu0 %803
        %v806 = vsel %vm502, %v786, %v789
        %v807 = vsel %vm504, %v806, %v792
        %v808 = vsel %vm506, %v807, %v795
        %v809 = vsel %vm508, %v808, %v798
        %v810 = vsel %vm510, %v809, %v801
        %v811 = vsel %vm512, %v810, %v804
        %812 = vrot.lane.b32.xlu0 %v476, 61
        %v813 = vpop.permute.xlu0 %812
        %815 = vrot.lane.b32.xlu0 %v476, 63
        %v816 = vpop.permute.xlu0 %815
        %818 = vrot.lane.b32.xlu0 %v476, 65
        %v819 = vpop.permute.xlu0 %818
        %821 = vrot.lane.b32.xlu0 %v476, 67
        %v822 = vpop.permute.xlu0 %821
        %824 = vrot.lane.b32.xlu0 %v476, 69
        %v825 = vpop.permute.xlu0 %824
        %827 = vrot.lane.b32.xlu0 %v476, 71
        %v828 = vpop.permute.xlu0 %827
        %830 = vrot.lane.b32.xlu0 %v476, 73
        %v831 = vpop.permute.xlu0 %830
        %v833 = vsel %vm502, %v813, %v816
        %v834 = vsel %vm504, %v833, %v819
        %v835 = vsel %vm506, %v834, %v822
        %v836 = vsel %vm508, %v835, %v825
        %v837 = vsel %vm510, %v836, %v828
        %v838 = vsel %vm512, %v837, %v831
        %839 = vrot.lane.b32.xlu0 %v476, 45
        %v840 = vpop.permute.xlu0 %839
        %842 = vrot.lane.b32.xlu0 %v476, 47
        %v843 = vpop.permute.xlu0 %842
        %845 = vrot.lane.b32.xlu0 %v476, 49
        %v846 = vpop.permute.xlu0 %845
        %848 = vrot.lane.b32.xlu0 %v476, 51
        %v849 = vpop.permute.xlu0 %848
        %851 = vrot.lane.b32.xlu0 %v476, 53
        %v852 = vpop.permute.xlu0 %851
        %854 = vrot.lane.b32.xlu0 %v476, 55
        %v855 = vpop.permute.xlu0 %854
        %857 = vrot.lane.b32.xlu0 %v476, 57
        %v858 = vpop.permute.xlu0 %857
        %v860 = vsel %vm502, %v840, %v843
        %v861 = vsel %vm504, %v860, %v846
        %v862 = vsel %vm506, %v861, %v849
        %v863 = vsel %vm508, %v862, %v852
        %v864 = vsel %vm510, %v863, %v855
        %v865 = vsel %vm512, %v864, %v858
        %866 = vrot.lane.b32.xlu0 %v476, 29
        %v867 = vpop.permute.xlu0 %866
        %869 = vrot.lane.b32.xlu0 %v476, 31
        %v870 = vpop.permute.xlu0 %869
        %872 = vrot.lane.b32.xlu0 %v476, 33
        %v873 = vpop.permute.xlu0 %872
        %875 = vrot.lane.b32.xlu0 %v476, 35
        %v876 = vpop.permute.xlu0 %875
        %878 = vrot.lane.b32.xlu0 %v476, 37
        %v879 = vpop.permute.xlu0 %878
        %881 = vrot.lane.b32.xlu0 %v476, 39
        %v882 = vpop.permute.xlu0 %881
        %884 = vrot.lane.b32.xlu0 %v476, 41
        %v885 = vpop.permute.xlu0 %884
        %v887 = vsel %vm502, %v867, %v870
        %v888 = vsel %vm504, %v887, %v873
        %v889 = vsel %vm506, %v888, %v876
        %v890 = vsel %vm508, %v889, %v879
        %v891 = vsel %vm510, %v890, %v882
        %v892 = vsel %vm512, %v891, %v885
        %893 = vrot.lane.b32.xlu0 %v476, 13
        %v894 = vpop.permute.xlu0 %893
        %896 = vrot.lane.b32.xlu0 %v476, 15
        %v897 = vpop.permute.xlu0 %896
        %899 = vrot.lane.b32.xlu0 %v476, 17
        %v900 = vpop.permute.xlu0 %899
        %902 = vrot.lane.b32.xlu0 %v476, 19
        %v903 = vpop.permute.xlu0 %902
        %905 = vrot.lane.b32.xlu0 %v476, 21
        %v906 = vpop.permute.xlu0 %905
        %908 = vrot.lane.b32.xlu0 %v476, 23
        %v909 = vpop.permute.xlu0 %908
        %911 = vrot.lane.b32.xlu0 %v476, 25
        %v912 = vpop.permute.xlu0 %911
        %v914 = vsel %vm502, %v894, %v897
        %v915 = vsel %vm504, %v914, %v900
        %v916 = vsel %vm506, %v915, %v903
        %v917 = vsel %vm508, %v916, %v906
        %v918 = vsel %vm510, %v917, %v909
        %v919 = vsel %vm512, %v918, %v912
        %921 = vrot.lane.b32.xlu0 %v567, 22
        %v922 = vpop.permute.xlu0 %921
        %925 = vrot.lane.b32.xlu0 %v540, 44
        %v926 = vpop.permute.xlu0 %925
        %929 = vrot.lane.b32.xlu0 %v513, 66
        %v930 = vpop.permute.xlu0 %929
        %932 = vrot.lane.b32.xlu0 %v540, 88
        %v933 = vpop.permute.xlu0 %932
        %935 = vrot.lane.b32.xlu0 %v567, 110
        %v936 = vpop.permute.xlu0 %935
        %939 = vrot.lane.b32.xlu0 %v594, 4
        %v940 = vpop.permute.xlu0 %939
        %943 = vrot.lane.b32.xlu0 %v621, 26
        %v944 = vpop.permute.xlu0 %943
        %947 = vrot.lane.b32.xlu0 %v648, 48
        %v948 = vpop.permute.xlu0 %947
        %951 = vrot.lane.b32.xlu0 %v675, 70
        %v952 = vpop.permute.xlu0 %951
        %955 = vrot.lane.b32.xlu0 %v702, 92
        %v956 = vpop.permute.xlu0 %955
        %959 = vrot.lane.b32.xlu0 %v730, 114
        %v960 = vpop.permute.xlu0 %959
        %963 = vrot.lane.b32.xlu0 %v757, 8
        %v964 = vpop.permute.xlu0 %963
        %967 = vrot.lane.b32.xlu0 %v784, 30
        %v968 = vpop.permute.xlu0 %967
        %971 = vrot.lane.b32.xlu0 %v811, 52
        %v972 = vpop.permute.xlu0 %971
        %975 = vrot.lane.b32.xlu0 %v838, 74
        %v976 = vpop.permute.xlu0 %975
        %vm978 = vcmask 179200
        %v979 = vsel %vm978, %v594, %v922
        %vm980 = vcmask 359424
        %v981 = vsel %vm980, %v979, %v926
        %vm982 = vcmask 539648
        %v983 = vsel %vm982, %v981, %v930
        %vm984 = vcmask 719872
        %v985 = vsel %vm984, %v983, %v933
        %vm986 = vcmask 900096
        %v987 = vsel %vm986, %v985, %v936
        %vm988 = vcmask 31744
        %v989 = vsel %vm988, %v936, %v940
        %vm990 = vcmask 211968
        %v991 = vsel %vm990, %v989, %v944
        %vm992 = vcmask 392192
        %v993 = vsel %vm992, %v991, %v948
        %vm994 = vcmask 572416
        %v995 = vsel %vm994, %v993, %v952
        %vm996 = vcmask 752640
        %v997 = vsel %vm996, %v995, %v956
        %vm998 = vcmask 932864
        %v999 = vsel %vm998, %v997, %v960
        %vm1000 = vcmask 64512
        %v1001 = vsel %vm1000, %v960, %v964
        %vm1002 = vcmask 244736
        %v1003 = vsel %vm1002, %v1001, %v968
        %vm1004 = vcmask 424960
        %v1005 = vsel %vm1004, %v1003, %v972
        %vm1006 = vcmask 605184
        %v1007 = vsel %vm1006, %v1005, %v976
        %1009 = vrot.lane.b32.xlu0 %v892, 22
        %v1010 = vpop.permute.xlu0 %1009
        %1013 = vrot.lane.b32.xlu0 %v919, 44
        %v1014 = vpop.permute.xlu0 %1013
        %1016 = vrot.lane.b32.xlu0 %v892, 66
        %v1017 = vpop.permute.xlu0 %1016
        %1020 = vrot.lane.b32.xlu0 %v865, 88
        %v1021 = vpop.permute.xlu0 %1020
        %1023 = vrot.lane.b32.xlu0 %v838, 110
        %v1024 = vpop.permute.xlu0 %1023
        %v1026 = vsel %vm978, %v865, %v1010
        %v1027 = vsel %vm980, %v1026, %v1014
        %v1028 = vsel %vm982, %v1027, %v1017
        %v1029 = vsel %vm984, %v1028, %v1021
        %v1030 = vsel %vm986, %v1029, %v1024
        %1032 = vrot.lane.b32.xlu0 %v1030, 96
        %v1033 = vpop.permute.xlu0 %1032
        %1034 = vrot.lane.b32.xlu0 %v1024, 96
        %v1035 = vpop.permute.xlu0 %1034
        %vm1036 = vcmask 785408
        %v1037 = vsel %vm1036, %v1033, %v1035
        %v1040 = vsel %vm1036, %v1007, %v1033
        %1042 = vrot.lane.b32.xlu0 %v987, 100
        %v1043 = vpop.permute.xlu0 %1042
        %vm1045 = vcmask 818176
        %v1046 = vsel %vm1045, %v1037, %v1043
        %v1049 = vrot.slane %v987, 6
        %v1050 = vrot.slane %v999, 6
        %v1051 = vrot.slane %v1040, 6
        %1052 = vrot.lane.b32.xlu0 %v1049, 127
        %v1053 = vpop.permute.xlu0 %1052
        %1054 = vrot.lane.b32.xlu0 %v1050, 127
        %v1055 = vpop.permute.xlu0 %1054
        %1056 = vrot.lane.b32.xlu0 %v1051, 127
        %v1057 = vpop.permute.xlu0 %1056
        %vm1058 = vcmask 1039360
        %v1059 = vsel %vm1058, %v1053, %v1055
        %v1060 = vsel %vm1058, %v1055, %v1057
        %v1064 = vrot.slane %v987, 4
        %v1065 = vrot.slane %v999, 4
        %v1066 = vrot.slane %v1040, 4
        %1067 = vrot.lane.b32.xlu0 %v1064, 126
        %v1068 = vpop.permute.xlu0 %1067
        %1069 = vrot.lane.b32.xlu0 %v1065, 126
        %v1070 = vpop.permute.xlu0 %1069
        %1071 = vrot.lane.b32.xlu0 %v1066, 126
        %v1072 = vpop.permute.xlu0 %1071
        %vm1073 = vcmask 1031168
        %v1074 = vsel %vm1073, %v1068, %v1070
        %v1075 = vsel %vm1073, %v1070, %v1072
        %v1079 = vrot.slane %v987, 2
        %v1080 = vrot.slane %v999, 2
        %v1081 = vrot.slane %v1040, 2
        %1082 = vrot.lane.b32.xlu0 %v1079, 125
        %v1083 = vpop.permute.xlu0 %1082
        %1084 = vrot.lane.b32.xlu0 %v1080, 125
        %v1085 = vpop.permute.xlu0 %1084
        %1086 = vrot.lane.b32.xlu0 %v1081, 125
        %v1087 = vpop.permute.xlu0 %1086
        %vm1088 = vcmask 1022976
        %v1089 = vsel %vm1088, %v1083, %v1085
        %v1090 = vsel %vm1088, %v1085, %v1087
        %1094 = vrot.lane.b32.xlu0 %v987, 124
        %v1095 = vpop.permute.xlu0 %1094
        %1096 = vrot.lane.b32.xlu0 %v999, 124
        %v1097 = vpop.permute.xlu0 %1096
        %1098 = vrot.lane.b32.xlu0 %v1040, 124
        %v1099 = vpop.permute.xlu0 %1098
        %vm1100 = vcmask 1014784
        %v1101 = vsel %vm1100, %v1095, %v1097
        %v1102 = vsel %vm1100, %v1097, %v1099
        %1106 = vrot.lane.b32.xlu0 %v1049, 123
        %v1107 = vpop.permute.xlu0 %1106
        %1108 = vrot.lane.b32.xlu0 %v1050, 123
        %v1109 = vpop.permute.xlu0 %1108
        %1110 = vrot.lane.b32.xlu0 %v1051, 123
        %v1111 = vpop.permute.xlu0 %1110
        %vm1112 = vcmask 1006592
        %v1113 = vsel %vm1112, %v1107, %v1109
        %v1114 = vsel %vm1112, %v1109, %v1111
        %1118 = vrot.lane.b32.xlu0 %v1064, 122
        %v1119 = vpop.permute.xlu0 %1118
        %1120 = vrot.lane.b32.xlu0 %v1065, 122
        %v1121 = vpop.permute.xlu0 %1120
        %1122 = vrot.lane.b32.xlu0 %v1066, 122
        %v1123 = vpop.permute.xlu0 %1122
        %vm1124 = vcmask 998400
        %v1125 = vsel %vm1124, %v1119, %v1121
        %v1126 = vsel %vm1124, %v1121, %v1123
        %1130 = vrot.lane.b32.xlu0 %v1079, 106
        %v1131 = vpop.permute.xlu0 %1130
        %1132 = vrot.lane.b32.xlu0 %v1080, 106
        %v1133 = vpop.permute.xlu0 %1132
        %1134 = vrot.lane.b32.xlu0 %v1081, 106
        %v1135 = vpop.permute.xlu0 %1134
        %vm1136 = vcmask 867328
        %v1137 = vsel %vm1136, %v1131, %v1133
        %v1138 = vsel %vm1136, %v1133, %v1135
        %1142 = vrot.lane.b32.xlu0 %v987, 105
        %v1143 = vpop.permute.xlu0 %1142
        %1144 = vrot.lane.b32.xlu0 %v999, 105
        %v1145 = vpop.permute.xlu0 %1144
        %1146 = vrot.lane.b32.xlu0 %v1040, 105
        %v1147 = vpop.permute.xlu0 %1146
        %vm1148 = vcmask 859136
        %v1149 = vsel %vm1148, %v1143, %v1145
        %v1150 = vsel %vm1148, %v1145, %v1147
        %1154 = vrot.lane.b32.xlu0 %v1049, 104
        %v1155 = vpop.permute.xlu0 %1154
        %1156 = vrot.lane.b32.xlu0 %v1050, 104
        %v1157 = vpop.permute.xlu0 %1156
        %1158 = vrot.lane.b32.xlu0 %v1051, 104
        %v1159 = vpop.permute.xlu0 %1158
        %vm1160 = vcmask 850944
        %v1161 = vsel %vm1160, %v1155, %v1157
        %v1162 = vsel %vm1160, %v1157, %v1159
        %1166 = vrot.lane.b32.xlu0 %v1064, 103
        %v1167 = vpop.permute.xlu0 %1166
        %1168 = vrot.lane.b32.xlu0 %v1065, 103
        %v1169 = vpop.permute.xlu0 %1168
        %1170 = vrot.lane.b32.xlu0 %v1066, 103
        %v1171 = vpop.permute.xlu0 %1170
        %vm1172 = vcmask 842752
        %v1173 = vsel %vm1172, %v1167, %v1169
        %v1174 = vsel %vm1172, %v1169, %v1171
        %1178 = vrot.lane.b32.xlu0 %v1079, 102
        %v1179 = vpop.permute.xlu0 %1178
        %1180 = vrot.lane.b32.xlu0 %v1080, 102
        %v1181 = vpop.permute.xlu0 %1180
        %1182 = vrot.lane.b32.xlu0 %v1081, 102
        %v1183 = vpop.permute.xlu0 %1182
        %vm1184 = vcmask 834560
        %v1185 = vsel %vm1184, %v1179, %v1181
        %v1186 = vsel %vm1184, %v1181, %v1183
        %1190 = vrot.lane.b32.xlu0 %v987, 101
        %v1191 = vpop.permute.xlu0 %1190
        %1192 = vrot.lane.b32.xlu0 %v999, 101
        %v1193 = vpop.permute.xlu0 %1192
        %1194 = vrot.lane.b32.xlu0 %v1040, 101
        %v1195 = vpop.permute.xlu0 %1194
        %vm1196 = vcmask 826368
        %v1197 = vsel %vm1196, %v1191, %v1193
        %v1198 = vsel %vm1196, %v1193, %v1195
        %1202 = vrot.lane.b32.xlu0 %v1049, 100
        %v1203 = vpop.permute.xlu0 %1202
        %1204 = vrot.lane.b32.xlu0 %v1050, 100
        %v1205 = vpop.permute.xlu0 %1204
        %1206 = vrot.lane.b32.xlu0 %v1051, 100
        %v1207 = vpop.permute.xlu0 %1206
        %v1208 = vsel %vm1045, %v1203, %v1205
        %v1209 = vsel %vm1045, %v1205, %v1207
        %v1214 = vrot.slane %v1046, 4
        %1215 = vrot.lane.b32.xlu0 %v1064, 84
        %v1216 = vpop.permute.xlu0 %1215
        %1217 = vrot.lane.b32.xlu0 %v1065, 84
        %v1218 = vpop.permute.xlu0 %1217
        %1219 = vrot.lane.b32.xlu0 %v1066, 84
        %v1220 = vpop.permute.xlu0 %1219
        %1221 = vrot.lane.b32.xlu0 %v1214, 84
        %v1222 = vpop.permute.xlu0 %1221
        %vm1223 = vcmask 687104
        %v1224 = vsel %vm1223, %v1216, %v1218
        %v1225 = vsel %vm1223, %v1218, %v1220
        %v1226 = vsel %vm1223, %v1220, %v1222
        %v1230 = vrot.slane %v1046, 2
        %1231 = vrot.lane.b32.xlu0 %v1079, 83
        %v1232 = vpop.permute.xlu0 %1231
        %1233 = vrot.lane.b32.xlu0 %v1080, 83
        %v1234 = vpop.permute.xlu0 %1233
        %1235 = vrot.lane.b32.xlu0 %v1081, 83
        %v1236 = vpop.permute.xlu0 %1235
        %1237 = vrot.lane.b32.xlu0 %v1230, 83
        %v1238 = vpop.permute.xlu0 %1237
        %vm1239 = vcmask 678912
        %v1240 = vsel %vm1239, %v1232, %v1234
        %v1241 = vsel %vm1239, %v1234, %v1236
        %v1242 = vsel %vm1239, %v1236, %v1238
        %vm1246 = vcmask 1041408
        %v1247 = vsel %vm1246, %v987, %v1059
        %v1248 = vsel %vm1246, %v999, %v1060
        %v1249 = vsel %vm1246, %v1040, %v1057
        %vm1250 = vcmask 1043456
        %v1251 = vsel %vm1250, %v1247, %v1074
        %v1252 = vsel %vm1250, %v1248, %v1075
        %v1253 = vsel %vm1250, %v1249, %v1072
        %vm1254 = vcmask 1045504
        %v1255 = vsel %vm1254, %v1251, %v1089
        %v1256 = vsel %vm1254, %v1252, %v1090
        %v1257 = vsel %vm1254, %v1253, %v1087
        %v1258 = vsel %vm1246, %v1101, %v1113
        %v1259 = vsel %vm1246, %v1102, %v1114
        %v1260 = vsel %vm1246, %v1099, %v1111
        %v1261 = vsel %vm1250, %v1258, %v1125
        %v1262 = vsel %vm1250, %v1259, %v1126
        %v1263 = vsel %vm1250, %v1260, %v1123
        %v1264 = vsel %vm1254, %v1261, %v1137
        %v1265 = vsel %vm1254, %v1262, %v1138
        %v1266 = vsel %vm1254, %v1263, %v1135
        %v1267 = vsel %vm1246, %v1149, %v1161
        %v1268 = vsel %vm1246, %v1150, %v1162
        %v1269 = vsel %vm1246, %v1147, %v1159
        %v1270 = vsel %vm1250, %v1267, %v1173
        %v1271 = vsel %vm1250, %v1268, %v1174
        %v1272 = vsel %vm1250, %v1269, %v1171
        %v1273 = vsel %vm1254, %v1270, %v1185
        %v1274 = vsel %vm1254, %v1271, %v1186
        %v1275 = vsel %vm1254, %v1272, %v1183
        %v1276 = vsel %vm1246, %v1197, %v1208
        %v1277 = vsel %vm1246, %v1198, %v1209
        %v1278 = vsel %vm1246, %v1195, %v1207
        %v1279 = vsel %vm1250, %v1276, %v1224
        %v1280 = vsel %vm1250, %v1277, %v1225
        %v1281 = vsel %vm1250, %v1278, %v1226
        %v1282 = vsel %vm1254, %v1279, %v1240
        %v1283 = vsel %vm1254, %v1280, %v1241
        %v1284 = vsel %vm1254, %v1281, %v1242
        %v1285 = vrot.slane %v1046, 6
        %1286 = vrot.lane.b32.xlu0 %v1285, 127
        %v1287 = vpop.permute.xlu0 %1286
        %v1288 = vsel %vm1058, %v1057, %v1287
        %1291 = vrot.lane.b32.xlu0 %v1214, 126
        %v1292 = vpop.permute.xlu0 %1291
        %v1293 = vsel %vm1073, %v1072, %v1292
        %1296 = vrot.lane.b32.xlu0 %v1230, 125
        %v1297 = vpop.permute.xlu0 %1296
        %v1298 = vsel %vm1088, %v1087, %v1297
        %1301 = vrot.lane.b32.xlu0 %v1046, 124
        %v1302 = vpop.permute.xlu0 %1301
        %v1303 = vsel %vm1100, %v1099, %v1302
        %1306 = vrot.lane.b32.xlu0 %v1049, 108
        %v1307 = vpop.permute.xlu0 %1306
        %1308 = vrot.lane.b32.xlu0 %v1050, 108
        %v1309 = vpop.permute.xlu0 %1308
        %1310 = vrot.lane.b32.xlu0 %v1051, 108
        %v1311 = vpop.permute.xlu0 %1310
        %1312 = vrot.lane.b32.xlu0 %v1285, 108
        %v1313 = vpop.permute.xlu0 %1312
        %vm1314 = vcmask 883712
        %v1315 = vsel %vm1314, %v1307, %v1309
        %v1316 = vsel %vm1314, %v1309, %v1311
        %v1317 = vsel %vm1314, %v1311, %v1313
        %1322 = vrot.lane.b32.xlu0 %v1064, 107
        %v1323 = vpop.permute.xlu0 %1322
        %1324 = vrot.lane.b32.xlu0 %v1065, 107
        %v1325 = vpop.permute.xlu0 %1324
        %1326 = vrot.lane.b32.xlu0 %v1066, 107
        %v1327 = vpop.permute.xlu0 %1326
        %1328 = vrot.lane.b32.xlu0 %v1214, 107
        %v1329 = vpop.permute.xlu0 %1328
        %vm1330 = vcmask 875520
        %v1331 = vsel %vm1330, %v1323, %v1325
        %v1332 = vsel %vm1330, %v1325, %v1327
        %v1333 = vsel %vm1330, %v1327, %v1329
        %1338 = vrot.lane.b32.xlu0 %v1230, 106
        %v1339 = vpop.permute.xlu0 %1338
        %v1340 = vsel %vm1136, %v1135, %v1339
        %1343 = vrot.lane.b32.xlu0 %v1046, 105
        %v1344 = vpop.permute.xlu0 %1343
        %v1345 = vsel %vm1148, %v1147, %v1344
        %1348 = vrot.lane.b32.xlu0 %v1285, 104
        %v1349 = vpop.permute.xlu0 %1348
        %v1350 = vsel %vm1160, %v1159, %v1349
        %1353 = vrot.lane.b32.xlu0 %v1214, 103
        %v1354 = vpop.permute.xlu0 %1353
        %v1355 = vsel %vm1172, %v1171, %v1354
        %1358 = vrot.lane.b32.xlu0 %v1230, 102
        %v1359 = vpop.permute.xlu0 %1358
        %v1360 = vsel %vm1184, %v1183, %v1359
        %1363 = vrot.lane.b32.xlu0 %v987, 86
        %v1364 = vpop.permute.xlu0 %1363
        %1365 = vrot.lane.b32.xlu0 %v999, 86
        %v1366 = vpop.permute.xlu0 %1365
        %1367 = vrot.lane.b32.xlu0 %v1040, 86
        %v1368 = vpop.permute.xlu0 %1367
        %1369 = vrot.lane.b32.xlu0 %v1046, 86
        %v1370 = vpop.permute.xlu0 %1369
        %vm1371 = vcmask 703488
        %v1372 = vsel %vm1371, %v1364, %v1366
        %v1373 = vsel %vm1371, %v1366, %v1368
        %v1374 = vsel %vm1371, %v1368, %v1370
        %1379 = vrot.lane.b32.xlu0 %v1049, 85
        %v1380 = vpop.permute.xlu0 %1379
        %1381 = vrot.lane.b32.xlu0 %v1050, 85
        %v1382 = vpop.permute.xlu0 %1381
        %1383 = vrot.lane.b32.xlu0 %v1051, 85
        %v1384 = vpop.permute.xlu0 %1383
        %1385 = vrot.lane.b32.xlu0 %v1285, 85
        %v1386 = vpop.permute.xlu0 %1385
        %vm1387 = vcmask 695296
        %v1388 = vsel %vm1387, %v1380, %v1382
        %v1389 = vsel %vm1387, %v1382, %v1384
        %v1390 = vsel %vm1387, %v1384, %v1386
        %v1397 = vsel %vm1246, %v1040, %v1288
        %v1398 = vsel %vm1246, %v1046, %v1287
        %v1399 = vsel %vm1250, %v1397, %v1293
        %v1400 = vsel %vm1250, %v1398, %v1292
        %v1401 = vsel %vm1254, %v1399, %v1298
        %v1402 = vsel %vm1254, %v1400, %v1297
        %v1403 = vsel %vm1246, %v1101, %v1315
        %v1404 = vsel %vm1246, %v1102, %v1316
        %v1405 = vsel %vm1246, %v1303, %v1317
        %v1406 = vsel %vm1246, %v1302, %v1313
        %v1407 = vsel %vm1250, %v1403, %v1331
        %v1408 = vsel %vm1250, %v1404, %v1332
        %v1409 = vsel %vm1250, %v1405, %v1333
        %v1410 = vsel %vm1250, %v1406, %v1329
        %v1411 = vsel %vm1254, %v1407, %v1137
        %v1412 = vsel %vm1254, %v1408, %v1138
        %v1413 = vsel %vm1254, %v1409, %v1340
        %v1414 = vsel %vm1254, %v1410, %v1339
        %v1415 = vsel %vm1246, %v1345, %v1350
        %v1416 = vsel %vm1246, %v1344, %v1349
        %v1417 = vsel %vm1250, %v1415, %v1355
        %v1418 = vsel %vm1250, %v1416, %v1354
        %v1419 = vsel %vm1254, %v1417, %v1360
        %v1420 = vsel %vm1254, %v1418, %v1359
        %v1421 = vsel %vm1246, %v1372, %v1388
        %v1422 = vsel %vm1246, %v1373, %v1389
        %v1423 = vsel %vm1246, %v1374, %v1390
        %v1424 = vsel %vm1246, %v1370, %v1386
        %v1425 = vsel %vm1250, %v1421, %v1224
        %v1426 = vsel %vm1250, %v1422, %v1225
        %v1427 = vsel %vm1250, %v1423, %v1226
        %v1428 = vsel %vm1250, %v1424, %v1222
        %v1429 = vsel %vm1254, %v1425, %v1240
        %v1430 = vsel %vm1254, %v1426, %v1241
        %v1431 = vsel %vm1254, %v1427, %v1242
        %v1432 = vsel %vm1254, %v1428, %v1238
        %1433 = vrot.lane.b32.xlu0 %v1079, 110
        %v1434 = vpop.permute.xlu0 %1433
        %1435 = vrot.lane.b32.xlu0 %v1080, 110
        %v1436 = vpop.permute.xlu0 %1435
        %1437 = vrot.lane.b32.xlu0 %v1081, 110
        %v1438 = vpop.permute.xlu0 %1437
        %1439 = vrot.lane.b32.xlu0 %v1230, 110
        %v1440 = vpop.permute.xlu0 %1439
        %v1441 = vsel %vm986, %v1434, %v1436
        %v1442 = vsel %vm986, %v1436, %v1438
        %v1443 = vsel %vm986, %v1438, %v1440
        %1448 = vrot.lane.b32.xlu0 %v987, 109
        %v1449 = vpop.permute.xlu0 %1448
        %1450 = vrot.lane.b32.xlu0 %v999, 109
        %v1451 = vpop.permute.xlu0 %1450
        %1452 = vrot.lane.b32.xlu0 %v1040, 109
        %v1453 = vpop.permute.xlu0 %1452
        %1454 = vrot.lane.b32.xlu0 %v1046, 109
        %v1455 = vpop.permute.xlu0 %1454
        %vm1456 = vcmask 891904
        %v1457 = vsel %vm1456, %v1449, %v1451
        %v1458 = vsel %vm1456, %v1451, %v1453
        %v1459 = vsel %vm1456, %v1453, %v1455
        %1464 = vrot.lane.b32.xlu0 %v1065, 88
        %v1465 = vpop.permute.xlu0 %1464
        %1466 = vrot.lane.b32.xlu0 %v1066, 88
        %v1467 = vpop.permute.xlu0 %1466
        %1468 = vrot.lane.b32.xlu0 %v1214, 88
        %v1469 = vpop.permute.xlu0 %1468
        %v1470 = vsel %vm984, %v1465, %v1467
        %v1471 = vsel %vm984, %v1467, %v1469
        %1476 = vrot.lane.b32.xlu0 %v1080, 87
        %v1477 = vpop.permute.xlu0 %1476
        %1478 = vrot.lane.b32.xlu0 %v1081, 87
        %v1479 = vpop.permute.xlu0 %1478
        %1480 = vrot.lane.b32.xlu0 %v1230, 87
        %v1481 = vpop.permute.xlu0 %1480
        %vm1482 = vcmask 711680
        %v1483 = vsel %vm1482, %v1477, %v1479
        %v1484 = vsel %vm1482, %v1479, %v1481
        %v1493 = vsel %vm1254, %v1251, %v1441
        %v1494 = vsel %vm1254, %v1252, %v1442
        %v1495 = vsel %vm1254, %v1399, %v1443
        %v1496 = vsel %vm1254, %v1400, %v1440
        %v1497 = vsel %vm1246, %v1457, %v1315
        %v1498 = vsel %vm1246, %v1458, %v1316
        %v1499 = vsel %vm1246, %v1459, %v1317
        %v1500 = vsel %vm1246, %v1455, %v1313
        %v1501 = vsel %vm1250, %v1497, %v1331
        %v1502 = vsel %vm1250, %v1498, %v1332
        %v1503 = vsel %vm1250, %v1499, %v1333
        %v1504 = vsel %vm1250, %v1500, %v1329
        %v1505 = vsel %vm1254, %v1501, %v1137
        %v1506 = vsel %vm1254, %v1502, %v1138
        %v1507 = vsel %vm1254, %v1503, %v1340
        %v1508 = vsel %vm1254, %v1504, %v1339
        %v1509 = vsel %vm1250, %v1267, %v1465
        %v1510 = vsel %vm1250, %v1268, %v1470
        %v1511 = vsel %vm1250, %v1415, %v1471
        %v1512 = vsel %vm1250, %v1416, %v1469
        %v1513 = vsel %vm1254, %v1509, %v1477
        %v1514 = vsel %vm1254, %v1510, %v1483
        %v1515 = vsel %vm1254, %v1511, %v1484
        %v1516 = vsel %vm1254, %v1512, %v1481
        %v1517 = vsel %vm1246, %v1366, %v1382
        %v1518 = vsel %vm1250, %v1517, %v1218
        %v1519 = vsel %vm1254, %v1518, %v1234
        %1536 = vrot.lane.b32.xlu0 %v1255, 82
        %v1537 = vpop.permute.xlu0 %1536
        %1538 = vrot.lane.b32.xlu0 %v1256, 82
        %v1539 = vpop.permute.xlu0 %1538
        %1540 = vrot.lane.b32.xlu0 %v1401, 82
        %v1541 = vpop.permute.xlu0 %1540
        %1542 = vrot.lane.b32.xlu0 %v1402, 82
        %v1543 = vpop.permute.xlu0 %1542
        %1544 = vrot.lane.b32.xlu0 %v1411, 82
        %v1545 = vpop.permute.xlu0 %1544
        %1546 = vrot.lane.b32.xlu0 %v1412, 82
        %v1547 = vpop.permute.xlu0 %1546
        %1548 = vrot.lane.b32.xlu0 %v1413, 82
        %v1549 = vpop.permute.xlu0 %1548
        %1550 = vrot.lane.b32.xlu0 %v1414, 82
        %v1551 = vpop.permute.xlu0 %1550
        %1552 = vrot.lane.b32.xlu0 %v1273, 82
        %v1553 = vpop.permute.xlu0 %1552
        %1554 = vrot.lane.b32.xlu0 %v1274, 82
        %v1555 = vpop.permute.xlu0 %1554
        %1556 = vrot.lane.b32.xlu0 %v1419, 82
        %v1557 = vpop.permute.xlu0 %1556
        %1558 = vrot.lane.b32.xlu0 %v1420, 82
        %v1559 = vpop.permute.xlu0 %1558
        %1560 = vrot.lane.b32.xlu0 %v1429, 82
        %v1561 = vpop.permute.xlu0 %1560
        %1562 = vrot.lane.b32.xlu0 %v1430, 82
        %v1563 = vpop.permute.xlu0 %1562
        %1564 = vrot.lane.b32.xlu0 %v1431, 82
        %v1565 = vpop.permute.xlu0 %1564
        %1566 = vrot.lane.b32.xlu0 %v1432, 82
        %v1567 = vpop.permute.xlu0 %1566
        %vm1568 = vcmask 670720
        %v1569 = vsel %vm1568, %v1537, %v1539
        %v1570 = vsel %vm1568, %v1539, %v1541
        %v1571 = vsel %vm1568, %v1541, %v1543
        %v1572 = vsel %vm1568, %v1545, %v1547
        %v1573 = vsel %vm1568, %v1547, %v1549
        %v1574 = vsel %vm1568, %v1549, %v1551
        %v1575 = vsel %vm1568, %v1553, %v1555
        %v1576 = vsel %vm1568, %v1555, %v1557
        %v1577 = vsel %vm1568, %v1557, %v1559
        %v1578 = vsel %vm1568, %v1561, %v1563
        %v1579 = vsel %vm1568, %v1563, %v1565
        %v1580 = vsel %vm1568, %v1565, %v1567
        %1606 = vrot.lane.b32.xlu0 %v1493, 36
        %v1607 = vpop.permute.xlu0 %1606
        %1608 = vrot.lane.b32.xlu0 %v1494, 36
        %v1609 = vpop.permute.xlu0 %1608
        %1610 = vrot.lane.b32.xlu0 %v1495, 36
        %v1611 = vpop.permute.xlu0 %1610
        %1612 = vrot.lane.b32.xlu0 %v1496, 36
        %v1613 = vpop.permute.xlu0 %1612
        %1614 = vrot.lane.b32.xlu0 %v1505, 36
        %v1615 = vpop.permute.xlu0 %1614
        %1616 = vrot.lane.b32.xlu0 %v1506, 36
        %v1617 = vpop.permute.xlu0 %1616
        %1618 = vrot.lane.b32.xlu0 %v1507, 36
        %v1619 = vpop.permute.xlu0 %1618
        %1620 = vrot.lane.b32.xlu0 %v1508, 36
        %v1621 = vpop.permute.xlu0 %1620
        %1622 = vrot.lane.b32.xlu0 %v1513, 36
        %v1623 = vpop.permute.xlu0 %1622
        %1624 = vrot.lane.b32.xlu0 %v1514, 36
        %v1625 = vpop.permute.xlu0 %1624
        %1626 = vrot.lane.b32.xlu0 %v1515, 36
        %v1627 = vpop.permute.xlu0 %1626
        %1628 = vrot.lane.b32.xlu0 %v1516, 36
        %v1629 = vpop.permute.xlu0 %1628
        %1630 = vrot.lane.b32.xlu0 %v1519, 36
        %v1631 = vpop.permute.xlu0 %1630
        %1632 = vrot.lane.b32.xlu0 %v1430, 36
        %v1633 = vpop.permute.xlu0 %1632
        %1634 = vrot.lane.b32.xlu0 %v1431, 36
        %v1635 = vpop.permute.xlu0 %1634
        %1636 = vrot.lane.b32.xlu0 %v1432, 36
        %v1637 = vpop.permute.xlu0 %1636
        %vm1638 = vcmask 293888
        %v1639 = vsel %vm1638, %v1607, %v1609
        %v1640 = vsel %vm1638, %v1609, %v1611
        %v1641 = vsel %vm1638, %v1611, %v1613
        %v1642 = vsel %vm1638, %v1615, %v1617
        %v1643 = vsel %vm1638, %v1617, %v1619
        %v1644 = vsel %vm1638, %v1619, %v1621
        %v1645 = vsel %vm1638, %v1623, %v1625
        %v1646 = vsel %vm1638, %v1625, %v1627
        %v1647 = vsel %vm1638, %v1627, %v1629
        %v1648 = vsel %vm1638, %v1631, %v1633
        %v1649 = vsel %vm1638, %v1633, %v1635
        %v1650 = vsel %vm1638, %v1635, %v1637
        %1663 = vrot.lane.b32.xlu0 %v999, 118
        %v1664 = vpop.permute.xlu0 %1663
        %1665 = vrot.lane.b32.xlu0 %v1040, 118
        %v1666 = vpop.permute.xlu0 %1665
        %1667 = vrot.lane.b32.xlu0 %v1046, 118
        %v1668 = vpop.permute.xlu0 %1667
        %vm1669 = vcmask 965632
        %v1670 = vsel %vm1669, %v1664, %v1666
        %v1671 = vsel %vm1669, %v1666, %v1668
        %vm1672 = vcmask 801792
        %v1674 = vsel %vm1672, %v477, 0
        %v1677 = vsel %vm1672, %v478, 0
        %v1679 = vsel %vm1246, %v1670, 0
        %v1681 = vsel %vm1246, %v1671, 0
        %v1683 = vsel %vm1246, %v1668, 0
        %1685 = vmatpush.msra.mxu0 0.0
        %1686 = vmatpush.msra.mxu0 0.0
        %1687 = vmatpush.msra.mxu0 0.0
        %1688 = vmatpush.msra.mxu0 %v1679
        %1689 = vmatpush.msra.mxu0 %v1648
        %1690 = vmatpush.msra.mxu0 %v1645
        %1691 = vmatpush.msra.mxu0 %v1642
        %1692 = vmatpush.msra.mxu0 %v1639
        %1693 = vmatpush.msra.mxu0 %v1578
        %1694 = vmatpush.msra.mxu0 %v1575
        %1695 = vmatpush.msra.mxu0 %v1572
        %1696 = vmatpush.msra.mxu0 %v1569
        %1697 = vmatpush.msra.mxu0 %v1282
        %1698 = vmatpush.msra.mxu0 %v1273
        %1699 = vmatpush.msra.mxu0 %v1264
        %1700 = vmatpush.msra.mxu0 %v1255
        %1701 = vmatmul.f32.gmra.mxu0 %v1674
        %v1702 = vpop.f32.mrf.mxu0
        %v1703 = vadd.f32 0.0, %v1702
        %1704 = vmatmul.f32.gmra.mxu0 %v1677
        %v1705 = vpop.f32.mrf.mxu0
        %v1706 = vadd.f32 0.0, %v1705
        %1707 = vdwg.mxu0
        %1708 = vmatpush.msra.mxu0 0.0
        %1709 = vmatpush.msra.mxu0 0.0
        %1710 = vmatpush.msra.mxu0 0.0
        %1711 = vmatpush.msra.mxu0 %v1681
        %1712 = vmatpush.msra.mxu0 %v1649
        %1713 = vmatpush.msra.mxu0 %v1646
        %1714 = vmatpush.msra.mxu0 %v1643
        %1715 = vmatpush.msra.mxu0 %v1640
        %1716 = vmatpush.msra.mxu0 %v1579
        %1717 = vmatpush.msra.mxu0 %v1576
        %1718 = vmatpush.msra.mxu0 %v1573
        %1719 = vmatpush.msra.mxu0 %v1570
        %1720 = vmatpush.msra.mxu0 %v1283
        %1721 = vmatpush.msra.mxu0 %v1274
        %1722 = vmatpush.msra.mxu0 %v1265
        %1723 = vmatpush.msra.mxu0 %v1256
        %1724 = vmatmul.f32.gmra.mxu0 %v1674
        %v1725 = vpop.f32.mrf.mxu0
        %v1726 = vadd.f32 0.0, %v1725
        %1727 = vmatmul.f32.gmra.mxu0 %v1677
        %v1728 = vpop.f32.mrf.mxu0
        %v1729 = vadd.f32 0.0, %v1728
        %1730 = vdwg.mxu0
        %1731 = vmatpush.msra.mxu0 0.0
        %1732 = vmatpush.msra.mxu0 0.0
        %1733 = vmatpush.msra.mxu0 0.0
        %1734 = vmatpush.msra.mxu0 %v1683
        %1735 = vmatpush.msra.mxu0 %v1650
        %1736 = vmatpush.msra.mxu0 %v1647
        %1737 = vmatpush.msra.mxu0 %v1644
        %1738 = vmatpush.msra.mxu0 %v1641
        %1739 = vmatpush.msra.mxu0 %v1580
        %1740 = vmatpush.msra.mxu0 %v1577
        %1741 = vmatpush.msra.mxu0 %v1574
        %1742 = vmatpush.msra.mxu0 %v1571
        %1743 = vmatpush.msra.mxu0 %v1284
        %1744 = vmatpush.msra.mxu0 %v1275
        %1745 = vmatpush.msra.mxu0 %v1266
        %1746 = vmatpush.msra.mxu0 %v1257
        %1747 = vmatmul.f32.gmra.mxu0 %v1674
        %v1748 = vpop.f32.mrf.mxu0
        %v1749 = vadd.f32 0.0, %v1748
        %1750 = vmatmul.f32.gmra.mxu0 %v1677
        %v1751 = vpop.f32.mrf.mxu0
        %v1752 = vadd.f32 0.0, %v1751
        %1753 = vdwg.mxu0
        %vm1754 = vcmp.ge.f32.partialorder %v1703, 0.0
        %vm1755 = vcmp.ge.f32.partialorder %v1726, 0.0
        %vm1756 = vcmp.ge.f32.partialorder %v1749, 0.0
        %vm1757 = vcmp.ge.f32.partialorder %v1706, 0.0
        %vm1758 = vcmp.ge.f32.partialorder %v1729, 0.0
        %vm1759 = vcmp.ge.f32.partialorder %v1752, 0.0
        %v1760 = vstv %s479
        %v1761 = vmul.f32 %v1760, %v1703
        %v1762 = vmul.f32 %v1760, %v1726
        %v1763 = vmul.f32 %v1760, %v1749
        %v1764 = vmul.f32 %v1760, %v1706
        %v1765 = vmul.f32 %v1760, %v1729
        %v1766 = vmul.f32 %v1760, %v1752
        %v1767 = vsel %vm1754, %v1703, %v1761
        %v1768 = vsel %vm1755, %v1726, %v1762
        %v1769 = vsel %vm1756, %v1749, %v1763
        %v1770 = vsel %vm1757, %v1706, %v1764
        %v1771 = vsel %vm1758, %v1729, %v1765
        %v1772 = vsel %vm1759, %v1752, %v1766
        %v1773 = vld [vmem:[#allocation11] sm:$0xff]
        %v1774 = vld [vmem:[#allocation11 + $0x8] sm:$0xff]
        %v1775 = vld [vmem:[#allocation11 + $0x10] sm:$0xff]
        %v1776 = vld [vmem:[#allocation11 + $0x18] sm:$0xff]
        %s1777 = sld [smem:[#allocation14 + $0x1]]
        %1780 = vrot.lane.b32.xlu0 %v1767, 127
        %v1781 = vpop.permute.xlu0 %1780
        %1782 = vrot.lane.b32.xlu0 %v1770, 127
        %v1783 = vpop.permute.xlu0 %1782
        %1786 = vrot.lane.b32.xlu0 %v1767, 1
        %v1787 = vpop.permute.xlu0 %1786
        %1788 = vrot.lane.b32.xlu0 %v1770, 1
        %v1789 = vpop.permute.xlu0 %1788
        %1792 = vrot.lane.b32.xlu0 %v1767, 3
        %v1793 = vpop.permute.xlu0 %1792
        %1794 = vrot.lane.b32.xlu0 %v1770, 3
        %v1795 = vpop.permute.xlu0 %1794
        %v1798 = vsel %vm502, %v1781, %v1787
        %v1799 = vsel %vm502, %v1783, %v1789
        %vm1800 = vcmask 138240
        %v1801 = vsel %vm1800, %v1798, %v1793
        %v1802 = vsel %vm1800, %v1799, %v1795
        %1803 = vrot.lane.b32.xlu0 %v1767, 105
        %v1804 = vpop.permute.xlu0 %1803
        %1805 = vrot.lane.b32.xlu0 %v1770, 105
        %v1806 = vpop.permute.xlu0 %1805
        %1809 = vrot.lane.b32.xlu0 %v1767, 107
        %v1810 = vpop.permute.xlu0 %1809
        %1811 = vrot.lane.b32.xlu0 %v1770, 107
        %v1812 = vpop.permute.xlu0 %1811
        %1815 = vrot.lane.b32.xlu0 %v1767, 109
        %v1816 = vpop.permute.xlu0 %1815
        %1817 = vrot.lane.b32.xlu0 %v1770, 109
        %v1818 = vpop.permute.xlu0 %1817
        %v1821 = vsel %vm502, %v1804, %v1810
        %v1822 = vsel %vm502, %v1806, %v1812
        %v1823 = vsel %vm1800, %v1821, %v1816
        %v1824 = vsel %vm1800, %v1822, %v1818
        %1825 = vrot.lane.b32.xlu0 %v1767, 83
        %v1826 = vpop.permute.xlu0 %1825
        %1827 = vrot.lane.b32.xlu0 %v1770, 83
        %v1828 = vpop.permute.xlu0 %1827
        %1831 = vrot.lane.b32.xlu0 %v1767, 85
        %v1832 = vpop.permute.xlu0 %1831
        %1833 = vrot.lane.b32.xlu0 %v1770, 85
        %v1834 = vpop.permute.xlu0 %1833
        %1837 = vrot.lane.b32.xlu0 %v1767, 87
        %v1838 = vpop.permute.xlu0 %1837
        %1839 = vrot.lane.b32.xlu0 %v1770, 87
        %v1840 = vpop.permute.xlu0 %1839
        %v1843 = vsel %vm502, %v1826, %v1832
        %v1844 = vsel %vm502, %v1828, %v1834
        %v1845 = vsel %vm1800, %v1843, %v1838
        %v1846 = vsel %vm1800, %v1844, %v1840
        %1847 = vrot.lane.b32.xlu0 %v1767, 61
        %v1848 = vpop.permute.xlu0 %1847
        %1849 = vrot.lane.b32.xlu0 %v1770, 61
        %v1850 = vpop.permute.xlu0 %1849
        %1853 = vrot.lane.b32.xlu0 %v1767, 63
        %v1854 = vpop.permute.xlu0 %1853
        %1855 = vrot.lane.b32.xlu0 %v1770, 63
        %v1856 = vpop.permute.xlu0 %1855
        %1859 = vrot.lane.b32.xlu0 %v1767, 65
        %v1860 = vpop.permute.xlu0 %1859
        %1861 = vrot.lane.b32.xlu0 %v1770, 65
        %v1862 = vpop.permute.xlu0 %1861
        %v1865 = vsel %vm502, %v1848, %v1854
        %v1866 = vsel %vm502, %v1850, %v1856
        %v1867 = vsel %vm1800, %v1865, %v1860
        %v1868 = vsel %vm1800, %v1866, %v1862
        %1869 = vrot.lane.b32.xlu0 %v1767, 39
        %v1870 = vpop.permute.xlu0 %1869
        %1871 = vrot.lane.b32.xlu0 %v1770, 39
        %v1872 = vpop.permute.xlu0 %1871
        %1875 = vrot.lane.b32.xlu0 %v1767, 41
        %v1876 = vpop.permute.xlu0 %1875
        %1877 = vrot.lane.b32.xlu0 %v1770, 41
        %v1878 = vpop.permute.xlu0 %1877
        %1881 = vrot.lane.b32.xlu0 %v1767, 43
        %v1882 = vpop.permute.xlu0 %1881
        %1883 = vrot.lane.b32.xlu0 %v1770, 43
        %v1884 = vpop.permute.xlu0 %1883
        %v1887 = vsel %vm502, %v1870, %v1876
        %v1888 = vsel %vm502, %v1872, %v1878
        %v1889 = vsel %vm1800, %v1887, %v1882
        %v1890 = vsel %vm1800, %v1888, %v1884
        %1891 = vrot.lane.b32.xlu0 %v1767, 17
        %v1892 = vpop.permute.xlu0 %1891
        %1893 = vrot.lane.b32.xlu0 %v1770, 17
        %v1894 = vpop.permute.xlu0 %1893
        %1897 = vrot.lane.b32.xlu0 %v1767, 19
        %v1898 = vpop.permute.xlu0 %1897
        %1899 = vrot.lane.b32.xlu0 %v1770, 19
        %v1900 = vpop.permute.xlu0 %1899
        %1903 = vrot.lane.b32.xlu0 %v1767, 21
        %v1904 = vpop.permute.xlu0 %1903
        %1905 = vrot.lane.b32.xlu0 %v1770, 21
        %v1906 = vpop.permute.xlu0 %1905
        %v1909 = vsel %vm502, %v1892, %v1898
        %v1910 = vsel %vm502, %v1894, %v1900
        %v1911 = vsel %vm1800, %v1909, %v1904
        %v1912 = vsel %vm1800, %v1910, %v1906
        %1915 = vrot.lane.b32.xlu0 %v1768, 123
        %v1916 = vpop.permute.xlu0 %1915
        %1917 = vrot.lane.b32.xlu0 %v1771, 123
        %v1918 = vpop.permute.xlu0 %1917
        %1921 = vrot.lane.b32.xlu0 %v1768, 125
        %v1922 = vpop.permute.xlu0 %1921
        %1923 = vrot.lane.b32.xlu0 %v1771, 125
        %v1924 = vpop.permute.xlu0 %1923
        %1927 = vrot.lane.b32.xlu0 %v1768, 127
        %v1928 = vpop.permute.xlu0 %1927
        %1929 = vrot.lane.b32.xlu0 %v1771, 127
        %v1930 = vpop.permute.xlu0 %1929
        %v1933 = vsel %vm502, %v1916, %v1922
        %v1934 = vsel %vm502, %v1918, %v1924
        %v1935 = vsel %vm1800, %v1933, %v1928
        %v1936 = vsel %vm1800, %v1934, %v1930
        %1937 = vrot.lane.b32.xlu0 %v1768, 101
        %v1938 = vpop.permute.xlu0 %1937
        %1939 = vrot.lane.b32.xlu0 %v1771, 101
        %v1940 = vpop.permute.xlu0 %1939
        %1943 = vrot.lane.b32.xlu0 %v1768, 103
        %v1944 = vpop.permute.xlu0 %1943
        %1945 = vrot.lane.b32.xlu0 %v1771, 103
        %v1946 = vpop.permute.xlu0 %1945
        %1949 = vrot.lane.b32.xlu0 %v1768, 105
        %v1950 = vpop.permute.xlu0 %1949
        %1951 = vrot.lane.b32.xlu0 %v1771, 105
        %v1952 = vpop.permute.xlu0 %1951
        %v1955 = vsel %vm502, %v1938, %v1944
        %v1956 = vsel %vm502, %v1940, %v1946
        %v1957 = vsel %vm1800, %v1955, %v1950
        %v1958 = vsel %vm1800, %v1956, %v1952
        %1959 = vrot.lane.b32.xlu0 %v1768, 79
        %v1960 = vpop.permute.xlu0 %1959
        %1961 = vrot.lane.b32.xlu0 %v1771, 79
        %v1962 = vpop.permute.xlu0 %1961
        %1965 = vrot.lane.b32.xlu0 %v1768, 81
        %v1966 = vpop.permute.xlu0 %1965
        %1967 = vrot.lane.b32.xlu0 %v1771, 81
        %v1968 = vpop.permute.xlu0 %1967
        %1971 = vrot.lane.b32.xlu0 %v1768, 83
        %v1972 = vpop.permute.xlu0 %1971
        %1973 = vrot.lane.b32.xlu0 %v1771, 83
        %v1974 = vpop.permute.xlu0 %1973
        %v1977 = vsel %vm502, %v1960, %v1966
        %v1978 = vsel %vm502, %v1962, %v1968
        %v1979 = vsel %vm1800, %v1977, %v1972
        %v1980 = vsel %vm1800, %v1978, %v1974
        %1981 = vrot.lane.b32.xlu0 %v1768, 57
        %v1982 = vpop.permute.xlu0 %1981
        %1983 = vrot.lane.b32.xlu0 %v1771, 57
        %v1984 = vpop.permute.xlu0 %1983
        %1987 = vrot.lane.b32.xlu0 %v1768, 59
        %v1988 = vpop.permute.xlu0 %1987
        %1989 = vrot.lane.b32.xlu0 %v1771, 59
        %v1990 = vpop.permute.xlu0 %1989
        %1993 = vrot.lane.b32.xlu0 %v1768, 61
        %v1994 = vpop.permute.xlu0 %1993
        %1995 = vrot.lane.b32.xlu0 %v1771, 61
        %v1996 = vpop.permute.xlu0 %1995
        %v1999 = vsel %vm502, %v1982, %v1988
        %v2000 = vsel %vm502, %v1984, %v1990
        %v2001 = vsel %vm1800, %v1999, %v1994
        %v2002 = vsel %vm1800, %v2000, %v1996
        %2003 = vrot.lane.b32.xlu0 %v1768, 35
        %v2004 = vpop.permute.xlu0 %2003
        %2005 = vrot.lane.b32.xlu0 %v1771, 35
        %v2006 = vpop.permute.xlu0 %2005
        %2009 = vrot.lane.b32.xlu0 %v1768, 37
        %v2010 = vpop.permute.xlu0 %2009
        %2011 = vrot.lane.b32.xlu0 %v1771, 37
        %v2012 = vpop.permute.xlu0 %2011
        %2015 = vrot.lane.b32.xlu0 %v1768, 39
        %v2016 = vpop.permute.xlu0 %2015
        %2017 = vrot.lane.b32.xlu0 %v1771, 39
        %v2018 = vpop.permute.xlu0 %2017
        %v2021 = vsel %vm502, %v2004, %v2010
        %v2022 = vsel %vm502, %v2006, %v2012
        %v2023 = vsel %vm1800, %v2021, %v2016
        %v2024 = vsel %vm1800, %v2022, %v2018
        %2025 = vrot.lane.b32.xlu0 %v1768, 13
        %v2026 = vpop.permute.xlu0 %2025
        %2027 = vrot.lane.b32.xlu0 %v1771, 13
        %v2028 = vpop.permute.xlu0 %2027
        %2033 = vrot.lane.b32.xlu0 %v1768, 15
        %v2034 = vpop.permute.xlu0 %2033
        %2035 = vrot.lane.b32.xlu0 %v1769, 15
        %v2036 = vpop.permute.xlu0 %2035
        %2037 = vrot.lane.b32.xlu0 %v1771, 15
        %v2038 = vpop.permute.xlu0 %2037
        %2039 = vrot.lane.b32.xlu0 %v1772, 15
        %v2040 = vpop.permute.xlu0 %2039
        %vm2041 = vcmask 121856
        %v2042 = vsel %vm2041, %v2034, %v2036
        %v2043 = vsel %vm2041, %v2038, %v2040
        %2046 = vrot.lane.b32.xlu0 %v1769, 17
        %v2047 = vpop.permute.xlu0 %2046
        %2048 = vrot.lane.b32.xlu0 %v1772, 17
        %v2049 = vpop.permute.xlu0 %2048
        %v2052 = vsel %vm502, %v2026, %v2042
        %v2053 = vsel %vm502, %v2028, %v2043
        %v2054 = vsel %vm1800, %v2052, %v2047
        %v2055 = vsel %vm1800, %v2053, %v2049
        %2056 = vrot.lane.b32.xlu0 %v1769, 119
        %v2057 = vpop.permute.xlu0 %2056
        %2058 = vrot.lane.b32.xlu0 %v1772, 119
        %v2059 = vpop.permute.xlu0 %2058
        %2062 = vrot.lane.b32.xlu0 %v1769, 121
        %v2063 = vpop.permute.xlu0 %2062
        %2064 = vrot.lane.b32.xlu0 %v1772, 121
        %v2065 = vpop.permute.xlu0 %2064
        %2068 = vrot.lane.b32.xlu0 %v1769, 123
        %v2069 = vpop.permute.xlu0 %2068
        %2070 = vrot.lane.b32.xlu0 %v1772, 123
        %v2071 = vpop.permute.xlu0 %2070
        %v2074 = vsel %vm502, %v2057, %v2063
        %v2075 = vsel %vm502, %v2059, %v2065
        %v2076 = vsel %vm1800, %v2074, %v2069
        %v2077 = vsel %vm1800, %v2075, %v2071
        %2078 = vrot.lane.b32.xlu0 %v1769, 97
        %v2079 = vpop.permute.xlu0 %2078
        %2080 = vrot.lane.b32.xlu0 %v1772, 97
        %v2081 = vpop.permute.xlu0 %2080
        %2084 = vrot.lane.b32.xlu0 %v1769, 99
        %v2085 = vpop.permute.xlu0 %2084
        %2086 = vrot.lane.b32.xlu0 %v1772, 99
        %v2087 = vpop.permute.xlu0 %2086
        %2090 = vrot.lane.b32.xlu0 %v1769, 101
        %v2091 = vpop.permute.xlu0 %2090
        %2092 = vrot.lane.b32.xlu0 %v1772, 101
        %v2093 = vpop.permute.xlu0 %2092
        %v2096 = vsel %vm502, %v2079, %v2085
        %v2097 = vsel %vm502, %v2081, %v2087
        %v2098 = vsel %vm1800, %v2096, %v2091
        %v2099 = vsel %vm1800, %v2097, %v2093
        %2100 = vrot.lane.b32.xlu0 %v1769, 75
        %v2101 = vpop.permute.xlu0 %2100
        %2102 = vrot.lane.b32.xlu0 %v1772, 75
        %v2103 = vpop.permute.xlu0 %2102
        %2106 = vrot.lane.b32.xlu0 %v1769, 77
        %v2107 = vpop.permute.xlu0 %2106
        %2108 = vrot.lane.b32.xlu0 %v1772, 77
        %v2109 = vpop.permute.xlu0 %2108
        %2112 = vrot.lane.b32.xlu0 %v1769, 79
        %v2113 = vpop.permute.xlu0 %2112
        %2114 = vrot.lane.b32.xlu0 %v1772, 79
        %v2115 = vpop.permute.xlu0 %2114
        %v2118 = vsel %vm502, %v2101, %v2107
        %v2119 = vsel %vm502, %v2103, %v2109
        %v2120 = vsel %vm1800, %v2118, %v2113
        %v2121 = vsel %vm1800, %v2119, %v2115
        %2122 = vrot.lane.b32.xlu0 %v1769, 53
        %v2123 = vpop.permute.xlu0 %2122
        %2124 = vrot.lane.b32.xlu0 %v1772, 53
        %v2125 = vpop.permute.xlu0 %2124
        %2128 = vrot.lane.b32.xlu0 %v1769, 55
        %v2129 = vpop.permute.xlu0 %2128
        %2130 = vrot.lane.b32.xlu0 %v1772, 55
        %v2131 = vpop.permute.xlu0 %2130
        %2134 = vrot.lane.b32.xlu0 %v1769, 57
        %v2135 = vpop.permute.xlu0 %2134
        %2136 = vrot.lane.b32.xlu0 %v1772, 57
        %v2137 = vpop.permute.xlu0 %2136
        %v2140 = vsel %vm502, %v2123, %v2129
        %v2141 = vsel %vm502, %v2125, %v2131
        %v2142 = vsel %vm1800, %v2140, %v2135
        %v2143 = vsel %vm1800, %v2141, %v2137
        %2146 = vrot.lane.b32.xlu0 %v1801, 18
        %v2147 = vpop.permute.xlu0 %2146
        %2148 = vrot.lane.b32.xlu0 %v1802, 18
        %v2149 = vpop.permute.xlu0 %2148
        %2154 = vrot.lane.b32.xlu0 %v1823, 36
        %v2155 = vpop.permute.xlu0 %2154
        %2156 = vrot.lane.b32.xlu0 %v1824, 36
        %v2157 = vpop.permute.xlu0 %2156
        %2162 = vrot.lane.b32.xlu0 %v1845, 54
        %v2163 = vpop.permute.xlu0 %2162
        %2164 = vrot.lane.b32.xlu0 %v1846, 54
        %v2165 = vpop.permute.xlu0 %2164
        %2170 = vrot.lane.b32.xlu0 %v1867, 72
        %v2171 = vpop.permute.xlu0 %2170
        %2172 = vrot.lane.b32.xlu0 %v1868, 72
        %v2173 = vpop.permute.xlu0 %2172
        %2178 = vrot.lane.b32.xlu0 %v1889, 90
        %v2179 = vpop.permute.xlu0 %2178
        %2180 = vrot.lane.b32.xlu0 %v1890, 90
        %v2181 = vpop.permute.xlu0 %2180
        %2186 = vrot.lane.b32.xlu0 %v1911, 108
        %v2187 = vpop.permute.xlu0 %2186
        %2188 = vrot.lane.b32.xlu0 %v1912, 108
        %v2189 = vpop.permute.xlu0 %2188
        %2194 = vrot.lane.b32.xlu0 %v1935, 126
        %v2195 = vpop.permute.xlu0 %2194
        %2196 = vrot.lane.b32.xlu0 %v1936, 126
        %v2197 = vpop.permute.xlu0 %2196
        %2202 = vrot.lane.b32.xlu0 %v1957, 16
        %v2203 = vpop.permute.xlu0 %2202
        %2204 = vrot.lane.b32.xlu0 %v1958, 16
        %v2205 = vpop.permute.xlu0 %2204
        %2210 = vrot.lane.b32.xlu0 %v1979, 34
        %v2211 = vpop.permute.xlu0 %2210
        %2212 = vrot.lane.b32.xlu0 %v1980, 34
        %v2213 = vpop.permute.xlu0 %2212
        %2218 = vrot.lane.b32.xlu0 %v2001, 52
        %v2219 = vpop.permute.xlu0 %2218
        %2220 = vrot.lane.b32.xlu0 %v2002, 52
        %v2221 = vpop.permute.xlu0 %2220
        %2226 = vrot.lane.b32.xlu0 %v2023, 70
        %v2227 = vpop.permute.xlu0 %2226
        %2228 = vrot.lane.b32.xlu0 %v2024, 70
        %v2229 = vpop.permute.xlu0 %2228
        %2234 = vrot.lane.b32.xlu0 %v2054, 88
        %v2235 = vpop.permute.xlu0 %2234
        %2236 = vrot.lane.b32.xlu0 %v2055, 88
        %v2237 = vpop.permute.xlu0 %2236
        %2242 = vrot.lane.b32.xlu0 %v2076, 106
        %v2243 = vpop.permute.xlu0 %2242
        %2244 = vrot.lane.b32.xlu0 %v2077, 106
        %v2245 = vpop.permute.xlu0 %2244
        %2250 = vrot.lane.b32.xlu0 %v2098, 124
        %v2251 = vpop.permute.xlu0 %2250
        %2252 = vrot.lane.b32.xlu0 %v2099, 124
        %v2253 = vpop.permute.xlu0 %2252
        %2258 = vrot.lane.b32.xlu0 %v2120, 14
        %v2259 = vpop.permute.xlu0 %2258
        %2260 = vrot.lane.b32.xlu0 %v2121, 14
        %v2261 = vpop.permute.xlu0 %2260
        %vm2264 = vcmask 146432
        %v2265 = vsel %vm2264, %v1823, %v2147
        %v2266 = vsel %vm2264, %v1824, %v2149
        %v2267 = vsel %vm1638, %v2265, %v2155
        %v2268 = vsel %vm1638, %v2266, %v2157
        %vm2269 = vcmask 441344
        %v2270 = vsel %vm2269, %v2267, %v2163
        %v2271 = vsel %vm2269, %v2268, %v2165
        %vm2272 = vcmask 588800
        %v2273 = vsel %vm2272, %v2270, %v2171
        %v2274 = vsel %vm2272, %v2271, %v2173
        %vm2275 = vcmask 736256
        %v2276 = vsel %vm2275, %v2273, %v2179
        %v2277 = vsel %vm2275, %v2274, %v2181
        %v2278 = vsel %vm1314, %v2276, %v2187
        %v2279 = vsel %vm1314, %v2277, %v2189
        %v2280 = vsel %vm1073, %v2278, %v2195
        %v2281 = vsel %vm1073, %v2279, %v2197
        %vm2282 = vcmask 130048
        %v2283 = vsel %vm2282, %v2195, %v2203
        %v2284 = vsel %vm2282, %v2197, %v2205
        %vm2285 = vcmask 277504
        %v2286 = vsel %vm2285, %v2283, %v2211
        %v2287 = vsel %vm2285, %v2284, %v2213
        %v2288 = vsel %vm1004, %v2286, %v2219
        %v2289 = vsel %vm1004, %v2287, %v2221
        %v2290 = vsel %vm994, %v2288, %v2227
        %v2291 = vsel %vm994, %v2289, %v2229
        %v2292 = vsel %vm984, %v2290, %v2235
        %v2293 = vsel %vm984, %v2291, %v2237
        %v2294 = vsel %vm1136, %v2292, %v2243
        %v2295 = vsel %vm1136, %v2293, %v2245
        %v2296 = vsel %vm1100, %v2294, %v2251
        %v2297 = vsel %vm1100, %v2295, %v2253
        %vm2298 = vcmask 113664
        %v2299 = vsel %vm2298, %v2251, %v2259
        %v2300 = vsel %vm2298, %v2253, %v2261
        %2301 = vrot.lane.b32.xlu0 %v2120, 18
        %v2302 = vpop.permute.xlu0 %2301
        %2303 = vrot.lane.b32.xlu0 %v2121, 18
        %v2304 = vpop.permute.xlu0 %2303
        %v2307 = vsel %vm2264, %v2142, %v2302
        %v2308 = vsel %vm2264, %v2143, %v2304
        %2311 = vrot.lane.b32.xlu0 %v2307, 32
        %v2312 = vpop.permute.xlu0 %2311
        %2313 = vrot.lane.b32.xlu0 %v2308, 32
        %v2314 = vpop.permute.xlu0 %2313
        %vm2317 = vcmask 261120
        %v2318 = vsel %vm2317, %v2299, %v2312
        %v2319 = vsel %vm2317, %v2300, %v2314
        %2322 = vrot.lane.b32.xlu0 %v2280, 68
        %v2323 = vpop.permute.xlu0 %2322
        %2324 = vrot.lane.b32.xlu0 %v2281, 68
        %v2325 = vpop.permute.xlu0 %2324
        %vm2328 = vcmask 556032
        %v2329 = vsel %vm2328, %v2318, %v2323
        %v2330 = vsel %vm2328, %v2319, %v2325
        %2335 = vrot.lane.b32.xlu0 %v2280, 127
        %v2336 = vpop.permute.xlu0 %2335
        %2337 = vrot.lane.b32.xlu0 %v2296, 127
        %v2338 = vpop.permute.xlu0 %2337
        %2339 = vrot.lane.b32.xlu0 %v2329, 127
        %v2340 = vpop.permute.xlu0 %2339
        %2341 = vrot.lane.b32.xlu0 %v2281, 127
        %v2342 = vpop.permute.xlu0 %2341
        %2343 = vrot.lane.b32.xlu0 %v2297, 127
        %v2344 = vpop.permute.xlu0 %2343
        %2345 = vrot.lane.b32.xlu0 %v2330, 127
        %v2346 = vpop.permute.xlu0 %2345
        %v2347 = vsel %vm1058, %v2336, %v2338
        %v2348 = vsel %vm1058, %v2338, %v2340
        %v2349 = vsel %vm1058, %v2342, %v2344
        %v2350 = vsel %vm1058, %v2344, %v2346
        %2357 = vrot.lane.b32.xlu0 %v2280, 126
        %v2358 = vpop.permute.xlu0 %2357
        %2359 = vrot.lane.b32.xlu0 %v2296, 126
        %v2360 = vpop.permute.xlu0 %2359
        %2361 = vrot.lane.b32.xlu0 %v2329, 126
        %v2362 = vpop.permute.xlu0 %2361
        %2363 = vrot.lane.b32.xlu0 %v2281, 126
        %v2364 = vpop.permute.xlu0 %2363
        %2365 = vrot.lane.b32.xlu0 %v2297, 126
        %v2366 = vpop.permute.xlu0 %2365
        %2367 = vrot.lane.b32.xlu0 %v2330, 126
        %v2368 = vpop.permute.xlu0 %2367
        %v2369 = vsel %vm1073, %v2358, %v2360
        %v2370 = vsel %vm1073, %v2360, %v2362
        %v2371 = vsel %vm1073, %v2364, %v2366
        %v2372 = vsel %vm1073, %v2366, %v2368
        %2379 = vrot.lane.b32.xlu0 %v2280, 110
        %v2380 = vpop.permute.xlu0 %2379
        %2381 = vrot.lane.b32.xlu0 %v2296, 110
        %v2382 = vpop.permute.xlu0 %2381
        %2383 = vrot.lane.b32.xlu0 %v2329, 110
        %v2384 = vpop.permute.xlu0 %2383
        %2385 = vrot.lane.b32.xlu0 %v2281, 110
        %v2386 = vpop.permute.xlu0 %2385
        %2387 = vrot.lane.b32.xlu0 %v2297, 110
        %v2388 = vpop.permute.xlu0 %2387
        %2389 = vrot.lane.b32.xlu0 %v2330, 110
        %v2390 = vpop.permute.xlu0 %2389
        %v2391 = vsel %vm986, %v2380, %v2382
        %v2392 = vsel %vm986, %v2382, %v2384
        %v2393 = vsel %vm986, %v2386, %v2388
        %v2394 = vsel %vm986, %v2388, %v2390
        %2401 = vrot.lane.b32.xlu0 %v2280, 109
        %v2402 = vpop.permute.xlu0 %2401
        %2403 = vrot.lane.b32.xlu0 %v2296, 109
        %v2404 = vpop.permute.xlu0 %2403
        %2405 = vrot.lane.b32.xlu0 %v2329, 109
        %v2406 = vpop.permute.xlu0 %2405
        %2407 = vrot.lane.b32.xlu0 %v2281, 109
        %v2408 = vpop.permute.xlu0 %2407
        %2409 = vrot.lane.b32.xlu0 %v2297, 109
        %v2410 = vpop.permute.xlu0 %2409
        %2411 = vrot.lane.b32.xlu0 %v2330, 109
        %v2412 = vpop.permute.xlu0 %2411
        %v2413 = vsel %vm1456, %v2402, %v2404
        %v2414 = vsel %vm1456, %v2404, %v2406
        %v2415 = vsel %vm1456, %v2408, %v2410
        %v2416 = vsel %vm1456, %v2410, %v2412
        %2423 = vrot.lane.b32.xlu0 %v2280, 108
        %v2424 = vpop.permute.xlu0 %2423
        %2425 = vrot.lane.b32.xlu0 %v2296, 108
        %v2426 = vpop.permute.xlu0 %2425
        %2427 = vrot.lane.b32.xlu0 %v2329, 108
        %v2428 = vpop.permute.xlu0 %2427
        %2429 = vrot.lane.b32.xlu0 %v2281, 108
        %v2430 = vpop.permute.xlu0 %2429
        %2431 = vrot.lane.b32.xlu0 %v2297, 108
        %v2432 = vpop.permute.xlu0 %2431
        %2433 = vrot.lane.b32.xlu0 %v2330, 108
        %v2434 = vpop.permute.xlu0 %2433
        %v2435 = vsel %vm1314, %v2424, %v2426
        %v2436 = vsel %vm1314, %v2426, %v2428
        %v2437 = vsel %vm1314, %v2430, %v2432
        %v2438 = vsel %vm1314, %v2432, %v2434
        %2445 = vrot.lane.b32.xlu0 %v2280, 92
        %v2446 = vpop.permute.xlu0 %2445
        %2447 = vrot.lane.b32.xlu0 %v2296, 92
        %v2448 = vpop.permute.xlu0 %2447
        %2449 = vrot.lane.b32.xlu0 %v2329, 92
        %v2450 = vpop.permute.xlu0 %2449
        %2451 = vrot.lane.b32.xlu0 %v2281, 92
        %v2452 = vpop.permute.xlu0 %2451
        %2453 = vrot.lane.b32.xlu0 %v2297, 92
        %v2454 = vpop.permute.xlu0 %2453
        %2455 = vrot.lane.b32.xlu0 %v2330, 92
        %v2456 = vpop.permute.xlu0 %2455
        %v2457 = vsel %vm996, %v2446, %v2448
        %v2458 = vsel %vm996, %v2448, %v2450
        %v2459 = vsel %vm996, %v2452, %v2454
        %v2460 = vsel %vm996, %v2454, %v2456
        %2467 = vrot.lane.b32.xlu0 %v2280, 91
        %v2468 = vpop.permute.xlu0 %2467
        %2469 = vrot.lane.b32.xlu0 %v2296, 91
        %v2470 = vpop.permute.xlu0 %2469
        %2471 = vrot.lane.b32.xlu0 %v2329, 91
        %v2472 = vpop.permute.xlu0 %2471
        %2473 = vrot.lane.b32.xlu0 %v2281, 91
        %v2474 = vpop.permute.xlu0 %2473
        %2475 = vrot.lane.b32.xlu0 %v2297, 91
        %v2476 = vpop.permute.xlu0 %2475
        %2477 = vrot.lane.b32.xlu0 %v2330, 91
        %v2478 = vpop.permute.xlu0 %2477
        %vm2479 = vcmask 744448
        %v2480 = vsel %vm2479, %v2468, %v2470
        %v2481 = vsel %vm2479, %v2470, %v2472
        %v2482 = vsel %vm2479, %v2474, %v2476
        %v2483 = vsel %vm2479, %v2476, %v2478
        %2490 = vrot.lane.b32.xlu0 %v2280, 90
        %v2491 = vpop.permute.xlu0 %2490
        %2492 = vrot.lane.b32.xlu0 %v2296, 90
        %v2493 = vpop.permute.xlu0 %2492
        %2494 = vrot.lane.b32.xlu0 %v2329, 90
        %v2495 = vpop.permute.xlu0 %2494
        %2496 = vrot.lane.b32.xlu0 %v2281, 90
        %v2497 = vpop.permute.xlu0 %2496
        %2498 = vrot.lane.b32.xlu0 %v2297, 90
        %v2499 = vpop.permute.xlu0 %2498
        %2500 = vrot.lane.b32.xlu0 %v2330, 90
        %v2501 = vpop.permute.xlu0 %2500
        %v2502 = vsel %vm2275, %v2491, %v2493
        %v2503 = vsel %vm2275, %v2493, %v2495
        %v2504 = vsel %vm2275, %v2497, %v2499
        %v2505 = vsel %vm2275, %v2499, %v2501
        %v2513 = vsel %vm2282, %v1774, 0
        %v2516 = vsel %vm2282, %v1776, 0
        %2518 = vmatpush.msra.mxu0 %v2482
        %2519 = vmatpush.msra.mxu0 %v2480
        %2520 = vmatpush.msra.mxu0 %v2459
        %2521 = vmatpush.msra.mxu0 %v2457
        %2522 = vmatpush.msra.mxu0 %v2437
        %2523 = vmatpush.msra.mxu0 %v2435
        %2524 = vmatpush.msra.mxu0 %v2415
        %2525 = vmatpush.msra.mxu0 %v2413
        %2526 = vmatpush.msra.mxu0 %v2393
        %2527 = vmatpush.msra.mxu0 %v2391
        %2528 = vmatpush.msra.mxu0 %v2371
        %2529 = vmatpush.msra.mxu0 %v2369
        %2530 = vmatpush.msra.mxu0 %v2349
        %2531 = vmatpush.msra.mxu0 %v2347
        %2532 = vmatpush.msra.mxu0 %v2281
        %2533 = vmatpush.msra.mxu0 %v2280
        %2534 = vmatmul.f32.gmra.mxu0 %v1773
        %v2535 = vpop.f32.mrf.mxu0
        %v2536 = vadd.f32 0.0, %v2535
        %2537 = vmatmul.f32.gmra.mxu0 %v1775
        %v2538 = vpop.f32.mrf.mxu0
        %v2539 = vadd.f32 0.0, %v2538
        %2540 = vdwg.mxu0
        %2541 = vmatpush.msra.mxu0 0.0
        %2542 = vmatpush.msra.mxu0 0.0
        %2543 = vmatpush.msra.mxu0 0.0
        %2544 = vmatpush.msra.mxu0 0.0
        %2545 = vmatpush.msra.mxu0 0.0
        %2546 = vmatpush.msra.mxu0 0.0
        %2547 = vmatpush.msra.mxu0 0.0
        %2548 = vmatpush.msra.mxu0 0.0
        %2549 = vmatpush.msra.mxu0 0.0
        %2550 = vmatpush.msra.mxu0 0.0
        %2551 = vmatpush.msra.mxu0 0.0
        %2552 = vmatpush.msra.mxu0 0.0
        %2553 = vmatpush.msra.mxu0 0.0
        %2554 = vmatpush.msra.mxu0 0.0
        %2555 = vmatpush.msra.mxu0 %v2504
        %2556 = vmatpush.msra.mxu0 %v2502
        %2557 = vmatmul.f32.gmra.mxu0 %v2513
        %v2558 = vpop.f32.mrf.mxu0
        %v2559 = vadd.f32 %v2536, %v2558
        %2560 = vmatmul.f32.gmra.mxu0 %v2516
        %v2561 = vpop.f32.mrf.mxu0
        %v2562 = vadd.f32 %v2539, %v2561
        %2563 = vdwg.mxu0
        %2564 = vmatpush.msra.mxu0 %v2483
        %2565 = vmatpush.msra.mxu0 %v2481
        %2566 = vmatpush.msra.mxu0 %v2460
        %2567 = vmatpush.msra.mxu0 %v2458
        %2568 = vmatpush.msra.mxu0 %v2438
        %2569 = vmatpush.msra.mxu0 %v2436
        %2570 = vmatpush.msra.mxu0 %v2416
        %2571 = vmatpush.msra.mxu0 %v2414
        %2572 = vmatpush.msra.mxu0 %v2394
        %2573 = vmatpush.msra.mxu0 %v2392
        %2574 = vmatpush.msra.mxu0 %v2372
        %2575 = vmatpush.msra.mxu0 %v2370
        %2576 = vmatpush.msra.mxu0 %v2350
        %2577 = vmatpush.msra.mxu0 %v2348
        %2578 = vmatpush.msra.mxu0 %v2297
        %2579 = vmatpush.msra.mxu0 %v2296
        %2580 = vmatmul.f32.gmra.mxu0 %v1773
        %v2581 = vpop.f32.mrf.mxu0
        %v2582 = vadd.f32 0.0, %v2581
        %2583 = vmatmul.f32.gmra.mxu0 %v1775
        %v2584 = vpop.f32.mrf.mxu0
        %v2585 = vadd.f32 0.0, %v2584
        %2586 = vdwg.mxu0
        %2587 = vmatpush.msra.mxu0 0.0
        %2588 = vmatpush.msra.mxu0 0.0
        %2589 = vmatpush.msra.mxu0 0.0
        %2590 = vmatpush.msra.mxu0 0.0
        %2591 = vmatpush.msra.mxu0 0.0
        %2592 = vmatpush.msra.mxu0 0.0
        %2593 = vmatpush.msra.mxu0 0.0
        %2594 = vmatpush.msra.mxu0 0.0
        %2595 = vmatpush.msra.mxu0 0.0
        %2596 = vmatpush.msra.mxu0 0.0
        %2597 = vmatpush.msra.mxu0 0.0
        %2598 = vmatpush.msra.mxu0 0.0
        %2599 = vmatpush.msra.mxu0 0.0
        %2600 = vmatpush.msra.mxu0 0.0
        %2601 = vmatpush.msra.mxu0 %v2505
        %2602 = vmatpush.msra.mxu0 %v2503
        %2603 = vmatmul.f32.gmra.mxu0 %v2513
        %v2604 = vpop.f32.mrf.mxu0
        %v2605 = vadd.f32 %v2582, %v2604
        %2606 = vmatmul.f32.gmra.mxu0 %v2516
        %v2607 = vpop.f32.mrf.mxu0
        %v2608 = vadd.f32 %v2585, %v2607
        %2609 = vdwg.mxu0
        %2610 = vmatpush.msra.mxu0 %v2478
        %2611 = vmatpush.msra.mxu0 %v2472
        %2612 = vmatpush.msra.mxu0 %v2456
        %2613 = vmatpush.msra.mxu0 %v2450
        %2614 = vmatpush.msra.mxu0 %v2434
        %2615 = vmatpush.msra.mxu0 %v2428
        %2616 = vmatpush.msra.mxu0 %v2412
        %2617 = vmatpush.msra.mxu0 %v2406
        %2618 = vmatpush.msra.mxu0 %v2390
        %2619 = vmatpush.msra.mxu0 %v2384
        %2620 = vmatpush.msra.mxu0 %v2368
        %2621 = vmatpush.msra.mxu0 %v2362
        %2622 = vmatpush.msra.mxu0 %v2346
        %2623 = vmatpush.msra.mxu0 %v2340
        %2624 = vmatpush.msra.mxu0 %v2330
        %2625 = vmatpush.msra.mxu0 %v2329
        %2626 = vmatmul.f32.gmra.mxu0 %v1773
        %v2627 = vpop.f32.mrf.mxu0
        %v2628 = vadd.f32 0.0, %v2627
        %2629 = vmatmul.f32.gmra.mxu0 %v1775
        %v2630 = vpop.f32.mrf.mxu0
        %v2631 = vadd.f32 0.0, %v2630
        %2632 = vdwg.mxu0
        %2633 = vmatpush.msra.mxu0 0.0
        %2634 = vmatpush.msra.mxu0 0.0
        %2635 = vmatpush.msra.mxu0 0.0
        %2636 = vmatpush.msra.mxu0 0.0
        %2637 = vmatpush.msra.mxu0 0.0
        %2638 = vmatpush.msra.mxu0 0.0
        %2639 = vmatpush.msra.mxu0 0.0
        %2640 = vmatpush.msra.mxu0 0.0
        %2641 = vmatpush.msra.mxu0 0.0
        %2642 = vmatpush.msra.mxu0 0.0
        %2643 = vmatpush.msra.mxu0 0.0
        %2644 = vmatpush.msra.mxu0 0.0
        %2645 = vmatpush.msra.mxu0 0.0
        %2646 = vmatpush.msra.mxu0 0.0
        %2647 = vmatpush.msra.mxu0 %v2501
        %2648 = vmatpush.msra.mxu0 %v2495
        %2649 = vmatmul.f32.gmra.mxu0 %v2513
        %v2650 = vpop.f32.mrf.mxu0
        %v2651 = vadd.f32 %v2628, %v2650
        %2652 = vmatmul.f32.gmra.mxu0 %v2516
        %v2653 = vpop.f32.mrf.mxu0
        %v2654 = vadd.f32 %v2631, %v2653
        %2655 = vdwg.mxu0
        %vm2656 = vcmp.ge.f32.partialorder %v2559, 0.0
        %vm2657 = vcmp.ge.f32.partialorder %v2605, 0.0
        %vm2658 = vcmp.ge.f32.partialorder %v2651, 0.0
        %vm2659 = vcmp.ge.f32.partialorder %v2562, 0.0
        %vm2660 = vcmp.ge.f32.partialorder %v2608, 0.0
        %vm2661 = vcmp.ge.f32.partialorder %v2654, 0.0
        %v2662 = vstv %s1777
        %v2663 = vmul.f32 %v2662, %v2559
        %v2664 = vmul.f32 %v2662, %v2605
        %v2665 = vmul.f32 %v2662, %v2651
        %v2666 = vmul.f32 %v2662, %v2562
        %v2667 = vmul.f32 %v2662, %v2608
        %v2668 = vmul.f32 %v2662, %v2654
        %v2669 = vsel %vm2656, %v2559, %v2663
        %v2670 = vsel %vm2657, %v2605, %v2664
        %v2671 = vsel %vm2658, %v2651, %v2665
        %v2672 = vsel %vm2659, %v2562, %v2666
        %v2673 = vsel %vm2660, %v2608, %v2667
        %v2674 = vsel %vm2661, %v2654, %v2668
        %v2675 = vld [vmem:[#allocation12] sm:$0xff]
        %v2676 = vld [vmem:[#allocation12 + $0x8] sm:$0xff]
        %v2677 = vld [vmem:[#allocation12 + $0x10] sm:$0xff]
        %v2678 = vld [vmem:[#allocation12 + $0x18] sm:$0xff]
        %s2679 = sld [smem:[#allocation14 + $0x2]]
        %2682 = vrot.lane.b32.xlu0 %v2669, 127
        %v2683 = vpop.permute.xlu0 %2682
        %2684 = vrot.lane.b32.xlu0 %v2672, 127
        %v2685 = vpop.permute.xlu0 %2684
        %2688 = vrot.lane.b32.xlu0 %v2669, 1
        %v2689 = vpop.permute.xlu0 %2688
        %2690 = vrot.lane.b32.xlu0 %v2672, 1
        %v2691 = vpop.permute.xlu0 %2690
        %2694 = vrot.lane.b32.xlu0 %v2669, 3
        %v2695 = vpop.permute.xlu0 %2694
        %2696 = vrot.lane.b32.xlu0 %v2672, 3
        %v2697 = vpop.permute.xlu0 %2696
        %v2700 = vsel %vm502, %v2683, %v2689
        %v2701 = vsel %vm502, %v2685, %v2691
        %v2702 = vsel %vm1800, %v2700, %v2695
        %v2703 = vsel %vm1800, %v2701, %v2697
        %2704 = vrot.lane.b32.xlu0 %v2669, 109
        %v2705 = vpop.permute.xlu0 %2704
        %2706 = vrot.lane.b32.xlu0 %v2672, 109
        %v2707 = vpop.permute.xlu0 %2706
        %2710 = vrot.lane.b32.xlu0 %v2669, 111
        %v2711 = vpop.permute.xlu0 %2710
        %2712 = vrot.lane.b32.xlu0 %v2672, 111
        %v2713 = vpop.permute.xlu0 %2712
        %2716 = vrot.lane.b32.xlu0 %v2669, 113
        %v2717 = vpop.permute.xlu0 %2716
        %2718 = vrot.lane.b32.xlu0 %v2672, 113
        %v2719 = vpop.permute.xlu0 %2718
        %v2722 = vsel %vm502, %v2705, %v2711
        %v2723 = vsel %vm502, %v2707, %v2713
        %v2724 = vsel %vm1800, %v2722, %v2717
        %v2725 = vsel %vm1800, %v2723, %v2719
        %2726 = vrot.lane.b32.xlu0 %v2669, 91
        %v2727 = vpop.permute.xlu0 %2726
        %2728 = vrot.lane.b32.xlu0 %v2672, 91
        %v2729 = vpop.permute.xlu0 %2728
        %2732 = vrot.lane.b32.xlu0 %v2669, 93
        %v2733 = vpop.permute.xlu0 %2732
        %2734 = vrot.lane.b32.xlu0 %v2672, 93
        %v2735 = vpop.permute.xlu0 %2734
        %2738 = vrot.lane.b32.xlu0 %v2669, 95
        %v2739 = vpop.permute.xlu0 %2738
        %2740 = vrot.lane.b32.xlu0 %v2672, 95
        %v2741 = vpop.permute.xlu0 %2740
        %v2744 = vsel %vm502, %v2727, %v2733
        %v2745 = vsel %vm502, %v2729, %v2735
        %v2746 = vsel %vm1800, %v2744, %v2739
        %v2747 = vsel %vm1800, %v2745, %v2741
        %2748 = vrot.lane.b32.xlu0 %v2669, 73
        %v2749 = vpop.permute.xlu0 %2748
        %2750 = vrot.lane.b32.xlu0 %v2672, 73
        %v2751 = vpop.permute.xlu0 %2750
        %2754 = vrot.lane.b32.xlu0 %v2669, 75
        %v2755 = vpop.permute.xlu0 %2754
        %2756 = vrot.lane.b32.xlu0 %v2672, 75
        %v2757 = vpop.permute.xlu0 %2756
        %2760 = vrot.lane.b32.xlu0 %v2669, 77
        %v2761 = vpop.permute.xlu0 %2760
        %2762 = vrot.lane.b32.xlu0 %v2672, 77
        %v2763 = vpop.permute.xlu0 %2762
        %v2766 = vsel %vm502, %v2749, %v2755
        %v2767 = vsel %vm502, %v2751, %v2757
        %v2768 = vsel %vm1800, %v2766, %v2761
        %v2769 = vsel %vm1800, %v2767, %v2763
        %2770 = vrot.lane.b32.xlu0 %v2669, 55
        %v2771 = vpop.permute.xlu0 %2770
        %2772 = vrot.lane.b32.xlu0 %v2672, 55
        %v2773 = vpop.permute.xlu0 %2772
        %2776 = vrot.lane.b32.xlu0 %v2669, 57
        %v2777 = vpop.permute.xlu0 %2776
        %2778 = vrot.lane.b32.xlu0 %v2672, 57
        %v2779 = vpop.permute.xlu0 %2778
        %2782 = vrot.lane.b32.xlu0 %v2669, 59
        %v2783 = vpop.permute.xlu0 %2782
        %2784 = vrot.lane.b32.xlu0 %v2672, 59
        %v2785 = vpop.permute.xlu0 %2784
        %v2788 = vsel %vm502, %v2771, %v2777
        %v2789 = vsel %vm502, %v2773, %v2779
        %v2790 = vsel %vm1800, %v2788, %v2783
        %v2791 = vsel %vm1800, %v2789, %v2785
        %2792 = vrot.lane.b32.xlu0 %v2669, 37
        %v2793 = vpop.permute.xlu0 %2792
        %2794 = vrot.lane.b32.xlu0 %v2672, 37
        %v2795 = vpop.permute.xlu0 %2794
        %2798 = vrot.lane.b32.xlu0 %v2669, 39
        %v2799 = vpop.permute.xlu0 %2798
        %2800 = vrot.lane.b32.xlu0 %v2672, 39
        %v2801 = vpop.permute.xlu0 %2800
        %2804 = vrot.lane.b32.xlu0 %v2669, 41
        %v2805 = vpop.permute.xlu0 %2804
        %2806 = vrot.lane.b32.xlu0 %v2672, 41
        %v2807 = vpop.permute.xlu0 %2806
        %v2810 = vsel %vm502, %v2793, %v2799
        %v2811 = vsel %vm502, %v2795, %v2801
        %v2812 = vsel %vm1800, %v2810, %v2805
        %v2813 = vsel %vm1800, %v2811, %v2807
        %2814 = vrot.lane.b32.xlu0 %v2669, 19
        %v2815 = vpop.permute.xlu0 %2814
        %2816 = vrot.lane.b32.xlu0 %v2672, 19
        %v2817 = vpop.permute.xlu0 %2816
        %2820 = vrot.lane.b32.xlu0 %v2669, 21
        %v2821 = vpop.permute.xlu0 %2820
        %2822 = vrot.lane.b32.xlu0 %v2672, 21
        %v2823 = vpop.permute.xlu0 %2822
        %2826 = vrot.lane.b32.xlu0 %v2669, 23
        %v2827 = vpop.permute.xlu0 %2826
        %2828 = vrot.lane.b32.xlu0 %v2672, 23
        %v2829 = vpop.permute.xlu0 %2828
        %v2832 = vsel %vm502, %v2815, %v2821
        %v2833 = vsel %vm502, %v2817, %v2823
        %v2834 = vsel %vm1800, %v2832, %v2827
        %v2835 = vsel %vm1800, %v2833, %v2829
        %2838 = vrot.lane.b32.xlu0 %v2670, 3
        %v2839 = vpop.permute.xlu0 %2838
        %2840 = vrot.lane.b32.xlu0 %v2673, 3
        %v2841 = vpop.permute.xlu0 %2840
        %v2842 = vsel %vm506, %v2695, %v2839
        %v2843 = vsel %vm506, %v2697, %v2841
        %2846 = vrot.lane.b32.xlu0 %v2670, 5
        %v2847 = vpop.permute.xlu0 %2846
        %2848 = vrot.lane.b32.xlu0 %v2673, 5
        %v2849 = vpop.permute.xlu0 %2848
        %v2852 = vsel %vm502, %v2689, %v2842
        %v2853 = vsel %vm502, %v2691, %v2843
        %v2854 = vsel %vm1800, %v2852, %v2847
        %v2855 = vsel %vm1800, %v2853, %v2849
        %2856 = vrot.lane.b32.xlu0 %v2670, 111
        %v2857 = vpop.permute.xlu0 %2856
        %2858 = vrot.lane.b32.xlu0 %v2673, 111
        %v2859 = vpop.permute.xlu0 %2858
        %2862 = vrot.lane.b32.xlu0 %v2670, 113
        %v2863 = vpop.permute.xlu0 %2862
        %2864 = vrot.lane.b32.xlu0 %v2673, 113
        %v2865 = vpop.permute.xlu0 %2864
        %2868 = vrot.lane.b32.xlu0 %v2670, 115
        %v2869 = vpop.permute.xlu0 %2868
        %2870 = vrot.lane.b32.xlu0 %v2673, 115
        %v2871 = vpop.permute.xlu0 %2870
        %v2874 = vsel %vm502, %v2857, %v2863
        %v2875 = vsel %vm502, %v2859, %v2865
        %v2876 = vsel %vm1800, %v2874, %v2869
        %v2877 = vsel %vm1800, %v2875, %v2871
        %2878 = vrot.lane.b32.xlu0 %v2670, 93
        %v2879 = vpop.permute.xlu0 %2878
        %2880 = vrot.lane.b32.xlu0 %v2673, 93
        %v2881 = vpop.permute.xlu0 %2880
        %2884 = vrot.lane.b32.xlu0 %v2670, 95
        %v2885 = vpop.permute.xlu0 %2884
        %2886 = vrot.lane.b32.xlu0 %v2673, 95
        %v2887 = vpop.permute.xlu0 %2886
        %2890 = vrot.lane.b32.xlu0 %v2670, 97
        %v2891 = vpop.permute.xlu0 %2890
        %2892 = vrot.lane.b32.xlu0 %v2673, 97
        %v2893 = vpop.permute.xlu0 %2892
        %v2896 = vsel %vm502, %v2879, %v2885
        %v2897 = vsel %vm502, %v2881, %v2887
        %v2898 = vsel %vm1800, %v2896, %v2891
        %v2899 = vsel %vm1800, %v2897, %v2893
        %2900 = vrot.lane.b32.xlu0 %v2670, 75
        %v2901 = vpop.permute.xlu0 %2900
        %2902 = vrot.lane.b32.xlu0 %v2673, 75
        %v2903 = vpop.permute.xlu0 %2902
        %2906 = vrot.lane.b32.xlu0 %v2670, 77
        %v2907 = vpop.permute.xlu0 %2906
        %2908 = vrot.lane.b32.xlu0 %v2673, 77
        %v2909 = vpop.permute.xlu0 %2908
        %2912 = vrot.lane.b32.xlu0 %v2670, 79
        %v2913 = vpop.permute.xlu0 %2912
        %2914 = vrot.lane.b32.xlu0 %v2673, 79
        %v2915 = vpop.permute.xlu0 %2914
        %v2918 = vsel %vm502, %v2901, %v2907
        %v2919 = vsel %vm502, %v2903, %v2909
        %v2920 = vsel %vm1800, %v2918, %v2913
        %v2921 = vsel %vm1800, %v2919, %v2915
        %2922 = vrot.lane.b32.xlu0 %v2670, 57
        %v2923 = vpop.permute.xlu0 %2922
        %2924 = vrot.lane.b32.xlu0 %v2673, 57
        %v2925 = vpop.permute.xlu0 %2924
        %2928 = vrot.lane.b32.xlu0 %v2670, 59
        %v2929 = vpop.permute.xlu0 %2928
        %2930 = vrot.lane.b32.xlu0 %v2673, 59
        %v2931 = vpop.permute.xlu0 %2930
        %2934 = vrot.lane.b32.xlu0 %v2670, 61
        %v2935 = vpop.permute.xlu0 %2934
        %2936 = vrot.lane.b32.xlu0 %v2673, 61
        %v2937 = vpop.permute.xlu0 %2936
        %v2940 = vsel %vm502, %v2923, %v2929
        %v2941 = vsel %vm502, %v2925, %v2931
        %v2942 = vsel %vm1800, %v2940, %v2935
        %v2943 = vsel %vm1800, %v2941, %v2937
        %2944 = vrot.lane.b32.xlu0 %v2670, 39
        %v2945 = vpop.permute.xlu0 %2944
        %2946 = vrot.lane.b32.xlu0 %v2673, 39
        %v2947 = vpop.permute.xlu0 %2946
        %2950 = vrot.lane.b32.xlu0 %v2670, 41
        %v2951 = vpop.permute.xlu0 %2950
        %2952 = vrot.lane.b32.xlu0 %v2673, 41
        %v2953 = vpop.permute.xlu0 %2952
        %2956 = vrot.lane.b32.xlu0 %v2670, 43
        %v2957 = vpop.permute.xlu0 %2956
        %2958 = vrot.lane.b32.xlu0 %v2673, 43
        %v2959 = vpop.permute.xlu0 %2958
        %v2962 = vsel %vm502, %v2945, %v2951
        %v2963 = vsel %vm502, %v2947, %v2953
        %v2964 = vsel %vm1800, %v2962, %v2957
        %v2965 = vsel %vm1800, %v2963, %v2959
        %2966 = vrot.lane.b32.xlu0 %v2670, 21
        %v2967 = vpop.permute.xlu0 %2966
        %2968 = vrot.lane.b32.xlu0 %v2673, 21
        %v2969 = vpop.permute.xlu0 %2968
        %2972 = vrot.lane.b32.xlu0 %v2670, 23
        %v2973 = vpop.permute.xlu0 %2972
        %2974 = vrot.lane.b32.xlu0 %v2673, 23
        %v2975 = vpop.permute.xlu0 %2974
        %2978 = vrot.lane.b32.xlu0 %v2670, 25
        %v2979 = vpop.permute.xlu0 %2978
        %2980 = vrot.lane.b32.xlu0 %v2673, 25
        %v2981 = vpop.permute.xlu0 %2980
        %v2984 = vsel %vm502, %v2967, %v2973
        %v2985 = vsel %vm502, %v2969, %v2975
        %v2986 = vsel %vm1800, %v2984, %v2979
        %v2987 = vsel %vm1800, %v2985, %v2981
        %2992 = vrot.lane.b32.xlu0 %v2671, 5
        %v2993 = vpop.permute.xlu0 %2992
        %2994 = vrot.lane.b32.xlu0 %v2674, 5
        %v2995 = vpop.permute.xlu0 %2994
        %vm2996 = vcmask 39936
        %v2997 = vsel %vm2996, %v2847, %v2993
        %v2998 = vsel %vm2996, %v2849, %v2995
        %3001 = vrot.lane.b32.xlu0 %v2671, 7
        %v3002 = vpop.permute.xlu0 %3001
        %3003 = vrot.lane.b32.xlu0 %v2674, 7
        %v3004 = vpop.permute.xlu0 %3003
        %v3007 = vsel %vm502, %v2839, %v2997
        %v3008 = vsel %vm502, %v2841, %v2998
        %v3009 = vsel %vm1800, %v3007, %v3002
        %v3010 = vsel %vm1800, %v3008, %v3004
        %3011 = vrot.lane.b32.xlu0 %v2671, 113
        %v3012 = vpop.permute.xlu0 %3011
        %3013 = vrot.lane.b32.xlu0 %v2674, 113
        %v3014 = vpop.permute.xlu0 %3013
        %3017 = vrot.lane.b32.xlu0 %v2671, 115
        %v3018 = vpop.permute.xlu0 %3017
        %3019 = vrot.lane.b32.xlu0 %v2674, 115
        %v3020 = vpop.permute.xlu0 %3019
        %3023 = vrot.lane.b32.xlu0 %v2671, 117
        %v3024 = vpop.permute.xlu0 %3023
        %3025 = vrot.lane.b32.xlu0 %v2674, 117
        %v3026 = vpop.permute.xlu0 %3025
        %v3029 = vsel %vm502, %v3012, %v3018
        %v3030 = vsel %vm502, %v3014, %v3020
        %v3031 = vsel %vm1800, %v3029, %v3024
        %v3032 = vsel %vm1800, %v3030, %v3026
        %3035 = vrot.lane.b32.xlu0 %v2702, 18
        %v3036 = vpop.permute.xlu0 %3035
        %3037 = vrot.lane.b32.xlu0 %v2703, 18
        %v3038 = vpop.permute.xlu0 %3037
        %3043 = vrot.lane.b32.xlu0 %v2724, 36
        %v3044 = vpop.permute.xlu0 %3043
        %3045 = vrot.lane.b32.xlu0 %v2725, 36
        %v3046 = vpop.permute.xlu0 %3045
        %3051 = vrot.lane.b32.xlu0 %v2746, 54
        %v3052 = vpop.permute.xlu0 %3051
        %3053 = vrot.lane.b32.xlu0 %v2747, 54
        %v3054 = vpop.permute.xlu0 %3053
        %3059 = vrot.lane.b32.xlu0 %v2768, 72
        %v3060 = vpop.permute.xlu0 %3059
        %3061 = vrot.lane.b32.xlu0 %v2769, 72
        %v3062 = vpop.permute.xlu0 %3061
        %3067 = vrot.lane.b32.xlu0 %v2790, 90
        %v3068 = vpop.permute.xlu0 %3067
        %3069 = vrot.lane.b32.xlu0 %v2791, 90
        %v3070 = vpop.permute.xlu0 %3069
        %3075 = vrot.lane.b32.xlu0 %v2812, 108
        %v3076 = vpop.permute.xlu0 %3075
        %3077 = vrot.lane.b32.xlu0 %v2813, 108
        %v3078 = vpop.permute.xlu0 %3077
        %3083 = vrot.lane.b32.xlu0 %v2834, 126
        %v3084 = vpop.permute.xlu0 %3083
        %3085 = vrot.lane.b32.xlu0 %v2835, 126
        %v3086 = vpop.permute.xlu0 %3085
        %3091 = vrot.lane.b32.xlu0 %v2854, 16
        %v3092 = vpop.permute.xlu0 %3091
        %3093 = vrot.lane.b32.xlu0 %v2855, 16
        %v3094 = vpop.permute.xlu0 %3093
        %3099 = vrot.lane.b32.xlu0 %v2876, 34
        %v3100 = vpop.permute.xlu0 %3099
        %3101 = vrot.lane.b32.xlu0 %v2877, 34
        %v3102 = vpop.permute.xlu0 %3101
        %3107 = vrot.lane.b32.xlu0 %v2898, 52
        %v3108 = vpop.permute.xlu0 %3107
        %3109 = vrot.lane.b32.xlu0 %v2899, 52
        %v3110 = vpop.permute.xlu0 %3109
        %3115 = vrot.lane.b32.xlu0 %v2920, 70
        %v3116 = vpop.permute.xlu0 %3115
        %3117 = vrot.lane.b32.xlu0 %v2921, 70
        %v3118 = vpop.permute.xlu0 %3117
        %3123 = vrot.lane.b32.xlu0 %v2942, 88
        %v3124 = vpop.permute.xlu0 %3123
        %3125 = vrot.lane.b32.xlu0 %v2943, 88
        %v3126 = vpop.permute.xlu0 %3125
        %3131 = vrot.lane.b32.xlu0 %v2964, 106
        %v3132 = vpop.permute.xlu0 %3131
        %3133 = vrot.lane.b32.xlu0 %v2965, 106
        %v3134 = vpop.permute.xlu0 %3133
        %3139 = vrot.lane.b32.xlu0 %v2986, 124
        %v3140 = vpop.permute.xlu0 %3139
        %3141 = vrot.lane.b32.xlu0 %v2987, 124
        %v3142 = vpop.permute.xlu0 %3141
        %3147 = vrot.lane.b32.xlu0 %v3009, 14
        %v3148 = vpop.permute.xlu0 %3147
        %3149 = vrot.lane.b32.xlu0 %v3010, 14
        %v3150 = vpop.permute.xlu0 %3149
        %v3153 = vsel %vm2264, %v2724, %v3036
        %v3154 = vsel %vm2264, %v2725, %v3038
        %v3155 = vsel %vm1638, %v3153, %v3044
        %v3156 = vsel %vm1638, %v3154, %v3046
        %v3157 = vsel %vm2269, %v3155, %v3052
        %v3158 = vsel %vm2269, %v3156, %v3054
        %v3159 = vsel %vm2272, %v3157, %v3060
        %v3160 = vsel %vm2272, %v3158, %v3062
        %v3161 = vsel %vm2275, %v3159, %v3068
        %v3162 = vsel %vm2275, %v3160, %v3070
        %v3163 = vsel %vm1314, %v3161, %v3076
        %v3164 = vsel %vm1314, %v3162, %v3078
        %v3165 = vsel %vm1073, %v3163, %v3084
        %v3166 = vsel %vm1073, %v3164, %v3086
        %v3167 = vsel %vm2282, %v3084, %v3092
        %v3168 = vsel %vm2282, %v3086, %v3094
        %v3169 = vsel %vm2285, %v3167, %v3100
        %v3170 = vsel %vm2285, %v3168, %v3102
        %v3171 = vsel %vm1004, %v3169, %v3108
        %v3172 = vsel %vm1004, %v3170, %v3110
        %v3173 = vsel %vm994, %v3171, %v3116
        %v3174 = vsel %vm994, %v3172, %v3118
        %v3175 = vsel %vm984, %v3173, %v3124
        %v3176 = vsel %vm984, %v3174, %v3126
        %v3177 = vsel %vm1136, %v3175, %v3132
        %v3178 = vsel %vm1136, %v3176, %v3134
        %v3179 = vsel %vm1100, %v3177, %v3140
        %v3180 = vsel %vm1100, %v3178, %v3142
        %v3181 = vsel %vm2298, %v3140, %v3148
        %v3182 = vsel %vm2298, %v3142, %v3150
        %3183 = vrot.lane.b32.xlu0 %v3009, 18
        %v3184 = vpop.permute.xlu0 %3183
        %3185 = vrot.lane.b32.xlu0 %v3010, 18
        %v3186 = vpop.permute.xlu0 %3185
        %v3189 = vsel %vm2264, %v3031, %v3184
        %v3190 = vsel %vm2264, %v3032, %v3186
        %3193 = vrot.lane.b32.xlu0 %v3189, 32
        %v3194 = vpop.permute.xlu0 %3193
        %3195 = vrot.lane.b32.xlu0 %v3190, 32
        %v3196 = vpop.permute.xlu0 %3195
        %v3199 = vsel %vm2317, %v3181, %v3194
        %v3200 = vsel %vm2317, %v3182, %v3196
        %3203 = vrot.lane.b32.xlu0 %v3165, 68
        %v3204 = vpop.permute.xlu0 %3203
        %3205 = vrot.lane.b32.xlu0 %v3166, 68
        %v3206 = vpop.permute.xlu0 %3205
        %v3209 = vsel %vm2328, %v3199, %v3204
        %v3210 = vsel %vm2328, %v3200, %v3206
        %3215 = vrot.lane.b32.xlu0 %v3165, 127
        %v3216 = vpop.permute.xlu0 %3215
        %3217 = vrot.lane.b32.xlu0 %v3179, 127
        %v3218 = vpop.permute.xlu0 %3217
        %3219 = vrot.lane.b32.xlu0 %v3209, 127
        %v3220 = vpop.permute.xlu0 %3219
        %3221 = vrot.lane.b32.xlu0 %v3166, 127
        %v3222 = vpop.permute.xlu0 %3221
        %3223 = vrot.lane.b32.xlu0 %v3180, 127
        %v3224 = vpop.permute.xlu0 %3223
        %3225 = vrot.lane.b32.xlu0 %v3210, 127
        %v3226 = vpop.permute.xlu0 %3225
        %v3227 = vsel %vm1058, %v3216, %v3218
        %v3228 = vsel %vm1058, %v3218, %v3220
        %v3229 = vsel %vm1058, %v3222, %v3224
        %v3230 = vsel %vm1058, %v3224, %v3226
        %3237 = vrot.lane.b32.xlu0 %v3165, 126
        %v3238 = vpop.permute.xlu0 %3237
        %3239 = vrot.lane.b32.xlu0 %v3179, 126
        %v3240 = vpop.permute.xlu0 %3239
        %3241 = vrot.lane.b32.xlu0 %v3209, 126
        %v3242 = vpop.permute.xlu0 %3241
        %3243 = vrot.lane.b32.xlu0 %v3166, 126
        %v3244 = vpop.permute.xlu0 %3243
        %3245 = vrot.lane.b32.xlu0 %v3180, 126
        %v3246 = vpop.permute.xlu0 %3245
        %3247 = vrot.lane.b32.xlu0 %v3210, 126
        %v3248 = vpop.permute.xlu0 %3247
        %v3249 = vsel %vm1073, %v3238, %v3240
        %v3250 = vsel %vm1073, %v3240, %v3242
        %v3251 = vsel %vm1073, %v3244, %v3246
        %v3252 = vsel %vm1073, %v3246, %v3248
        %3259 = vrot.lane.b32.xlu0 %v3165, 110
        %v3260 = vpop.permute.xlu0 %3259
        %3261 = vrot.lane.b32.xlu0 %v3179, 110
        %v3262 = vpop.permute.xlu0 %3261
        %3263 = vrot.lane.b32.xlu0 %v3209, 110
        %v3264 = vpop.permute.xlu0 %3263
        %3265 = vrot.lane.b32.xlu0 %v3166, 110
        %v3266 = vpop.permute.xlu0 %3265
        %3267 = vrot.lane.b32.xlu0 %v3180, 110
        %v3268 = vpop.permute.xlu0 %3267
        %3269 = vrot.lane.b32.xlu0 %v3210, 110
        %v3270 = vpop.permute.xlu0 %3269
        %v3271 = vsel %vm986, %v3260, %v3262
        %v3272 = vsel %vm986, %v3262, %v3264
        %v3273 = vsel %vm986, %v3266, %v3268
        %v3274 = vsel %vm986, %v3268, %v3270
        %3281 = vrot.lane.b32.xlu0 %v3165, 109
        %v3282 = vpop.permute.xlu0 %3281
        %3283 = vrot.lane.b32.xlu0 %v3179, 109
        %v3284 = vpop.permute.xlu0 %3283
        %3285 = vrot.lane.b32.xlu0 %v3209, 109
        %v3286 = vpop.permute.xlu0 %3285
        %3287 = vrot.lane.b32.xlu0 %v3166, 109
        %v3288 = vpop.permute.xlu0 %3287
        %3289 = vrot.lane.b32.xlu0 %v3180, 109
        %v3290 = vpop.permute.xlu0 %3289
        %3291 = vrot.lane.b32.xlu0 %v3210, 109
        %v3292 = vpop.permute.xlu0 %3291
        %v3293 = vsel %vm1456, %v3282, %v3284
        %v3294 = vsel %vm1456, %v3284, %v3286
        %v3295 = vsel %vm1456, %v3288, %v3290
        %v3296 = vsel %vm1456, %v3290, %v3292
        %3303 = vrot.lane.b32.xlu0 %v3165, 108
        %v3304 = vpop.permute.xlu0 %3303
        %3305 = vrot.lane.b32.xlu0 %v3179, 108
        %v3306 = vpop.permute.xlu0 %3305
        %3307 = vrot.lane.b32.xlu0 %v3209, 108
        %v3308 = vpop.permute.xlu0 %3307
        %3309 = vrot.lane.b32.xlu0 %v3166, 108
        %v3310 = vpop.permute.xlu0 %3309
        %3311 = vrot.lane.b32.xlu0 %v3180, 108
        %v3312 = vpop.permute.xlu0 %3311
        %3313 = vrot.lane.b32.xlu0 %v3210, 108
        %v3314 = vpop.permute.xlu0 %3313
        %v3315 = vsel %vm1314, %v3304, %v3306
        %v3316 = vsel %vm1314, %v3306, %v3308
        %v3317 = vsel %vm1314, %v3310, %v3312
        %v3318 = vsel %vm1314, %v3312, %v3314
        %3325 = vrot.lane.b32.xlu0 %v3165, 92
        %v3326 = vpop.permute.xlu0 %3325
        %3327 = vrot.lane.b32.xlu0 %v3179, 92
        %v3328 = vpop.permute.xlu0 %3327
        %3329 = vrot.lane.b32.xlu0 %v3209, 92
        %v3330 = vpop.permute.xlu0 %3329
        %3331 = vrot.lane.b32.xlu0 %v3166, 92
        %v3332 = vpop.permute.xlu0 %3331
        %3333 = vrot.lane.b32.xlu0 %v3180, 92
        %v3334 = vpop.permute.xlu0 %3333
        %3335 = vrot.lane.b32.xlu0 %v3210, 92
        %v3336 = vpop.permute.xlu0 %3335
        %v3337 = vsel %vm996, %v3326, %v3328
        %v3338 = vsel %vm996, %v3328, %v3330
        %v3339 = vsel %vm996, %v3332, %v3334
        %v3340 = vsel %vm996, %v3334, %v3336
        %3347 = vrot.lane.b32.xlu0 %v3165, 91
        %v3348 = vpop.permute.xlu0 %3347
        %3349 = vrot.lane.b32.xlu0 %v3179, 91
        %v3350 = vpop.permute.xlu0 %3349
        %3351 = vrot.lane.b32.xlu0 %v3209, 91
        %v3352 = vpop.permute.xlu0 %3351
        %3353 = vrot.lane.b32.xlu0 %v3166, 91
        %v3354 = vpop.permute.xlu0 %3353
        %3355 = vrot.lane.b32.xlu0 %v3180, 91
        %v3356 = vpop.permute.xlu0 %3355
        %3357 = vrot.lane.b32.xlu0 %v3210, 91
        %v3358 = vpop.permute.xlu0 %3357
        %v3359 = vsel %vm2479, %v3348, %v3350
        %v3360 = vsel %vm2479, %v3350, %v3352
        %v3361 = vsel %vm2479, %v3354, %v3356
        %v3362 = vsel %vm2479, %v3356, %v3358
        %3369 = vrot.lane.b32.xlu0 %v3165, 90
        %v3370 = vpop.permute.xlu0 %3369
        %3371 = vrot.lane.b32.xlu0 %v3179, 90
        %v3372 = vpop.permute.xlu0 %3371
        %3373 = vrot.lane.b32.xlu0 %v3209, 90
        %v3374 = vpop.permute.xlu0 %3373
        %3375 = vrot.lane.b32.xlu0 %v3166, 90
        %v3376 = vpop.permute.xlu0 %3375
        %3377 = vrot.lane.b32.xlu0 %v3180, 90
        %v3378 = vpop.permute.xlu0 %3377
        %3379 = vrot.lane.b32.xlu0 %v3210, 90
        %v3380 = vpop.permute.xlu0 %3379
        %v3381 = vsel %vm2275, %v3370, %v3372
        %v3382 = vsel %vm2275, %v3372, %v3374
        %v3383 = vsel %vm2275, %v3376, %v3378
        %v3384 = vsel %vm2275, %v3378, %v3380
        %v3392 = vsel %vm2282, %v2676, 0
        %v3395 = vsel %vm2282, %v2678, 0
        %3397 = vmatpush.msra.mxu0 %v3361
        %3398 = vmatpush.msra.mxu0 %v3359
        %3399 = vmatpush.msra.mxu0 %v3339
        %3400 = vmatpush.msra.mxu0 %v3337
        %3401 = vmatpush.msra.mxu0 %v3317
        %3402 = vmatpush.msra.mxu0 %v3315
        %3403 = vmatpush.msra.mxu0 %v3295
        %3404 = vmatpush.msra.mxu0 %v3293
        %3405 = vmatpush.msra.mxu0 %v3273
        %3406 = vmatpush.msra.mxu0 %v3271
        %3407 = vmatpush.msra.mxu0 %v3251
        %3408 = vmatpush.msra.mxu0 %v3249
        %3409 = vmatpush.msra.mxu0 %v3229
        %3410 = vmatpush.msra.mxu0 %v3227
        %3411 = vmatpush.msra.mxu0 %v3166
        %3412 = vmatpush.msra.mxu0 %v3165
        %3413 = vmatmul.f32.gmra.mxu0 %v2675
        %v3414 = vpop.f32.mrf.mxu0
        %v3415 = vadd.f32 0.0, %v3414
        %3416 = vmatmul.f32.gmra.mxu0 %v2677
        %v3417 = vpop.f32.mrf.mxu0
        %v3418 = vadd.f32 0.0, %v3417
        %3419 = vdwg.mxu0
        %3420 = vmatpush.msra.mxu0 0.0
        %3421 = vmatpush.msra.mxu0 0.0
        %3422 = vmatpush.msra.mxu0 0.0
        %3423 = vmatpush.msra.mxu0 0.0
        %3424 = vmatpush.msra.mxu0 0.0
        %3425 = vmatpush.msra.mxu0 0.0
        %3426 = vmatpush.msra.mxu0 0.0
        %3427 = vmatpush.msra.mxu0 0.0
        %3428 = vmatpush.msra.mxu0 0.0
        %3429 = vmatpush.msra.mxu0 0.0
        %3430 = vmatpush.msra.mxu0 0.0
        %3431 = vmatpush.msra.mxu0 0.0
        %3432 = vmatpush.msra.mxu0 0.0
        %3433 = vmatpush.msra.mxu0 0.0
        %3434 = vmatpush.msra.mxu0 %v3383
        %3435 = vmatpush.msra.mxu0 %v3381
        %3436 = vmatmul.f32.gmra.mxu0 %v3392
        %v3437 = vpop.f32.mrf.mxu0
        %v3438 = vadd.f32 %v3415, %v3437
        %3439 = vmatmul.f32.gmra.mxu0 %v3395
        %v3440 = vpop.f32.mrf.mxu0
        %v3441 = vadd.f32 %v3418, %v3440
        %3442 = vdwg.mxu0
        %3443 = vmatpush.msra.mxu0 %v3362
        %3444 = vmatpush.msra.mxu0 %v3360
        %3445 = vmatpush.msra.mxu0 %v3340
        %3446 = vmatpush.msra.mxu0 %v3338
        %3447 = vmatpush.msra.mxu0 %v3318
        %3448 = vmatpush.msra.mxu0 %v3316
        %3449 = vmatpush.msra.mxu0 %v3296
        %3450 = vmatpush.msra.mxu0 %v3294
        %3451 = vmatpush.msra.mxu0 %v3274
        %3452 = vmatpush.msra.mxu0 %v3272
        %3453 = vmatpush.msra.mxu0 %v3252
        %3454 = vmatpush.msra.mxu0 %v3250
        %3455 = vmatpush.msra.mxu0 %v3230
        %3456 = vmatpush.msra.mxu0 %v3228
        %3457 = vmatpush.msra.mxu0 %v3180
        %3458 = vmatpush.msra.mxu0 %v3179
        %3459 = vmatmul.f32.gmra.mxu0 %v2675
        %v3460 = vpop.f32.mrf.mxu0
        %v3461 = vadd.f32 0.0, %v3460
        %3462 = vmatmul.f32.gmra.mxu0 %v2677
        %v3463 = vpop.f32.mrf.mxu0
        %v3464 = vadd.f32 0.0, %v3463
        %3465 = vdwg.mxu0
        %3466 = vmatpush.msra.mxu0 0.0
        %3467 = vmatpush.msra.mxu0 0.0
        %3468 = vmatpush.msra.mxu0 0.0
        %3469 = vmatpush.msra.mxu0 0.0
        %3470 = vmatpush.msra.mxu0 0.0
        %3471 = vmatpush.msra.mxu0 0.0
        %3472 = vmatpush.msra.mxu0 0.0
        %3473 = vmatpush.msra.mxu0 0.0
        %3474 = vmatpush.msra.mxu0 0.0
        %3475 = vmatpush.msra.mxu0 0.0
        %3476 = vmatpush.msra.mxu0 0.0
        %3477 = vmatpush.msra.mxu0 0.0
        %3478 = vmatpush.msra.mxu0 0.0
        %3479 = vmatpush.msra.mxu0 0.0
        %3480 = vmatpush.msra.mxu0 %v3384
        %3481 = vmatpush.msra.mxu0 %v3382
        %3482 = vmatmul.f32.gmra.mxu0 %v3392
        %v3483 = vpop.f32.mrf.mxu0
        %v3484 = vadd.f32 %v3461, %v3483
        %3485 = vmatmul.f32.gmra.mxu0 %v3395
        %v3486 = vpop.f32.mrf.mxu0
        %v3487 = vadd.f32 %v3464, %v3486
        %3488 = vdwg.mxu0
        %3489 = vmatpush.msra.mxu0 %v3358
        %3490 = vmatpush.msra.mxu0 %v3352
        %3491 = vmatpush.msra.mxu0 %v3336
        %3492 = vmatpush.msra.mxu0 %v3330
        %3493 = vmatpush.msra.mxu0 %v3314
        %3494 = vmatpush.msra.mxu0 %v3308
        %3495 = vmatpush.msra.mxu0 %v3292
        %3496 = vmatpush.msra.mxu0 %v3286
        %3497 = vmatpush.msra.mxu0 %v3270
        %3498 = vmatpush.msra.mxu0 %v3264
        %3499 = vmatpush.msra.mxu0 %v3248
        %3500 = vmatpush.msra.mxu0 %v3242
        %3501 = vmatpush.msra.mxu0 %v3226
        %3502 = vmatpush.msra.mxu0 %v3220
        %3503 = vmatpush.msra.mxu0 %v3210
        %3504 = vmatpush.msra.mxu0 %v3209
        %3505 = vmatmul.f32.gmra.mxu0 %v2675
        %v3506 = vpop.f32.mrf.mxu0
        %v3507 = vadd.f32 0.0, %v3506
        %3508 = vmatmul.f32.gmra.mxu0 %v2677
        %v3509 = vpop.f32.mrf.mxu0
        %v3510 = vadd.f32 0.0, %v3509
        %3511 = vdwg.mxu0
        %3512 = vmatpush.msra.mxu0 0.0
        %3513 = vmatpush.msra.mxu0 0.0
        %3514 = vmatpush.msra.mxu0 0.0
        %3515 = vmatpush.msra.mxu0 0.0
        %3516 = vmatpush.msra.mxu0 0.0
        %3517 = vmatpush.msra.mxu0 0.0
        %3518 = vmatpush.msra.mxu0 0.0
        %3519 = vmatpush.msra.mxu0 0.0
        %3520 = vmatpush.msra.mxu0 0.0
        %3521 = vmatpush.msra.mxu0 0.0
        %3522 = vmatpush.msra.mxu0 0.0
        %3523 = vmatpush.msra.mxu0 0.0
        %3524 = vmatpush.msra.mxu0 0.0
        %3525 = vmatpush.msra.mxu0 0.0
        %3526 = vmatpush.msra.mxu0 %v3380
        %3527 = vmatpush.msra.mxu0 %v3374
        %3528 = vmatmul.f32.gmra.mxu0 %v3392
        %v3529 = vpop.f32.mrf.mxu0
        %v3530 = vadd.f32 %v3507, %v3529
        %3531 = vmatmul.f32.gmra.mxu0 %v3395
        %v3532 = vpop.f32.mrf.mxu0
        %v3533 = vadd.f32 %v3510, %v3532
        %3534 = vdwg.mxu0
        %vm3535 = vcmp.ge.f32.partialorder %v3438, 0.0
        %vm3536 = vcmp.ge.f32.partialorder %v3484, 0.0
        %vm3537 = vcmp.ge.f32.partialorder %v3530, 0.0
        %vm3538 = vcmp.ge.f32.partialorder %v3441, 0.0
        %vm3539 = vcmp.ge.f32.partialorder %v3487, 0.0
        %vm3540 = vcmp.ge.f32.partialorder %v3533, 0.0
        %v3541 = vstv %s2679
        %v3542 = vmul.f32 %v3541, %v3438
        %v3543 = vmul.f32 %v3541, %v3484
        %v3544 = vmul.f32 %v3541, %v3530
        %v3545 = vmul.f32 %v3541, %v3441
        %v3546 = vmul.f32 %v3541, %v3487
        %v3547 = vmul.f32 %v3541, %v3533
        %v3548 = vsel %vm3535, %v3438, %v3542
        %v3549 = vsel %vm3536, %v3484, %v3543
        %v3550 = vsel %vm3537, %v3530, %v3544
        %v3551 = vsel %vm3538, %v3441, %v3545
        %v3552 = vsel %vm3539, %v3487, %v3546
        %v3553 = vsel %vm3540, %v3533, %v3547
        %v3554 = vld [vmem:[%s6] sm:$0x3]
        %3557 = vrot.lane.b32.xlu0 %v3548, 127
        %v3558 = vpop.permute.xlu0 %3557
        %3559 = vrot.lane.b32.xlu0 %v3551, 127
        %v3560 = vpop.permute.xlu0 %3559
        %3563 = vrot.lane.b32.xlu0 %v3548, 1
        %v3564 = vpop.permute.xlu0 %3563
        %3565 = vrot.lane.b32.xlu0 %v3551, 1
        %v3566 = vpop.permute.xlu0 %3565
        %3569 = vrot.lane.b32.xlu0 %v3548, 3
        %v3570 = vpop.permute.xlu0 %3569
        %3571 = vrot.lane.b32.xlu0 %v3551, 3
        %v3572 = vpop.permute.xlu0 %3571
        %v3575 = vsel %vm502, %v3558, %v3564
        %v3576 = vsel %vm502, %v3560, %v3566
        %v3577 = vsel %vm1800, %v3575, %v3570
        %v3578 = vsel %vm1800, %v3576, %v3572
        %3579 = vrot.lane.b32.xlu0 %v3548, 109
        %v3580 = vpop.permute.xlu0 %3579
        %3581 = vrot.lane.b32.xlu0 %v3551, 109
        %v3582 = vpop.permute.xlu0 %3581
        %3585 = vrot.lane.b32.xlu0 %v3548, 111
        %v3586 = vpop.permute.xlu0 %3585
        %3587 = vrot.lane.b32.xlu0 %v3551, 111
        %v3588 = vpop.permute.xlu0 %3587
        %3591 = vrot.lane.b32.xlu0 %v3548, 113
        %v3592 = vpop.permute.xlu0 %3591
        %3593 = vrot.lane.b32.xlu0 %v3551, 113
        %v3594 = vpop.permute.xlu0 %3593
        %v3597 = vsel %vm502, %v3580, %v3586
        %v3598 = vsel %vm502, %v3582, %v3588
        %v3599 = vsel %vm1800, %v3597, %v3592
        %v3600 = vsel %vm1800, %v3598, %v3594
        %3601 = vrot.lane.b32.xlu0 %v3548, 91
        %v3602 = vpop.permute.xlu0 %3601
        %3603 = vrot.lane.b32.xlu0 %v3551, 91
        %v3604 = vpop.permute.xlu0 %3603
        %3607 = vrot.lane.b32.xlu0 %v3548, 93
        %v3608 = vpop.permute.xlu0 %3607
        %3609 = vrot.lane.b32.xlu0 %v3551, 93
        %v3610 = vpop.permute.xlu0 %3609
        %3613 = vrot.lane.b32.xlu0 %v3548, 95
        %v3614 = vpop.permute.xlu0 %3613
        %3615 = vrot.lane.b32.xlu0 %v3551, 95
        %v3616 = vpop.permute.xlu0 %3615
        %v3619 = vsel %vm502, %v3602, %v3608
        %v3620 = vsel %vm502, %v3604, %v3610
        %v3621 = vsel %vm1800, %v3619, %v3614
        %v3622 = vsel %vm1800, %v3620, %v3616
        %3623 = vrot.lane.b32.xlu0 %v3548, 73
        %v3624 = vpop.permute.xlu0 %3623
        %3625 = vrot.lane.b32.xlu0 %v3551, 73
        %v3626 = vpop.permute.xlu0 %3625
        %3629 = vrot.lane.b32.xlu0 %v3548, 75
        %v3630 = vpop.permute.xlu0 %3629
        %3631 = vrot.lane.b32.xlu0 %v3551, 75
        %v3632 = vpop.permute.xlu0 %3631
        %3635 = vrot.lane.b32.xlu0 %v3548, 77
        %v3636 = vpop.permute.xlu0 %3635
        %3637 = vrot.lane.b32.xlu0 %v3551, 77
        %v3638 = vpop.permute.xlu0 %3637
        %v3641 = vsel %vm502, %v3624, %v3630
        %v3642 = vsel %vm502, %v3626, %v3632
        %v3643 = vsel %vm1800, %v3641, %v3636
        %v3644 = vsel %vm1800, %v3642, %v3638
        %3645 = vrot.lane.b32.xlu0 %v3548, 55
        %v3646 = vpop.permute.xlu0 %3645
        %3647 = vrot.lane.b32.xlu0 %v3551, 55
        %v3648 = vpop.permute.xlu0 %3647
        %3651 = vrot.lane.b32.xlu0 %v3548, 57
        %v3652 = vpop.permute.xlu0 %3651
        %3653 = vrot.lane.b32.xlu0 %v3551, 57
        %v3654 = vpop.permute.xlu0 %3653
        %3657 = vrot.lane.b32.xlu0 %v3548, 59
        %v3658 = vpop.permute.xlu0 %3657
        %3659 = vrot.lane.b32.xlu0 %v3551, 59
        %v3660 = vpop.permute.xlu0 %3659
        %v3663 = vsel %vm502, %v3646, %v3652
        %v3664 = vsel %vm502, %v3648, %v3654
        %v3665 = vsel %vm1800, %v3663, %v3658
        %v3666 = vsel %vm1800, %v3664, %v3660
        %3667 = vrot.lane.b32.xlu0 %v3548, 37
        %v3668 = vpop.permute.xlu0 %3667
        %3669 = vrot.lane.b32.xlu0 %v3551, 37
        %v3670 = vpop.permute.xlu0 %3669
        %3673 = vrot.lane.b32.xlu0 %v3548, 39
        %v3674 = vpop.permute.xlu0 %3673
        %3675 = vrot.lane.b32.xlu0 %v3551, 39
        %v3676 = vpop.permute.xlu0 %3675
        %3679 = vrot.lane.b32.xlu0 %v3548, 41
        %v3680 = vpop.permute.xlu0 %3679
        %3681 = vrot.lane.b32.xlu0 %v3551, 41
        %v3682 = vpop.permute.xlu0 %3681
        %v3685 = vsel %vm502, %v3668, %v3674
        %v3686 = vsel %vm502, %v3670, %v3676
        %v3687 = vsel %vm1800, %v3685, %v3680
        %v3688 = vsel %vm1800, %v3686, %v3682
        %3689 = vrot.lane.b32.xlu0 %v3548, 19
        %v3690 = vpop.permute.xlu0 %3689
        %3691 = vrot.lane.b32.xlu0 %v3551, 19
        %v3692 = vpop.permute.xlu0 %3691
        %3695 = vrot.lane.b32.xlu0 %v3548, 21
        %v3696 = vpop.permute.xlu0 %3695
        %3697 = vrot.lane.b32.xlu0 %v3551, 21
        %v3698 = vpop.permute.xlu0 %3697
        %3701 = vrot.lane.b32.xlu0 %v3548, 23
        %v3702 = vpop.permute.xlu0 %3701
        %3703 = vrot.lane.b32.xlu0 %v3551, 23
        %v3704 = vpop.permute.xlu0 %3703
        %v3707 = vsel %vm502, %v3690, %v3696
        %v3708 = vsel %vm502, %v3692, %v3698
        %v3709 = vsel %vm1800, %v3707, %v3702
        %v3710 = vsel %vm1800, %v3708, %v3704
        %3713 = vrot.lane.b32.xlu0 %v3549, 3
        %v3714 = vpop.permute.xlu0 %3713
        %3715 = vrot.lane.b32.xlu0 %v3552, 3
        %v3716 = vpop.permute.xlu0 %3715
        %v3717 = vsel %vm506, %v3570, %v3714
        %v3718 = vsel %vm506, %v3572, %v3716
        %3721 = vrot.lane.b32.xlu0 %v3549, 5
        %v3722 = vpop.permute.xlu0 %3721
        %3723 = vrot.lane.b32.xlu0 %v3552, 5
        %v3724 = vpop.permute.xlu0 %3723
        %v3727 = vsel %vm502, %v3564, %v3717
        %v3728 = vsel %vm502, %v3566, %v3718
        %v3729 = vsel %vm1800, %v3727, %v3722
        %v3730 = vsel %vm1800, %v3728, %v3724
        %3731 = vrot.lane.b32.xlu0 %v3549, 111
        %v3732 = vpop.permute.xlu0 %3731
        %3733 = vrot.lane.b32.xlu0 %v3552, 111
        %v3734 = vpop.permute.xlu0 %3733
        %3737 = vrot.lane.b32.xlu0 %v3549, 113
        %v3738 = vpop.permute.xlu0 %3737
        %3739 = vrot.lane.b32.xlu0 %v3552, 113
        %v3740 = vpop.permute.xlu0 %3739
        %3743 = vrot.lane.b32.xlu0 %v3549, 115
        %v3744 = vpop.permute.xlu0 %3743
        %3745 = vrot.lane.b32.xlu0 %v3552, 115
        %v3746 = vpop.permute.xlu0 %3745
        %v3749 = vsel %vm502, %v3732, %v3738
        %v3750 = vsel %vm502, %v3734, %v3740
        %v3751 = vsel %vm1800, %v3749, %v3744
        %v3752 = vsel %vm1800, %v3750, %v3746
        %3753 = vrot.lane.b32.xlu0 %v3549, 93
        %v3754 = vpop.permute.xlu0 %3753
        %3755 = vrot.lane.b32.xlu0 %v3552, 93
        %v3756 = vpop.permute.xlu0 %3755
        %3759 = vrot.lane.b32.xlu0 %v3549, 95
        %v3760 = vpop.permute.xlu0 %3759
        %3761 = vrot.lane.b32.xlu0 %v3552, 95
        %v3762 = vpop.permute.xlu0 %3761
        %3765 = vrot.lane.b32.xlu0 %v3549, 97
        %v3766 = vpop.permute.xlu0 %3765
        %3767 = vrot.lane.b32.xlu0 %v3552, 97
        %v3768 = vpop.permute.xlu0 %3767
        %v3771 = vsel %vm502, %v3754, %v3760
        %v3772 = vsel %vm502, %v3756, %v3762
        %v3773 = vsel %vm1800, %v3771, %v3766
        %v3774 = vsel %vm1800, %v3772, %v3768
        %3775 = vrot.lane.b32.xlu0 %v3549, 75
        %v3776 = vpop.permute.xlu0 %3775
        %3777 = vrot.lane.b32.xlu0 %v3552, 75
        %v3778 = vpop.permute.xlu0 %3777
        %3781 = vrot.lane.b32.xlu0 %v3549, 77
        %v3782 = vpop.permute.xlu0 %3781
        %3783 = vrot.lane.b32.xlu0 %v3552, 77
        %v3784 = vpop.permute.xlu0 %3783
        %3787 = vrot.lane.b32.xlu0 %v3549, 79
        %v3788 = vpop.permute.xlu0 %3787
        %3789 = vrot.lane.b32.xlu0 %v3552, 79
        %v3790 = vpop.permute.xlu0 %3789
        %v3793 = vsel %vm502, %v3776, %v3782
        %v3794 = vsel %vm502, %v3778, %v3784
        %v3795 = vsel %vm1800, %v3793, %v3788
        %v3796 = vsel %vm1800, %v3794, %v3790
        %3797 = vrot.lane.b32.xlu0 %v3549, 57
        %v3798 = vpop.permute.xlu0 %3797
        %3799 = vrot.lane.b32.xlu0 %v3552, 57
        %v3800 = vpop.permute.xlu0 %3799
        %3803 = vrot.lane.b32.xlu0 %v3549, 59
        %v3804 = vpop.permute.xlu0 %3803
        %3805 = vrot.lane.b32.xlu0 %v3552, 59
        %v3806 = vpop.permute.xlu0 %3805
        %3809 = vrot.lane.b32.xlu0 %v3549, 61
        %v3810 = vpop.permute.xlu0 %3809
        %3811 = vrot.lane.b32.xlu0 %v3552, 61
        %v3812 = vpop.permute.xlu0 %3811
        %v3815 = vsel %vm502, %v3798, %v3804
        %v3816 = vsel %vm502, %v3800, %v3806
        %v3817 = vsel %vm1800, %v3815, %v3810
        %v3818 = vsel %vm1800, %v3816, %v3812
        %3819 = vrot.lane.b32.xlu0 %v3549, 39
        %v3820 = vpop.permute.xlu0 %3819
        %3821 = vrot.lane.b32.xlu0 %v3552, 39
        %v3822 = vpop.permute.xlu0 %3821
        %3825 = vrot.lane.b32.xlu0 %v3549, 41
        %v3826 = vpop.permute.xlu0 %3825
        %3827 = vrot.lane.b32.xlu0 %v3552, 41
        %v3828 = vpop.permute.xlu0 %3827
        %3831 = vrot.lane.b32.xlu0 %v3549, 43
        %v3832 = vpop.permute.xlu0 %3831
        %3833 = vrot.lane.b32.xlu0 %v3552, 43
        %v3834 = vpop.permute.xlu0 %3833
        %v3837 = vsel %vm502, %v3820, %v3826
        %v3838 = vsel %vm502, %v3822, %v3828
        %v3839 = vsel %vm1800, %v3837, %v3832
        %v3840 = vsel %vm1800, %v3838, %v3834
        %3841 = vrot.lane.b32.xlu0 %v3549, 21
        %v3842 = vpop.permute.xlu0 %3841
        %3843 = vrot.lane.b32.xlu0 %v3552, 21
        %v3844 = vpop.permute.xlu0 %3843
        %3847 = vrot.lane.b32.xlu0 %v3549, 23
        %v3848 = vpop.permute.xlu0 %3847
        %3849 = vrot.lane.b32.xlu0 %v3552, 23
        %v3850 = vpop.permute.xlu0 %3849
        %3853 = vrot.lane.b32.xlu0 %v3549, 25
        %v3854 = vpop.permute.xlu0 %3853
        %3855 = vrot.lane.b32.xlu0 %v3552, 25
        %v3856 = vpop.permute.xlu0 %3855
        %v3859 = vsel %vm502, %v3842, %v3848
        %v3860 = vsel %vm502, %v3844, %v3850
        %v3861 = vsel %vm1800, %v3859, %v3854
        %v3862 = vsel %vm1800, %v3860, %v3856
        %3867 = vrot.lane.b32.xlu0 %v3550, 5
        %v3868 = vpop.permute.xlu0 %3867
        %3869 = vrot.lane.b32.xlu0 %v3553, 5
        %v3870 = vpop.permute.xlu0 %3869
        %v3871 = vsel %vm2996, %v3722, %v3868
        %v3872 = vsel %vm2996, %v3724, %v3870
        %3875 = vrot.lane.b32.xlu0 %v3550, 7
        %v3876 = vpop.permute.xlu0 %3875
        %3877 = vrot.lane.b32.xlu0 %v3553, 7
        %v3878 = vpop.permute.xlu0 %3877
        %v3881 = vsel %vm502, %v3714, %v3871
        %v3882 = vsel %vm502, %v3716, %v3872
        %v3883 = vsel %vm1800, %v3881, %v3876
        %v3884 = vsel %vm1800, %v3882, %v3878
        %3885 = vrot.lane.b32.xlu0 %v3550, 113
        %v3886 = vpop.permute.xlu0 %3885
        %3887 = vrot.lane.b32.xlu0 %v3553, 113
        %v3888 = vpop.permute.xlu0 %3887
        %3891 = vrot.lane.b32.xlu0 %v3550, 115
        %v3892 = vpop.permute.xlu0 %3891
        %3893 = vrot.lane.b32.xlu0 %v3553, 115
        %v3894 = vpop.permute.xlu0 %3893
        %3897 = vrot.lane.b32.xlu0 %v3550, 117
        %v3898 = vpop.permute.xlu0 %3897
        %3899 = vrot.lane.b32.xlu0 %v3553, 117
        %v3900 = vpop.permute.xlu0 %3899
        %v3903 = vsel %vm502, %v3886, %v3892
        %v3904 = vsel %vm502, %v3888, %v3894
        %v3905 = vsel %vm1800, %v3903, %v3898
        %v3906 = vsel %vm1800, %v3904, %v3900
        %3909 = vrot.lane.b32.xlu0 %v3577, 18
        %v3910 = vpop.permute.xlu0 %3909
        %3911 = vrot.lane.b32.xlu0 %v3578, 18
        %v3912 = vpop.permute.xlu0 %3911
        %3917 = vrot.lane.b32.xlu0 %v3599, 36
        %v3918 = vpop.permute.xlu0 %3917
        %3919 = vrot.lane.b32.xlu0 %v3600, 36
        %v3920 = vpop.permute.xlu0 %3919
        %3925 = vrot.lane.b32.xlu0 %v3621, 54
        %v3926 = vpop.permute.xlu0 %3925
        %3927 = vrot.lane.b32.xlu0 %v3622, 54
        %v3928 = vpop.permute.xlu0 %3927
        %3933 = vrot.lane.b32.xlu0 %v3643, 72
        %v3934 = vpop.permute.xlu0 %3933
        %3935 = vrot.lane.b32.xlu0 %v3644, 72
        %v3936 = vpop.permute.xlu0 %3935
        %3941 = vrot.lane.b32.xlu0 %v3665, 90
        %v3942 = vpop.permute.xlu0 %3941
        %3943 = vrot.lane.b32.xlu0 %v3666, 90
        %v3944 = vpop.permute.xlu0 %3943
        %3949 = vrot.lane.b32.xlu0 %v3687, 108
        %v3950 = vpop.permute.xlu0 %3949
        %3951 = vrot.lane.b32.xlu0 %v3688, 108
        %v3952 = vpop.permute.xlu0 %3951
        %3957 = vrot.lane.b32.xlu0 %v3709, 126
        %v3958 = vpop.permute.xlu0 %3957
        %3959 = vrot.lane.b32.xlu0 %v3710, 126
        %v3960 = vpop.permute.xlu0 %3959
        %3965 = vrot.lane.b32.xlu0 %v3729, 16
        %v3966 = vpop.permute.xlu0 %3965
        %3967 = vrot.lane.b32.xlu0 %v3730, 16
        %v3968 = vpop.permute.xlu0 %3967
        %3973 = vrot.lane.b32.xlu0 %v3751, 34
        %v3974 = vpop.permute.xlu0 %3973
        %3975 = vrot.lane.b32.xlu0 %v3752, 34
        %v3976 = vpop.permute.xlu0 %3975
        %3981 = vrot.lane.b32.xlu0 %v3773, 52
        %v3982 = vpop.permute.xlu0 %3981
        %3983 = vrot.lane.b32.xlu0 %v3774, 52
        %v3984 = vpop.permute.xlu0 %3983
        %3989 = vrot.lane.b32.xlu0 %v3795, 70
        %v3990 = vpop.permute.xlu0 %3989
        %3991 = vrot.lane.b32.xlu0 %v3796, 70
        %v3992 = vpop.permute.xlu0 %3991
        %3997 = vrot.lane.b32.xlu0 %v3817, 88
        %v3998 = vpop.permute.xlu0 %3997
        %3999 = vrot.lane.b32.xlu0 %v3818, 88
        %v4000 = vpop.permute.xlu0 %3999
        %4005 = vrot.lane.b32.xlu0 %v3839, 106
        %v4006 = vpop.permute.xlu0 %4005
        %4007 = vrot.lane.b32.xlu0 %v3840, 106
        %v4008 = vpop.permute.xlu0 %4007
        %4013 = vrot.lane.b32.xlu0 %v3861, 124
        %v4014 = vpop.permute.xlu0 %4013
        %4015 = vrot.lane.b32.xlu0 %v3862, 124
        %v4016 = vpop.permute.xlu0 %4015
        %4021 = vrot.lane.b32.xlu0 %v3883, 14
        %v4022 = vpop.permute.xlu0 %4021
        %4023 = vrot.lane.b32.xlu0 %v3884, 14
        %v4024 = vpop.permute.xlu0 %4023
        %v4027 = vsel %vm2264, %v3599, %v3910
        %v4028 = vsel %vm2264, %v3600, %v3912
        %v4029 = vsel %vm1638, %v4027, %v3918
        %v4030 = vsel %vm1638, %v4028, %v3920
        %v4031 = vsel %vm2269, %v4029, %v3926
        %v4032 = vsel %vm2269, %v4030, %v3928
        %v4033 = vsel %vm2272, %v4031, %v3934
        %v4034 = vsel %vm2272, %v4032, %v3936
        %v4035 = vsel %vm2275, %v4033, %v3942
        %v4036 = vsel %vm2275, %v4034, %v3944
        %v4037 = vsel %vm1314, %v4035, %v3950
        %v4038 = vsel %vm1314, %v4036, %v3952
        %v4039 = vsel %vm1073, %v4037, %v3958
        %v4040 = vsel %vm1073, %v4038, %v3960
        %v4041 = vsel %vm2282, %v3958, %v3966
        %v4042 = vsel %vm2282, %v3960, %v3968
        %v4043 = vsel %vm2285, %v4041, %v3974
        %v4044 = vsel %vm2285, %v4042, %v3976
        %v4045 = vsel %vm1004, %v4043, %v3982
        %v4046 = vsel %vm1004, %v4044, %v3984
        %v4047 = vsel %vm994, %v4045, %v3990
        %v4048 = vsel %vm994, %v4046, %v3992
        %v4049 = vsel %vm984, %v4047, %v3998
        %v4050 = vsel %vm984, %v4048, %v4000
        %v4051 = vsel %vm1136, %v4049, %v4006
        %v4052 = vsel %vm1136, %v4050, %v4008
        %v4053 = vsel %vm1100, %v4051, %v4014
        %v4054 = vsel %vm1100, %v4052, %v4016
        %v4055 = vsel %vm2298, %v4014, %v4022
        %v4056 = vsel %vm2298, %v4016, %v4024
        %4057 = vrot.lane.b32.xlu0 %v3883, 18
        %v4058 = vpop.permute.xlu0 %4057
        %4059 = vrot.lane.b32.xlu0 %v3884, 18
        %v4060 = vpop.permute.xlu0 %4059
        %v4063 = vsel %vm2264, %v3905, %v4058
        %v4064 = vsel %vm2264, %v3906, %v4060
        %4067 = vrot.lane.b32.xlu0 %v4063, 32
        %v4068 = vpop.permute.xlu0 %4067
        %4069 = vrot.lane.b32.xlu0 %v4064, 32
        %v4070 = vpop.permute.xlu0 %4069
        %v4073 = vsel %vm2317, %v4055, %v4068
        %v4074 = vsel %vm2317, %v4056, %v4070
        %4077 = vrot.lane.b32.xlu0 %v4039, 68
        %v4078 = vpop.permute.xlu0 %4077
        %4079 = vrot.lane.b32.xlu0 %v4040, 68
        %v4080 = vpop.permute.xlu0 %4079
        %v4083 = vsel %vm2328, %v4073, %v4078
        %v4084 = vsel %vm2328, %v4074, %v4080
        %4089 = vrot.lane.b32.xlu0 %v4039, 127
        %v4090 = vpop.permute.xlu0 %4089
        %4091 = vrot.lane.b32.xlu0 %v4053, 127
        %v4092 = vpop.permute.xlu0 %4091
        %4093 = vrot.lane.b32.xlu0 %v4083, 127
        %v4094 = vpop.permute.xlu0 %4093
        %4095 = vrot.lane.b32.xlu0 %v4040, 127
        %v4096 = vpop.permute.xlu0 %4095
        %4097 = vrot.lane.b32.xlu0 %v4054, 127
        %v4098 = vpop.permute.xlu0 %4097
        %4099 = vrot.lane.b32.xlu0 %v4084, 127
        %v4100 = vpop.permute.xlu0 %4099
        %v4101 = vsel %vm1058, %v4090, %v4092
        %v4102 = vsel %vm1058, %v4092, %v4094
        %v4103 = vsel %vm1058, %v4096, %v4098
        %v4104 = vsel %vm1058, %v4098, %v4100
        %4111 = vrot.lane.b32.xlu0 %v4039, 126
        %v4112 = vpop.permute.xlu0 %4111
        %4113 = vrot.lane.b32.xlu0 %v4053, 126
        %v4114 = vpop.permute.xlu0 %4113
        %4115 = vrot.lane.b32.xlu0 %v4083, 126
        %v4116 = vpop.permute.xlu0 %4115
        %4117 = vrot.lane.b32.xlu0 %v4040, 126
        %v4118 = vpop.permute.xlu0 %4117
        %4119 = vrot.lane.b32.xlu0 %v4054, 126
        %v4120 = vpop.permute.xlu0 %4119
        %4121 = vrot.lane.b32.xlu0 %v4084, 126
        %v4122 = vpop.permute.xlu0 %4121
        %v4123 = vsel %vm1073, %v4112, %v4114
        %v4124 = vsel %vm1073, %v4114, %v4116
        %v4125 = vsel %vm1073, %v4118, %v4120
        %v4126 = vsel %vm1073, %v4120, %v4122
        %4133 = vrot.lane.b32.xlu0 %v4039, 110
        %v4134 = vpop.permute.xlu0 %4133
        %4135 = vrot.lane.b32.xlu0 %v4053, 110
        %v4136 = vpop.permute.xlu0 %4135
        %4137 = vrot.lane.b32.xlu0 %v4083, 110
        %v4138 = vpop.permute.xlu0 %4137
        %4139 = vrot.lane.b32.xlu0 %v4040, 110
        %v4140 = vpop.permute.xlu0 %4139
        %4141 = vrot.lane.b32.xlu0 %v4054, 110
        %v4142 = vpop.permute.xlu0 %4141
        %4143 = vrot.lane.b32.xlu0 %v4084, 110
        %v4144 = vpop.permute.xlu0 %4143
        %v4145 = vsel %vm986, %v4134, %v4136
        %v4146 = vsel %vm986, %v4136, %v4138
        %v4147 = vsel %vm986, %v4140, %v4142
        %v4148 = vsel %vm986, %v4142, %v4144
        %4155 = vrot.lane.b32.xlu0 %v4039, 109
        %v4156 = vpop.permute.xlu0 %4155
        %4157 = vrot.lane.b32.xlu0 %v4053, 109
        %v4158 = vpop.permute.xlu0 %4157
        %4159 = vrot.lane.b32.xlu0 %v4083, 109
        %v4160 = vpop.permute.xlu0 %4159
        %4161 = vrot.lane.b32.xlu0 %v4040, 109
        %v4162 = vpop.permute.xlu0 %4161
        %4163 = vrot.lane.b32.xlu0 %v4054, 109
        %v4164 = vpop.permute.xlu0 %4163
        %4165 = vrot.lane.b32.xlu0 %v4084, 109
        %v4166 = vpop.permute.xlu0 %4165
        %v4167 = vsel %vm1456, %v4156, %v4158
        %v4168 = vsel %vm1456, %v4158, %v4160
        %v4169 = vsel %vm1456, %v4162, %v4164
        %v4170 = vsel %vm1456, %v4164, %v4166
        %4177 = vrot.lane.b32.xlu0 %v4039, 108
        %v4178 = vpop.permute.xlu0 %4177
        %4179 = vrot.lane.b32.xlu0 %v4053, 108
        %v4180 = vpop.permute.xlu0 %4179
        %4181 = vrot.lane.b32.xlu0 %v4083, 108
        %v4182 = vpop.permute.xlu0 %4181
        %4183 = vrot.lane.b32.xlu0 %v4040, 108
        %v4184 = vpop.permute.xlu0 %4183
        %4185 = vrot.lane.b32.xlu0 %v4054, 108
        %v4186 = vpop.permute.xlu0 %4185
        %4187 = vrot.lane.b32.xlu0 %v4084, 108
        %v4188 = vpop.permute.xlu0 %4187
        %v4189 = vsel %vm1314, %v4178, %v4180
        %v4190 = vsel %vm1314, %v4180, %v4182
        %v4191 = vsel %vm1314, %v4184, %v4186
        %v4192 = vsel %vm1314, %v4186, %v4188
        %4199 = vrot.lane.b32.xlu0 %v4039, 92
        %v4200 = vpop.permute.xlu0 %4199
        %4201 = vrot.lane.b32.xlu0 %v4053, 92
        %v4202 = vpop.permute.xlu0 %4201
        %4203 = vrot.lane.b32.xlu0 %v4083, 92
        %v4204 = vpop.permute.xlu0 %4203
        %4205 = vrot.lane.b32.xlu0 %v4040, 92
        %v4206 = vpop.permute.xlu0 %4205
        %4207 = vrot.lane.b32.xlu0 %v4054, 92
        %v4208 = vpop.permute.xlu0 %4207
        %4209 = vrot.lane.b32.xlu0 %v4084, 92
        %v4210 = vpop.permute.xlu0 %4209
        %v4211 = vsel %vm996, %v4200, %v4202
        %v4212 = vsel %vm996, %v4202, %v4204
        %v4213 = vsel %vm996, %v4206, %v4208
        %v4214 = vsel %vm996, %v4208, %v4210
        %4221 = vrot.lane.b32.xlu0 %v4039, 91
        %v4222 = vpop.permute.xlu0 %4221
        %4223 = vrot.lane.b32.xlu0 %v4053, 91
        %v4224 = vpop.permute.xlu0 %4223
        %4225 = vrot.lane.b32.xlu0 %v4083, 91
        %v4226 = vpop.permute.xlu0 %4225
        %4227 = vrot.lane.b32.xlu0 %v4040, 91
        %v4228 = vpop.permute.xlu0 %4227
        %4229 = vrot.lane.b32.xlu0 %v4054, 91
        %v4230 = vpop.permute.xlu0 %4229
        %4231 = vrot.lane.b32.xlu0 %v4084, 91
        %v4232 = vpop.permute.xlu0 %4231
        %v4233 = vsel %vm2479, %v4222, %v4224
        %v4234 = vsel %vm2479, %v4224, %v4226
        %v4235 = vsel %vm2479, %v4228, %v4230
        %v4236 = vsel %vm2479, %v4230, %v4232
        %4243 = vrot.lane.b32.xlu0 %v4039, 90
        %v4244 = vpop.permute.xlu0 %4243
        %4245 = vrot.lane.b32.xlu0 %v4053, 90
        %v4246 = vpop.permute.xlu0 %4245
        %4247 = vrot.lane.b32.xlu0 %v4083, 90
        %v4248 = vpop.permute.xlu0 %4247
        %4249 = vrot.lane.b32.xlu0 %v4040, 90
        %v4250 = vpop.permute.xlu0 %4249
        %4251 = vrot.lane.b32.xlu0 %v4054, 90
        %v4252 = vpop.permute.xlu0 %4251
        %4253 = vrot.lane.b32.xlu0 %v4084, 90
        %v4254 = vpop.permute.xlu0 %4253
        %v4255 = vsel %vm2275, %v4244, %v4246
        %v4256 = vsel %vm2275, %v4246, %v4248
        %v4257 = vsel %vm2275, %v4250, %v4252
        %v4258 = vsel %vm2275, %v4252, %v4254
        %v4266 = vperm.slane %v3554, 0
        %v4267 = vperm.slane %v3554, 1
        %v4269 = vsel %vm2282, %v4267, 0
        %4271 = vmatpush.msra.mxu0 %v4235
        %4272 = vmatpush.msra.mxu0 %v4233
        %4273 = vmatpush.msra.mxu0 %v4213
        %4274 = vmatpush.msra.mxu0 %v4211
        %4275 = vmatpush.msra.mxu0 %v4191
        %4276 = vmatpush.msra.mxu0 %v4189
        %4277 = vmatpush.msra.mxu0 %v4169
        %4278 = vmatpush.msra.mxu0 %v4167
        %4279 = vmatpush.msra.mxu0 %v4147
        %4280 = vmatpush.msra.mxu0 %v4145
        %4281 = vmatpush.msra.mxu0 %v4125
        %4282 = vmatpush.msra.mxu0 %v4123
        %4283 = vmatpush.msra.mxu0 %v4103
        %4284 = vmatpush.msra.mxu0 %v4101
        %4285 = vmatpush.msra.mxu0 %v4040
        %4286 = vmatpush.msra.mxu0 %v4039
        %4287 = vmatmul.f32.gmra.mxu0 %v4266
        %v4288 = vpop.f32.mrf.mxu0
        %v4289 = vadd.f32 0.0, %v4288
        %4290 = vdwg.mxu0
        %4291 = vmatpush.msra.mxu0 0.0
        %4292 = vmatpush.msra.mxu0 0.0
        %4293 = vmatpush.msra.mxu0 0.0
        %4294 = vmatpush.msra.mxu0 0.0
        %4295 = vmatpush.msra.mxu0 0.0
        %4296 = vmatpush.msra.mxu0 0.0
        %4297 = vmatpush.msra.mxu0 0.0
        %4298 = vmatpush.msra.mxu0 0.0
        %4299 = vmatpush.msra.mxu0 0.0
        %4300 = vmatpush.msra.mxu0 0.0
        %4301 = vmatpush.msra.mxu0 0.0
        %4302 = vmatpush.msra.mxu0 0.0
        %4303 = vmatpush.msra.mxu0 0.0
        %4304 = vmatpush.msra.mxu0 0.0
        %4305 = vmatpush.msra.mxu0 %v4257
        %4306 = vmatpush.msra.mxu0 %v4255
        %4307 = vmatmul.f32.gmra.mxu0 %v4269
        %v4308 = vpop.f32.mrf.mxu0
        %v4309 = vadd.f32 %v4289, %v4308
        %4310 = vdwg.mxu0
        %4311 = vmatpush.msra.mxu0 %v4236
        %4312 = vmatpush.msra.mxu0 %v4234
        %4313 = vmatpush.msra.mxu0 %v4214
        %4314 = vmatpush.msra.mxu0 %v4212
        %4315 = vmatpush.msra.mxu0 %v4192
        %4316 = vmatpush.msra.mxu0 %v4190
        %4317 = vmatpush.msra.mxu0 %v4170
        %4318 = vmatpush.msra.mxu0 %v4168
        %4319 = vmatpush.msra.mxu0 %v4148
        %4320 = vmatpush.msra.mxu0 %v4146
        %4321 = vmatpush.msra.mxu0 %v4126
        %4322 = vmatpush.msra.mxu0 %v4124
        %4323 = vmatpush.msra.mxu0 %v4104
        %4324 = vmatpush.msra.mxu0 %v4102
        %4325 = vmatpush.msra.mxu0 %v4054
        %4326 = vmatpush.msra.mxu0 %v4053
        %4327 = vmatmul.f32.gmra.mxu0 %v4266
        %v4328 = vpop.f32.mrf.mxu0
        %v4329 = vadd.f32 0.0, %v4328
        %4330 = vdwg.mxu0
        %4331 = vmatpush.msra.mxu0 0.0
        %4332 = vmatpush.msra.mxu0 0.0
        %4333 = vmatpush.msra.mxu0 0.0
        %4334 = vmatpush.msra.mxu0 0.0
        %4335 = vmatpush.msra.mxu0 0.0
        %4336 = vmatpush.msra.mxu0 0.0
        %4337 = vmatpush.msra.mxu0 0.0
        %4338 = vmatpush.msra.mxu0 0.0
        %4339 = vmatpush.msra.mxu0 0.0
        %4340 = vmatpush.msra.mxu0 0.0
        %4341 = vmatpush.msra.mxu0 0.0
        %4342 = vmatpush.msra.mxu0 0.0
        %4343 = vmatpush.msra.mxu0 0.0
        %4344 = vmatpush.msra.mxu0 0.0
        %4345 = vmatpush.msra.mxu0 %v4258
        %4346 = vmatpush.msra.mxu0 %v4256
        %4347 = vmatmul.f32.gmra.mxu0 %v4269
        %v4348 = vpop.f32.mrf.mxu0
        %v4349 = vadd.f32 %v4329, %v4348
        %4350 = vdwg.mxu0
        %4351 = vmatpush.msra.mxu0 %v4232
        %4352 = vmatpush.msra.mxu0 %v4226
        %4353 = vmatpush.msra.mxu0 %v4210
        %4354 = vmatpush.msra.mxu0 %v4204
        %4355 = vmatpush.msra.mxu0 %v4188
        %4356 = vmatpush.msra.mxu0 %v4182
        %4357 = vmatpush.msra.mxu0 %v4166
        %4358 = vmatpush.msra.mxu0 %v4160
        %4359 = vmatpush.msra.mxu0 %v4144
        %4360 = vmatpush.msra.mxu0 %v4138
        %4361 = vmatpush.msra.mxu0 %v4122
        %4362 = vmatpush.msra.mxu0 %v4116
        %4363 = vmatpush.msra.mxu0 %v4100
        %4364 = vmatpush.msra.mxu0 %v4094
        %4365 = vmatpush.msra.mxu0 %v4084
        %4366 = vmatpush.msra.mxu0 %v4083
        %4367 = vmatmul.f32.gmra.mxu0 %v4266
        %v4368 = vpop.f32.mrf.mxu0
        %v4369 = vadd.f32 0.0, %v4368
        %4370 = vdwg.mxu0
        %4371 = vmatpush.msra.mxu0 0.0
        %4372 = vmatpush.msra.mxu0 0.0
        %4373 = vmatpush.msra.mxu0 0.0
        %4374 = vmatpush.msra.mxu0 0.0
        %4375 = vmatpush.msra.mxu0 0.0
        %4376 = vmatpush.msra.mxu0 0.0
        %4377 = vmatpush.msra.mxu0 0.0
        %4378 = vmatpush.msra.mxu0 0.0
        %4379 = vmatpush.msra.mxu0 0.0
        %4380 = vmatpush.msra.mxu0 0.0
        %4381 = vmatpush.msra.mxu0 0.0
        %4382 = vmatpush.msra.mxu0 0.0
        %4383 = vmatpush.msra.mxu0 0.0
        %4384 = vmatpush.msra.mxu0 0.0
        %4385 = vmatpush.msra.mxu0 %v4254
        %4386 = vmatpush.msra.mxu0 %v4248
        %4387 = vmatmul.f32.gmra.mxu0 %v4269
        %v4388 = vpop.f32.mrf.mxu0
        %v4389 = vadd.f32 %v4369, %v4388
        %4390 = vdwg.mxu0
        %4392 = vrot.lane.b32.xlu0 %v4309, 126
        %v4393 = vpop.permute.xlu0 %4392
        %4395 = vrot.lane.b32.xlu0 %v4309, 124
        %v4396 = vpop.permute.xlu0 %4395
        %4398 = vrot.lane.b32.xlu0 %v4309, 122
        %v4399 = vpop.permute.xlu0 %4398
        %4401 = vrot.lane.b32.xlu0 %v4309, 120
        %v4402 = vpop.permute.xlu0 %4401
        %4404 = vrot.lane.b32.xlu0 %v4309, 118
        %v4405 = vpop.permute.xlu0 %4404
        %4407 = vrot.lane.b32.xlu0 %v4309, 116
        %v4408 = vpop.permute.xlu0 %4407
        %4411 = vrot.lane.b32.xlu0 %v4309, 114
        %v4412 = vpop.permute.xlu0 %4411
        %4413 = vrot.lane.b32.xlu0 %v4349, 114
        %v4414 = vpop.permute.xlu0 %4413
        %v4415 = vsel %vm998, %v4412, %v4414
        %4417 = vrot.lane.b32.xlu0 %v4349, 112
        %v4418 = vpop.permute.xlu0 %4417
        %4420 = vrot.lane.b32.xlu0 %v4349, 110
        %v4421 = vpop.permute.xlu0 %4420
        %4423 = vrot.lane.b32.xlu0 %v4349, 108
        %v4424 = vpop.permute.xlu0 %4423
        %4426 = vrot.lane.b32.xlu0 %v4349, 106
        %v4427 = vpop.permute.xlu0 %4426
        %4429 = vrot.lane.b32.xlu0 %v4349, 104
        %v4430 = vpop.permute.xlu0 %4429
        %4432 = vrot.lane.b32.xlu0 %v4349, 102
        %v4433 = vpop.permute.xlu0 %4432
        %4436 = vrot.lane.b32.xlu0 %v4349, 100
        %v4437 = vpop.permute.xlu0 %4436
        %4438 = vrot.lane.b32.xlu0 %v4389, 100
        %v4439 = vpop.permute.xlu0 %4438
        %v4440 = vsel %vm1045, %v4437, %v4439
        %4442 = vrot.lane.b32.xlu0 %v4389, 98
        %v4443 = vpop.permute.xlu0 %4442
        %v4445 = vsel %vm2282, %v4309, %v4393
        %v4446 = vsel %vm2317, %v4445, %v4396
        %v4447 = vsel %vm992, %v4446, %v4399
        %vm4448 = vcmask 523264
        %v4449 = vsel %vm4448, %v4447, %v4402
        %vm4450 = vcmask 654336
        %v4451 = vsel %vm4450, %v4449, %v4405
        %v4452 = vsel %vm1036, %v4451, %v4408
        %vm4453 = vcmask 916480
        %v4454 = vsel %vm4453, %v4452, %v4415
        %v4455 = vsel %vm2282, %v4418, %v4421
        %v4456 = vsel %vm2317, %v4455, %v4424
        %v4457 = vsel %vm992, %v4456, %v4427
        %v4458 = vsel %vm4448, %v4457, %v4430
        %v4459 = vsel %vm4450, %v4458, %v4433
        %v4460 = vsel %vm1036, %v4459, %v4440
        %v4461 = vsel %vm4453, %v4460, %v4443
        %v4462 = vld [vmem:[%s397] sm:$0x3]
        %v4465 = vrot.slane %v4461, 7
        %v4466 = vsel %vm474, %v4454, %v4465
        %v4468 = vadd.f32 %v4462, %v4466
        %v4469 = vlaneseq
        %vm4470 = vcmp.ge.s32.totalorder %v4469, 0
        %vm4471 = vcmp.lt.s32.totalorder %v4469, 256
        %vm4472 = vmand %vm4470, %vm4471
        %4473 = vst.msk [vmem:[%s461] sm:$0x3] %vm4472, %v4468
        %s4474 = sand.u32 %s222, 1
        %s4475 = scalar_lea.sflag [#allocation4], %s4474
        %s4476 = sand.u32 %s222, 1
        %s4477 = smul.addr %s4476, 2
        %s4478 = scalar_lea.vmem [#allocation15], %s4477
        // Predicated region
        $region81: #{tpu_custom_call.1} parent=51 // pred_check
          %p4479 = pneg %p232
        $region82: #{tpu_custom_call.1} parent=51 // pred_check_branch
          %4481 = sbr.rel (%p4479) target = $region84
        $region83: #{tpu_custom_call.1} parent=51 // pred_region
          %4483 = vsyncadd %s4475, 0
          %s4484 = smul.addr %s31, 2
          %s4485 = scalar_lea.hbm %s8, %s4484
          %s4487 = sshll.u32 %s4478, 4
          %s4488 = int_to_ptr.vmem [resolvable:$true] %s4487
          %s4489 = sshll.u32 %s4485, 4
          %s4490 = int_to_ptr.hbm [resolvable:$true] %s4489
          %4492 = dma.vmem_to_hbm [thread:$0]  %s4488, 32, %s4490, %s4475
        $region84: #{tpu_custom_call.1} parent=51 // pred_fallthru
          _
      $region52: #{tpu_custom_call.1} parent=5 // pred_fallthru
        _
      %p4493 = scmp.le.s32.totalorder 2, %s26
      // Predicated region
      $region85: #{tpu_custom_call.1} parent=5 // pred_check
        %p4494 = pneg %p4493
      $region86: #{tpu_custom_call.1} parent=5 // pred_check_branch
        %4496 = sbr.rel (%p4494) target = $region88
      $region87: #{tpu_custom_call.1} parent=5 // pred_region
        %s4497 = ssub.s32 %s26, 2
        // Predicated region
        $region89: #{tpu_custom_call.1} parent=87 // pred_check
          %p4498 = pneg %p238
        $region90: #{tpu_custom_call.1} parent=87 // pred_check_branch
          %4500 = sbr.rel (%p4498) target = $region92
        $region91: #{tpu_custom_call.1} parent=87 // pred_region
          %s4501 = sand.u32 %s223, 1
          %s4502 = scalar_lea.sflag [#allocation4], %s4501
          %s4503 = sand.u32 %s223, 1
          %s4504 = smul.addr %s4503, 2
          %s4505 = scalar_lea.vmem [#allocation15], %s4504
          %4507 = dma.done %s4502, 32
        $region92: #{tpu_custom_call.1} parent=87 // pred_fallthru
          _
      $region88: #{tpu_custom_call.1} parent=5 // pred_fallthru
        _
    $region6: #{tpu_custom_call.1} parent=1 // loop_footer
      %s30 = sadd.s32 1, %s26
    $region7: #{tpu_custom_call.1} parent=1 // loop_footer_branch
      %25 = sbr.rel target = $region3
    $region8: #{tpu_custom_call.1} parent=1 // loop_exit
      _
    %4508 = vsyncpa [#allocation3], 1
    %s4509 = scalar_lea.sflag [#allocation3], 1
    %4510 = vsyncpa %s4509, 1
    %4511 = vsyncpa [#allocation7], 1
    %s4512 = scalar_lea.sflag [#allocation7], 1
    %4513 = vsyncpa %s4512, 1
    %4514 = vsyncpa [#allocation10], 1
    %4515 = vsyncpa [#allocation13], 1
    %4516 = vsyncpa [#allocation4], 1
    %s4517 = scalar_lea.sflag [#allocation4], 1
    %4518 = vsyncpa %s4517, 1
    %4519 = vsyncpa [#allocation5], 1
    %s4520 = scalar_lea.sflag [#allocation5], 1
    %4521 = vsyncpa %s4520, 1

</llo_original>
